<compile_context>
chip_gen: v5e
topology: v5e:2x2
jax: 0.10.0
libtpu: 0.0.40
codegen_flags: <defaults>
</compile_context>

<pallas_src>
import functools
import math

import jax
import jax.numpy as jnp
from jax import lax
from jax.experimental import pallas as pl
from jax.experimental.pallas import tpu as pltpu

_INV_SQRT2 = 1.0 / math.sqrt(2.0)


def _vmem_capacity_bytes():
    """Physical VMEM of the local TPU generation (fallback: 64 MiB = v7x)."""
    try:
        return int(pltpu.get_tpu_info().vmem_capacity_bytes)
    except Exception:
        return 64 << 20


def _pick_tile(dim, preferred, align):
    """Largest multiple of `align` <= preferred that divides `dim`; else `dim`.

    Falling back to the full dimension keeps the BlockSpec legal for ragged
    shapes (block == full dim); it can cost VMEM for huge dims (see TODO above).
    """
    preferred = max(1, min(dim, int(preferred)))
    if dim <= preferred:
        return dim
    t = (preferred // align) * align
    while t >= align:
        if dim % t == 0:
            return t
        t -= align
    return dim


def _block_kernel(x_ref, w_ref, b_ref, o_ref, *scratch, feature_axis, mxu_dtype,
                  hoist_cast, approx_gelu, precision):
    """One (TB, TN) output tile of y = x + GELU(x @ W + b).

    x_ref: (TB, D)   full-K row block of x (f32, also used for the residual)
    w_ref: (D, TN)   N-slab of the (in, out) weight (bf16 or f32)
    b_ref: (1, TN)   N-slab of the bias (f32)
    o_ref: (TB, TN)
    scratch (optional): (TB, D) bf16 VMEM holding the cast x row block.
    """
    j = pl.program_id(feature_axis)
    tn = o_ref.shape[-1]

    if hoist_cast:
        x_mxu_ref = scratch[0]

        # Fill the bf16 copy of the x row block once per batch tile (feature
        # axis is the sequential inner axis in this configuration).
        @pl.when(j == 0)
        def _():
            x_mxu_ref[...] = x_ref[...].astype(mxu_dtype)

        x_mxu = x_mxu_ref[...]
    else:
        x_mxu = x_ref[...].astype(mxu_dtype)

    # MXU matmul, f32 accumulation.
    h = jnp.dot(x_mxu, w_ref[...], preferred_element_type=jnp.float32,
                precision=precision)
    h = h + b_ref[...].astype(jnp.float32)

    if approx_gelu:
        # tanh GELU -> EUP slot (useful on v5e when the erf polynomial binds VALU).
        g = jax.nn.gelu(h, approximate=True)
    else:
        # Exact (erf-based) GELU, matching torch.nn.GELU() default.
        g = 0.5 * h * (1.0 + lax.erf(h * jnp.float32(_INV_SQRT2)))

    # Residual: the TN columns of the f32 x row block matching this output tile.
    col = pl.multiple_of(j * tn, tn)
    x_res = x_ref[:, pl.ds(col, tn)].astype(jnp.float32)
    o_ref[...] = (x_res + g).astype(o_ref.dtype)


def block_forward(x, w, b, *, tile_b=None, tile_n=None, mxu_bf16=True,
                  approx_gelu=False, batch_outer=None, precision=None):
    """y = x + GELU(x @ w + b).

    x: (B, D) float32
    w: (D, D) weight already transposed to (in, out) (PyTorch stores (out, in))
    b: (D,)   bias
    mxu_bf16: store/stream the weight in bf16 and run the MXU in bf16 (default).
    precision: optional lax.Precision passed to the dot (e.g. HIGHEST for a
               strict-f32 path when mxu_bf16=False).
    """
    B, D = x.shape
    assert w.shape == (D, D) and b.shape == (D,)

    itm = jnp.dtype(x.dtype).itemsize
    itw = 2 if mxu_bf16 else itm

    cap = _vmem_capacity_bytes()
    budget = int(cap * 0.75)  # leave Mosaic headroom for internal scratch/sems

    # ---- feature (output-column) tile: lane-dense ---------------------------
    if tile_n is None:
        tile_n = _pick_tile(D, 512, 128) if D % 128 == 0 else D
    assert D % tile_n == 0
    assert tile_n == D or tile_n % 128 == 0, "tile_n must be lane-aligned or == D"

    # ---- batch tile: as large as the VMEM budget allows ----------------------
    # Arithmetic intensity vs. the weight stream is 2*tile_b/itemsize flop/byte;
    # big tile_b (single batch tile whenever B fits) keeps the kernel MXU-bound
    # rather than weight-DMA-bound (ridge ~640 flop/byte v6e bf16, ~311 v7x,
    # ~240 v5e).
    if tile_b is None:
        per_row = D * itm + (D * 2 if mxu_bf16 else 0) + 2 * tile_n * itm
        fixed = 2 * D * tile_n * itw + 2 * tile_n * itm + (2 << 20)
        tb_cap = max(8, (budget - fixed) // per_row)
        align_b = 16 if mxu_bf16 else 8  # clean (16,128) bf16 sublane packing
        tile_b = _pick_tile(B, min(B, tb_cap), align_b)
    assert B % tile_b == 0

    nb, nn = B // tile_b, D // tile_n

    # ---- grid order: minimize replicated HBM traffic -------------------------
    w_bytes = D * D * itw
    bo_traffic = w_bytes * (nb if nn > 1 else 1) + B * D * itm      # batch-outer
    ws_traffic = w_bytes + B * D * itm * (nn if nb > 1 else 1)      # weight-stationary
    if batch_outer is None:
        batch_outer = bo_traffic <= ws_traffic

    mxu_dtype = jnp.bfloat16 if mxu_bf16 else x.dtype
    w_arr = w.astype(jnp.bfloat16) if mxu_bf16 else w
    b2 = b.reshape(1, D)

    # Hoist the bf16 cast of the x row block into a once-per-batch-tile scratch
    # (only pays off when the feature axis is the revisited sequential inner axis).
    hoist_cast = bool(mxu_bf16 and batch_outer and nn > 1 and nb > 1)

    if batch_outer:
        grid = (nb, nn)
        feature_axis = 1
        out_specs = pl.BlockSpec((tile_b, tile_n), lambda i, j: (i, j))
        # Feature axis must stay sequential when the hoisted-cast scratch carries
        # state across it; otherwise every (i, j) tile is independent.
        dims = ("parallel", "arbitrary") if hoist_cast else ("parallel", "parallel")
        x_bufs, w_bufs = 1, 2
    else:
        grid = (nn, nb)
        feature_axis = 0
        out_specs = pl.BlockSpec((tile_b, tile_n), lambda j, i: (i, j))
        dims = ("parallel", "parallel")
        x_bufs, w_bufs = 2, 1

    def _build_in_specs(single_buffer_stationary):
        mode = pl.Buffered(1) if single_buffer_stationary else None
        if batch_outer:
            return [
                # x row block: constant over the inner feature axis.
                pl.BlockSpec((tile_b, D), lambda i, j: (i, 0), pipeline_mode=mode),
                # Weight / bias N-slabs, streamed over the inner axis.
                pl.BlockSpec((D, tile_n), lambda i, j: (0, j)),
                pl.BlockSpec((1, tile_n), lambda i, j: (0, j)),
            ]
        return [
            # x row block streamed over the inner batch axis.
            pl.BlockSpec((tile_b, D), lambda j, i: (i, 0)),
            # Weight / bias N-slab: constant over the inner batch axis.
            pl.BlockSpec((D, tile_n), lambda j, i: (0, j), pipeline_mode=mode),
            pl.BlockSpec((1, tile_n), lambda j, i: (0, j), pipeline_mode=mode),
        ]

    scratch_shapes = ([pltpu.VMEM((tile_b, D), jnp.bfloat16)] if hoist_cast else [])

    footprint = (x_bufs * tile_b * D * itm
                 + (tile_b * D * 2 if hoist_cast else 0)
                 + w_bufs * D * tile_n * itw
                 + w_bufs * tile_n * itm
                 + 2 * tile_b * tile_n * itm)
    vmem_limit = int(max(footprint + (4 << 20), 32 << 20))
    vmem_limit = min(vmem_limit, int(cap * 0.85))
    vmem_limit = int(max(vmem_limit, footprint))

    traffic = bo_traffic if batch_outer else ws_traffic
    cost = pl.CostEstimate(
        flops=2 * B * D * D + 6 * B * D,
        transcendentals=B * D,
        bytes_accessed=int(traffic + D * itm + B * D * itm),
    )

    kernel = functools.partial(
        _block_kernel, feature_axis=feature_axis, mxu_dtype=mxu_dtype,
        hoist_cast=hoist_cast, approx_gelu=approx_gelu, precision=precision)

    def _run(single_buffer_stationary):
        return pl.pallas_call(
            kernel,
            out_shape=jax.ShapeDtypeStruct((B, D), x.dtype),
            grid_spec=pltpu.PrefetchScalarGridSpec(
                num_scalar_prefetch=0,
                grid=grid,
                in_specs=_build_in_specs(single_buffer_stationary),
                out_specs=out_specs,
                scratch_shapes=scratch_shapes,
            ),
            compiler_params=pltpu.CompilerParams(
                dimension_semantics=dims,
                vmem_limit_bytes=vmem_limit,
            ),
            cost_estimate=cost,
        )(x, w_arr, b2)

    try:
        return _run(True)
    except Exception:
        # Fallback: if this Pallas build rejects single-buffered (Buffered(1))
        # stationary blocks, default double-buffering is still correct.
        return _run(False)


if __name__ == "__main__":
    key = jax.random.PRNGKey(0)
    B, D = 128, 256  # small demo: batch 128, hidden size D (nn.Linear(D, D))
    kx, kw, kb = jax.random.split(key, 3)

    x = jax.random.normal(kx, (B, D), dtype=jnp.float32)

    # Deterministic params, PyTorch-Linear-style uniform(-1/sqrt(D), 1/sqrt(D)).
    bound = 1.0 / math.sqrt(D)
    w_torch = jax.random.uniform(kw, (D, D), minval=-bound, maxval=bound,
                                 dtype=jnp.float32)  # (out, in) like torch
    b_param = jax.random.uniform(kb, (D,), minval=-bound, maxval=bound,
                                 dtype=jnp.float32)
    w = w_torch.T  # (in, out) for x @ W

    # Reference in plain JAX (exact erf GELU).
    h_ref = x @ w + b_param
    gelu_ref = 0.5 * h_ref * (1.0 + lax.erf(h_ref * jnp.float32(_INV_SQRT2)))
    ref = x + gelu_ref

    # 1) Default path: bf16 MXU, roofline-sized (single) batch tile.
    out = jax.block_until_ready(block_forward(x, w, b_param))
    assert jnp.allclose(out, ref, atol=5e-2, rtol=5e-2)

    # 2) f32 MXU path (tight tolerance).
    out2 = jax.block_until_ready(block_forward(x, w, b_param, mxu_bf16=False))
    assert jnp.allclose(out2, ref, atol=1e-5, rtol=1e-5)

    # 3) Forced batch-outer multi-tile grid: exercises the hoisted bf16 x-cast
    #    scratch (pl.when fill at feature step 0) and Buffered(1) on the x block.
    out3 = jax.block_until_ready(
        block_forward(x, w, b_param, tile_b=32, tile_n=128, batch_outer=True))
    assert jnp.allclose(out3, ref, atol=5e-2, rtol=5e-2)

    # 4) Forced weight-stationary order (decode-like small-batch shapes).
    out4 = jax.block_until_ready(
        block_forward(x, w, b_param, tile_b=32, tile_n=128, batch_outer=False))
    assert jnp.allclose(out4, ref, atol=5e-2, rtol=5e-2)

    # 5) tanh-approximate GELU option (EUP path), looser tolerance.
    out5 = jax.block_until_ready(block_forward(x, w, b_param, approx_gelu=True))
    assert jnp.allclose(out5, ref, atol=5e-2, rtol=5e-2)

    print("KERNEL_OK")
</pallas_src>

<mosaic_0001>
module attributes {stable_mosaic.version = 11 : i64} {
  func.func @_block_kernel(%arg0: i32, %arg1: i32, %arg2: memref<128x256xf32, #tpu.memory_space<vmem>>, %arg3: memref<256x256xbf16, #tpu.memory_space<vmem>>, %arg4: memref<1x256xf32, #tpu.memory_space<vmem>>, %arg5: memref<128x256xf32, #tpu.memory_space<vmem>>) attributes {dimension_semantics = [#tpu.dimension_semantics<parallel>, #tpu.dimension_semantics<parallel>], iteration_bounds = array<i64: 1, 1>, scalar_prefetch = 0 : i64, scratch_operands = 0 : i64, tpu.core_type = #tpu.core_type<tc>, window_params = [{pipeline_mode = #tpu.pipeline_mode<synchronous>, transform_indices = @transform_0, window_bounds = array<i64: 128, 256>}, {transform_indices = @transform_1, window_bounds = array<i64: 256, 256>}, {transform_indices = @transform_2, window_bounds = array<i64: 1, 256>}, {transform_indices = @transform_3, window_bounds = array<i64: 128, 256>}]} {
    %c0 = arith.constant 0 : index
    %c0_0 = arith.constant 0 : index
    %0 = vector.load %arg2[%c0, %c0_0] : memref<128x256xf32, #tpu.memory_space<vmem>>, vector<128x256xf32>
    %1 = arith.truncf %0 : vector<128x256xf32> to vector<128x256xbf16>
    %c0_1 = arith.constant 0 : index
    %c0_2 = arith.constant 0 : index
    %2 = vector.load %arg3[%c0_1, %c0_2] : memref<256x256xbf16, #tpu.memory_space<vmem>>, vector<256x256xbf16>
    %cst = arith.constant dense<0.000000e+00> : vector<128x256xf32>
    %3 = tpu.matmul %1, %2, %cst {dimension_numbers = #tpu.dot_dimension_numbers<[1], [0], [0], [1], [0, 0, 1, 1], [], []>} : vector<128x256xbf16>, vector<256x256xbf16>, vector<128x256xf32> -> vector<128x256xf32>
    %c0_3 = arith.constant 0 : index
    %c0_4 = arith.constant 0 : index
    %4 = vector.load %arg4[%c0_3, %c0_4] : memref<1x256xf32, #tpu.memory_space<vmem>>, vector<1x256xf32>
    %5 = vector.broadcast %4 : vector<1x256xf32> to vector<128x256xf32>
    %6 = arith.addf %3, %5 : vector<128x256xf32>
    %cst_5 = arith.constant 5.000000e-01 : f32
    %7 = vector.broadcast %cst_5 : f32 to vector<128x256xf32>
    %8 = arith.mulf %7, %6 : vector<128x256xf32>
    %cst_6 = arith.constant 0.707106769 : f32
    %9 = vector.broadcast %cst_6 : f32 to vector<128x256xf32>
    %10 = arith.mulf %6, %9 : vector<128x256xf32>
    %11 = math.erf %10 : vector<128x256xf32>
    %cst_7 = arith.constant 1.000000e+00 : f32
    %12 = vector.broadcast %cst_7 : f32 to vector<128x256xf32>
    %13 = arith.addf %12, %11 : vector<128x256xf32>
    %14 = arith.mulf %8, %13 : vector<128x256xf32>
    %c256_i32 = arith.constant 256 : i32
    %15 = arith.muli %arg1, %c256_i32 : i32
    %16 = tpu.assume_multiple %15, 256 : i32
    %c0_8 = arith.constant 0 : index
    %17 = arith.index_cast %16 : i32 to index
    %18 = vector.load %arg2[%c0_8, %17] : memref<128x256xf32, #tpu.memory_space<vmem>>, vector<128x256xf32>
    %19 = arith.addf %18, %14 : vector<128x256xf32>
    %c0_9 = arith.constant 0 : index
    %c0_10 = arith.constant 0 : index
    %20 = vector.load %arg5[%c0_9, %c0_10] : memref<128x256xf32, #tpu.memory_space<vmem>>, vector<128x256xf32>
    tpu.vector_store %arg5[%c0_9, %c0_10], %19 {strides = array<i32>} : memref<128x256xf32, #tpu.memory_space<vmem>>, vector<128x256xf32>,
    return
  }
  func.func @transform_0(%arg0: i32, %arg1: i32) -> (i32, i32) {
    %c0_i32 = arith.constant 0 : i32
    %c0_i32_0 = arith.constant 0 : i32
    return %arg0, %c0_i32 : i32, i32
  }
  func.func @transform_1(%arg0: i32, %arg1: i32) -> (i32, i32) {
    %c0_i32 = arith.constant 0 : i32
    %c0_i32_0 = arith.constant 0 : i32
    return %c0_i32, %arg1 : i32, i32
  }
  func.func @transform_2(%arg0: i32, %arg1: i32) -> (i32, i32) {
    %c0_i32 = arith.constant 0 : i32
    %c0_i32_0 = arith.constant 0 : i32
    return %c0_i32, %arg1 : i32, i32
  }
  func.func @transform_3(%arg0: i32, %arg1: i32) -> (i32, i32) {
    %c0_i32 = arith.constant 0 : i32
    return %arg0, %arg1 : i32, i32
  }
}

module attributes {stable_mosaic.version = 11 : i64} {
  func.func @_block_kernel(%arg0: i32, %arg1: i32, %arg2: memref<128x256xf32, #tpu.memory_space<vmem>>, %arg3: memref<256x256xbf16, #tpu.memory_space<vmem>>, %arg4: memref<1x256xf32, #tpu.memory_space<vmem>>, %arg5: memref<128x256xf32, #tpu.memory_space<vmem>>) attributes {dimension_semantics = [#tpu.dimension_semantics<parallel>, #tpu.dimension_semantics<parallel>], iteration_bounds = array<i64: 1, 1>, scalar_prefetch = 0 : i64, scratch_operands = 0 : i64, tpu.core_type = #tpu.core_type<tc>, window_params = [{transform_indices = @transform_0, window_bounds = array<i64: 128, 256>}, {transform_indices = @transform_1, window_bounds = array<i64: 256, 256>}, {transform_indices = @transform_2, window_bounds = array<i64: 1, 256>}, {transform_indices = @transform_3, window_bounds = array<i64: 128, 256>}]} {
    %c0 = arith.constant 0 : index
    %c0_0 = arith.constant 0 : index
    %0 = vector.load %arg2[%c0, %c0_0] : memref<128x256xf32, #tpu.memory_space<vmem>>, vector<128x256xf32>
    %1 = arith.truncf %0 : vector<128x256xf32> to vector<128x256xbf16>
    %c0_1 = arith.constant 0 : index
    %c0_2 = arith.constant 0 : index
    %2 = vector.load %arg3[%c0_1, %c0_2] : memref<256x256xbf16, #tpu.memory_space<vmem>>, vector<256x256xbf16>
    %cst = arith.constant dense<0.000000e+00> : vector<128x256xf32>
    %3 = tpu.matmul %1, %2, %cst {dimension_numbers = #tpu.dot_dimension_numbers<[1], [0], [0], [1], [0, 0, 1, 1], [], []>} : vector<128x256xbf16>, vector<256x256xbf16>, vector<128x256xf32> -> vector<128x256xf32>
    %c0_3 = arith.constant 0 : index
    %c0_4 = arith.constant 0 : index
    %4 = vector.load %arg4[%c0_3, %c0_4] : memref<1x256xf32, #tpu.memory_space<vmem>>, vector<1x256xf32>
    %5 = vector.broadcast %4 : vector<1x256xf32> to vector<128x256xf32>
    %6 = arith.addf %3, %5 : vector<128x256xf32>
    %cst_5 = arith.constant 5.000000e-01 : f32
    %7 = vector.broadcast %cst_5 : f32 to vector<128x256xf32>
    %8 = arith.mulf %7, %6 : vector<128x256xf32>
    %cst_6 = arith.constant 0.707106769 : f32
    %9 = vector.broadcast %cst_6 : f32 to vector<128x256xf32>
    %10 = arith.mulf %6, %9 : vector<128x256xf32>
    %11 = math.erf %10 : vector<128x256xf32>
    %cst_7 = arith.constant 1.000000e+00 : f32
    %12 = vector.broadcast %cst_7 : f32 to vector<128x256xf32>
    %13 = arith.addf %12, %11 : vector<128x256xf32>
    %14 = arith.mulf %8, %13 : vector<128x256xf32>
    %c256_i32 = arith.constant 256 : i32
    %15 = arith.muli %arg1, %c256_i32 : i32
    %16 = tpu.assume_multiple %15, 256 : i32
    %c0_8 = arith.constant 0 : index
    %17 = arith.index_cast %16 : i32 to index
    %18 = vector.load %arg2[%c0_8, %17] : memref<128x256xf32, #tpu.memory_space<vmem>>, vector<128x256xf32>
    %19 = arith.addf %18, %14 : vector<128x256xf32>
    %c0_9 = arith.constant 0 : index
    %c0_10 = arith.constant 0 : index
    %20 = vector.load %arg5[%c0_9, %c0_10] : memref<128x256xf32, #tpu.memory_space<vmem>>, vector<128x256xf32>
    tpu.vector_store %arg5[%c0_9, %c0_10], %19 {strides = array<i32>} : memref<128x256xf32, #tpu.memory_space<vmem>>, vector<128x256xf32>,
    return
  }
  func.func @transform_0(%arg0: i32, %arg1: i32) -> (i32, i32) {
    %c0_i32 = arith.constant 0 : i32
    %c0_i32_0 = arith.constant 0 : i32
    return %arg0, %c0_i32 : i32, i32
  }
  func.func @transform_1(%arg0: i32, %arg1: i32) -> (i32, i32) {
    %c0_i32 = arith.constant 0 : i32
    %c0_i32_0 = arith.constant 0 : i32
    return %c0_i32, %arg1 : i32, i32
  }
  func.func @transform_2(%arg0: i32, %arg1: i32) -> (i32, i32) {
    %c0_i32 = arith.constant 0 : i32
    %c0_i32_0 = arith.constant 0 : i32
    return %c0_i32, %arg1 : i32, i32
  }
  func.func @transform_3(%arg0: i32, %arg1: i32) -> (i32, i32) {
    %c0_i32 = arith.constant 0 : i32
    return %arg0, %arg1 : i32, i32
  }
}

</mosaic_0001>

<llo_original>
// kernel: tpu_custom_call.1
$region0: #{tpu_custom_call.1}
  #allocation0 [shape = 'u32[]', space=smem, size = 0x4, offset = 0x4, fixed_abs, tag = 'smem constant byte address 0x4 - core index']
  #allocation1 [shape = 'u32[72,128]{1,0:T(1,128)}', space=vmem, size = 0x9000, scoped, tag = 'internal scratch']
  %s0 = inlined_call_operand.hbm [shape: f32[128,256], index: 0, kind: input, shape index: {}]
  %s1 = inlined_call_operand.hbm [shape: bf16[256,256], index: 1, kind: input, shape index: {}]
  %s2 = inlined_call_operand.hbm [shape: f32[1,256], index: 2, kind: input, shape index: {}]
  %s3 = inlined_call_operand.hbm [shape: f32[128,256], index: 3, kind: output, shape index: {}]
  %s4 = sld [smem:[#allocation0]]
  $region34: #{tpu_custom_call.1} parent=0
    _
  %s6 = ssub.s32 1, %s4
  %s7 = scalar_select 0, %s6, %s4
  $region1: #{tpu_custom_call.1} parent=0
    #allocation2 [shape = 'u8[131072]{0}', space=vmem, size = 0x20000, scoped, tag = 'input window, operand 0, single buffered']
    #allocation3 [shape = 's32[1]{0}', space=sflag, size = 0x4, scoped, tag = 'scoped memory for tpu_custom_call.1']
    #allocation4 [shape = 's32[1]{0}', space=sflag, size = 0x4, scoped, tag = 'scoped memory for tpu_custom_call.1']
    #allocation5 [shape = 'u8[131072]{0}', space=vmem, size = 0x20000, scoped, tag = 'input window, operand 1, single buffered']
    #allocation6 [shape = 's32[1]{0}', space=sflag, size = 0x4, scoped, tag = 'scoped memory for tpu_custom_call.1']
    #allocation7 [shape = 'u8[1024]{0}', space=vmem, size = 0x400, scoped, tag = 'input window, operand 2, single buffered']
    #allocation8 [shape = 'u8[131072]{0}', space=vmem, size = 0x20000, scoped, tag = 'output window, operand 0, single buffered']
    %8 = vsyncpa [#allocation3], 0
    %9 = vsyncpa [#allocation6], 0
    %10 = vsyncpa [#allocation4], 0
    // Predicated region
    $region2: #{tpu_custom_call.1} parent=1 // pred_check
      _
    $region3: #{tpu_custom_call.1} parent=1 // pred_check_branch
      %12 = sbr.rel (0) target = $region5
    $region4: #{tpu_custom_call.1} parent=1 // pred_region
      %14 = vsyncadd [#allocation3], 0
      %s15 = sshll.u32 %s0, 4
      %s16 = int_to_ptr.hbm [resolvable:$true] %s15
      %s17 = sshll.u32 [#allocation2], 4
      %s18 = int_to_ptr.vmem [resolvable:$true] %s17
      %23 = dma.hbm_to_vmem [thread:$0]  %s16, 4096, %s18, [#allocation3], 256, 256, 16
    $region5: #{tpu_custom_call.1} parent=1 // pred_fallthru
      _
    // Predicated region
    $region6: #{tpu_custom_call.1} parent=1 // pred_check
      _
    $region7: #{tpu_custom_call.1} parent=1 // pred_check_branch
      %25 = sbr.rel (0) target = $region9
    $region8: #{tpu_custom_call.1} parent=1 // pred_region
      %27 = vsyncadd [#allocation6], 0
      %s28 = sshll.u32 %s1, 4
      %s29 = int_to_ptr.hbm [resolvable:$true] %s28
      %s30 = sshll.u32 [#allocation5], 4
      %s31 = int_to_ptr.vmem [resolvable:$true] %s30
      %36 = dma.hbm_to_vmem [thread:$0]  %s29, 4096, %s31, [#allocation6], 128, 128, 8
    $region9: #{tpu_custom_call.1} parent=1 // pred_fallthru
      _
    // Predicated region
    $region10: #{tpu_custom_call.1} parent=1 // pred_check
      _
    $region11: #{tpu_custom_call.1} parent=1 // pred_check_branch
      %38 = sbr.rel (0) target = $region13
    $region12: #{tpu_custom_call.1} parent=1 // pred_region
      %40 = vsyncadd [#allocation6], 0
      %s42 = sshll.u32 %s2, 4
      %s43 = int_to_ptr.hbm [resolvable:$true] %s42
      %s44 = sshll.u32 [#allocation7], 4
      %s45 = int_to_ptr.vmem [resolvable:$true] %s44
      %47 = dma.hbm_to_vmem [thread:$0]  %s43, 32, %s45, [#allocation6]
    $region13: #{tpu_custom_call.1} parent=1 // pred_fallthru
      _
    // Predicated region
    $region14: #{tpu_custom_call.1} parent=1 // pred_check
      _
    $region15: #{tpu_custom_call.1} parent=1 // pred_check_branch
      %49 = sbr.rel (0) target = $region17
    $region16: #{tpu_custom_call.1} parent=1 // pred_region
      %51 = dma.done [#allocation3], 4096
    $region17: #{tpu_custom_call.1} parent=1 // pred_fallthru
      _
    // Predicated region
    $region18: #{tpu_custom_call.1} parent=1 // pred_check
      _
    $region19: #{tpu_custom_call.1} parent=1 // pred_check_branch
      %53 = sbr.rel (0) target = $region21
    $region20: #{tpu_custom_call.1} parent=1 // pred_region
      %55 = dma.done [#allocation6], 4096
    $region21: #{tpu_custom_call.1} parent=1 // pred_fallthru
      _
    // Predicated region
    $region22: #{tpu_custom_call.1} parent=1 // pred_check
      _
    $region23: #{tpu_custom_call.1} parent=1 // pred_check_branch
      %57 = sbr.rel (0) target = $region25
    $region24: #{tpu_custom_call.1} parent=1 // pred_region
      %59 = dma.done [#allocation6], 32
    $region25: #{tpu_custom_call.1} parent=1 // pred_fallthru
      _
    %v60 = vld [vmem:[#allocation2] sm:$0xff]
    %v61 = vld [vmem:[#allocation2 + $0x8] sm:$0xff]
    %v62 = vld [vmem:[#allocation2 + $0x10] sm:$0xff]
    %v63 = vld [vmem:[#allocation2 + $0x18] sm:$0xff]
    %v64 = vld [vmem:[#allocation2 + $0x20] sm:$0xff]
    %v65 = vld [vmem:[#allocation2 + $0x28] sm:$0xff]
    %v66 = vld [vmem:[#allocation2 + $0x30] sm:$0xff]
    %v67 = vld [vmem:[#allocation2 + $0x38] sm:$0xff]
    %v68 = vld [vmem:[#allocation2 + $0x40] sm:$0xff]
    %v69 = vld [vmem:[#allocation2 + $0x48] sm:$0xff]
    %v70 = vld [vmem:[#allocation2 + $0x50] sm:$0xff]
    %v71 = vld [vmem:[#allocation2 + $0x58] sm:$0xff]
    %v72 = vld [vmem:[#allocation2 + $0x60] sm:$0xff]
    %v73 = vld [vmem:[#allocation2 + $0x68] sm:$0xff]
    %v74 = vld [vmem:[#allocation2 + $0x70] sm:$0xff]
    %v75 = vld [vmem:[#allocation2 + $0x78] sm:$0xff]
    %v76 = vld [vmem:[#allocation2 + $0x80] sm:$0xff]
    %v77 = vld [vmem:[#allocation2 + $0x88] sm:$0xff]
    %v78 = vld [vmem:[#allocation2 + $0x90] sm:$0xff]
    %v79 = vld [vmem:[#allocation2 + $0x98] sm:$0xff]
    %v80 = vld [vmem:[#allocation2 + $0xa0] sm:$0xff]
    %v81 = vld [vmem:[#allocation2 + $0xa8] sm:$0xff]
    %v82 = vld [vmem:[#allocation2 + $0xb0] sm:$0xff]
    %v83 = vld [vmem:[#allocation2 + $0xb8] sm:$0xff]
    %v84 = vld [vmem:[#allocation2 + $0xc0] sm:$0xff]
    %v85 = vld [vmem:[#allocation2 + $0xc8] sm:$0xff]
    %v86 = vld [vmem:[#allocation2 + $0xd0] sm:$0xff]
    %v87 = vld [vmem:[#allocation2 + $0xd8] sm:$0xff]
    %v88 = vld [vmem:[#allocation2 + $0xe0] sm:$0xff]
    %v89 = vld [vmem:[#allocation2 + $0xe8] sm:$0xff]
    %v90 = vld [vmem:[#allocation2 + $0xf0] sm:$0xff]
    %v91 = vld [vmem:[#allocation2 + $0xf8] sm:$0xff]
    %v92 = vpack.c.bf16 %v62, %v60
    %v93 = vpack.c.bf16 %v63, %v61
    %v94 = vpack.c.bf16 %v66, %v64
    %v95 = vpack.c.bf16 %v67, %v65
    %v96 = vpack.c.bf16 %v70, %v68
    %v97 = vpack.c.bf16 %v71, %v69
    %v98 = vpack.c.bf16 %v74, %v72
    %v99 = vpack.c.bf16 %v75, %v73
    %v100 = vpack.c.bf16 %v78, %v76
    %v101 = vpack.c.bf16 %v79, %v77
    %v102 = vpack.c.bf16 %v82, %v80
    %v103 = vpack.c.bf16 %v83, %v81
    %v104 = vpack.c.bf16 %v86, %v84
    %v105 = vpack.c.bf16 %v87, %v85
    %v106 = vpack.c.bf16 %v90, %v88
    %v107 = vpack.c.bf16 %v91, %v89
    %v108 = vld [vmem:[#allocation5] sm:$0xff]
    %v109 = vld [vmem:[#allocation5 + $0x8] sm:$0xff]
    %v110 = vld [vmem:[#allocation5 + $0x10] sm:$0xff]
    %v111 = vld [vmem:[#allocation5 + $0x18] sm:$0xff]
    %v112 = vld [vmem:[#allocation5 + $0x20] sm:$0xff]
    %v113 = vld [vmem:[#allocation5 + $0x28] sm:$0xff]
    %v114 = vld [vmem:[#allocation5 + $0x30] sm:$0xff]
    %v115 = vld [vmem:[#allocation5 + $0x38] sm:$0xff]
    %v116 = vld [vmem:[#allocation5 + $0x40] sm:$0xff]
    %v117 = vld [vmem:[#allocation5 + $0x48] sm:$0xff]
    %v118 = vld [vmem:[#allocation5 + $0x50] sm:$0xff]
    %v119 = vld [vmem:[#allocation5 + $0x58] sm:$0xff]
    %v120 = vld [vmem:[#allocation5 + $0x60] sm:$0xff]
    %v121 = vld [vmem:[#allocation5 + $0x68] sm:$0xff]
    %v122 = vld [vmem:[#allocation5 + $0x70] sm:$0xff]
    %v123 = vld [vmem:[#allocation5 + $0x78] sm:$0xff]
    %v124 = vld [vmem:[#allocation5 + $0x80] sm:$0xff]
    %v125 = vld [vmem:[#allocation5 + $0x88] sm:$0xff]
    %v126 = vld [vmem:[#allocation5 + $0x90] sm:$0xff]
    %v127 = vld [vmem:[#allocation5 + $0x98] sm:$0xff]
    %v128 = vld [vmem:[#allocation5 + $0xa0] sm:$0xff]
    %v129 = vld [vmem:[#allocation5 + $0xa8] sm:$0xff]
    %v130 = vld [vmem:[#allocation5 + $0xb0] sm:$0xff]
    %v131 = vld [vmem:[#allocation5 + $0xb8] sm:$0xff]
    %v132 = vld [vmem:[#allocation5 + $0xc0] sm:$0xff]
    %v133 = vld [vmem:[#allocation5 + $0xc8] sm:$0xff]
    %v134 = vld [vmem:[#allocation5 + $0xd0] sm:$0xff]
    %v135 = vld [vmem:[#allocation5 + $0xd8] sm:$0xff]
    %v136 = vld [vmem:[#allocation5 + $0xe0] sm:$0xff]
    %v137 = vld [vmem:[#allocation5 + $0xe8] sm:$0xff]
    %v138 = vld [vmem:[#allocation5 + $0xf0] sm:$0xff]
    %v139 = vld [vmem:[#allocation5 + $0xf8] sm:$0xff]
    %v140 = vld [vmem:[#allocation7] sm:$0x3]
    %v142 = vperm.slane %v140, 0
    %v143 = vperm.slane %v140, 1
    %v178 = vunpack.c.l.b16 %v108
    %v179 = vunpack.c.h.b16 %v108
    %v180 = vunpack.c.l.b16 %v109
    %v181 = vunpack.c.h.b16 %v109
    %v182 = vunpack.c.l.b16 %v110
    %v183 = vunpack.c.h.b16 %v110
    %v184 = vunpack.c.l.b16 %v111
    %v185 = vunpack.c.h.b16 %v111
    %v186 = vunpack.c.l.b16 %v112
    %v187 = vunpack.c.h.b16 %v112
    %v188 = vunpack.c.l.b16 %v113
    %v189 = vunpack.c.h.b16 %v113
    %v190 = vunpack.c.l.b16 %v114
    %v191 = vunpack.c.h.b16 %v114
    %v192 = vunpack.c.l.b16 %v115
    %v193 = vunpack.c.h.b16 %v115
    %v194 = vunpack.c.l.b16 %v116
    %v195 = vunpack.c.h.b16 %v116
    %v196 = vunpack.c.l.b16 %v117
    %v197 = vunpack.c.h.b16 %v117
    %v198 = vunpack.c.l.b16 %v118
    %v199 = vunpack.c.h.b16 %v118
    %v200 = vunpack.c.l.b16 %v119
    %v201 = vunpack.c.h.b16 %v119
    %v202 = vunpack.c.l.b16 %v120
    %v203 = vunpack.c.h.b16 %v120
    %v204 = vunpack.c.l.b16 %v121
    %v205 = vunpack.c.h.b16 %v121
    %v206 = vunpack.c.l.b16 %v122
    %v207 = vunpack.c.h.b16 %v122
    %v208 = vunpack.c.l.b16 %v123
    %v209 = vunpack.c.h.b16 %v123
    %v210 = vunpack.c.l.b16 %v124
    %v211 = vunpack.c.h.b16 %v124
    %v212 = vunpack.c.l.b16 %v125
    %v213 = vunpack.c.h.b16 %v125
    %v214 = vunpack.c.l.b16 %v126
    %v215 = vunpack.c.h.b16 %v126
    %v216 = vunpack.c.l.b16 %v127
    %v217 = vunpack.c.h.b16 %v127
    %v218 = vunpack.c.l.b16 %v128
    %v219 = vunpack.c.h.b16 %v128
    %v220 = vunpack.c.l.b16 %v129
    %v221 = vunpack.c.h.b16 %v129
    %v222 = vunpack.c.l.b16 %v130
    %v223 = vunpack.c.h.b16 %v130
    %v224 = vunpack.c.l.b16 %v131
    %v225 = vunpack.c.h.b16 %v131
    %v226 = vunpack.c.l.b16 %v132
    %v227 = vunpack.c.h.b16 %v132
    %v228 = vunpack.c.l.b16 %v133
    %v229 = vunpack.c.h.b16 %v133
    %v230 = vunpack.c.l.b16 %v134
    %v231 = vunpack.c.h.b16 %v134
    %v232 = vunpack.c.l.b16 %v135
    %v233 = vunpack.c.h.b16 %v135
    %v234 = vunpack.c.l.b16 %v136
    %v235 = vunpack.c.h.b16 %v136
    %v236 = vunpack.c.l.b16 %v137
    %v237 = vunpack.c.h.b16 %v137
    %v238 = vunpack.c.l.b16 %v138
    %v239 = vunpack.c.h.b16 %v138
    %v240 = vunpack.c.l.b16 %v139
    %v241 = vunpack.c.h.b16 %v139
    %v242 = vpack.c.b16 %v180, %v178
    %v243 = vpack.c.b16 %v181, %v179
    %v244 = vpack.c.b16 %v184, %v182
    %v245 = vpack.c.b16 %v185, %v183
    %v246 = vpack.c.b16 %v188, %v186
    %v247 = vpack.c.b16 %v189, %v187
    %v248 = vpack.c.b16 %v192, %v190
    %v249 = vpack.c.b16 %v193, %v191
    %v250 = vpack.c.b16 %v196, %v194
    %v251 = vpack.c.b16 %v197, %v195
    %v252 = vpack.c.b16 %v200, %v198
    %v253 = vpack.c.b16 %v201, %v199
    %v254 = vpack.c.b16 %v204, %v202
    %v255 = vpack.c.b16 %v205, %v203
    %v256 = vpack.c.b16 %v208, %v206
    %v257 = vpack.c.b16 %v209, %v207
    %v258 = vpack.c.b16 %v212, %v210
    %v259 = vpack.c.b16 %v213, %v211
    %v260 = vpack.c.b16 %v216, %v214
    %v261 = vpack.c.b16 %v217, %v215
    %v262 = vpack.c.b16 %v220, %v218
    %v263 = vpack.c.b16 %v221, %v219
    %v264 = vpack.c.b16 %v224, %v222
    %v265 = vpack.c.b16 %v225, %v223
    %v266 = vpack.c.b16 %v228, %v226
    %v267 = vpack.c.b16 %v229, %v227
    %v268 = vpack.c.b16 %v232, %v230
    %v269 = vpack.c.b16 %v233, %v231
    %v270 = vpack.c.b16 %v236, %v234
    %v271 = vpack.c.b16 %v237, %v235
    %v272 = vpack.c.b16 %v240, %v238
    %v273 = vpack.c.b16 %v241, %v239
    %306 = vmatpush.bf16.msra.mxu0 %v256
    %307 = vmatpush.bf16.msra.mxu0 %v254
    %308 = vmatpush.bf16.msra.mxu0 %v252
    %309 = vmatpush.bf16.msra.mxu0 %v250
    %310 = vmatpush.bf16.msra.mxu0 %v248
    %311 = vmatpush.bf16.msra.mxu0 %v246
    %312 = vmatpush.bf16.msra.mxu0 %v244
    %313 = vmatpush.bf16.msra.mxu0 %v242
    %314 = vmatmul.bf16.gmra.mxu0 %v92
    %v315 = vpop.f32.mrf.mxu0
    %v316 = vadd.f32 %v142, %v315
    %v317 = vpop.f32.mrf.mxu0
    %v318 = vadd.f32 %v142, %v317
    %319 = vmatmul.bf16.gmra.mxu0 %v94
    %v320 = vpop.f32.mrf.mxu0
    %v321 = vadd.f32 %v142, %v320
    %v322 = vpop.f32.mrf.mxu0
    %v323 = vadd.f32 %v142, %v322
    %324 = vmatmul.bf16.gmra.mxu0 %v96
    %v325 = vpop.f32.mrf.mxu0
    %v326 = vadd.f32 %v142, %v325
    %v327 = vpop.f32.mrf.mxu0
    %v328 = vadd.f32 %v142, %v327
    %329 = vmatmul.bf16.gmra.mxu0 %v98
    %v330 = vpop.f32.mrf.mxu0
    %v331 = vadd.f32 %v142, %v330
    %v332 = vpop.f32.mrf.mxu0
    %v333 = vadd.f32 %v142, %v332
    %334 = vmatmul.bf16.gmra.mxu0 %v100
    %v335 = vpop.f32.mrf.mxu0
    %v336 = vadd.f32 %v142, %v335
    %v337 = vpop.f32.mrf.mxu0
    %v338 = vadd.f32 %v142, %v337
    %339 = vmatmul.bf16.gmra.mxu0 %v102
    %v340 = vpop.f32.mrf.mxu0
    %v341 = vadd.f32 %v142, %v340
    %v342 = vpop.f32.mrf.mxu0
    %v343 = vadd.f32 %v142, %v342
    %344 = vmatmul.bf16.gmra.mxu0 %v104
    %v345 = vpop.f32.mrf.mxu0
    %v346 = vadd.f32 %v142, %v345
    %v347 = vpop.f32.mrf.mxu0
    %v348 = vadd.f32 %v142, %v347
    %349 = vmatmul.bf16.gmra.mxu0 %v106
    %v350 = vpop.f32.mrf.mxu0
    %v351 = vadd.f32 %v142, %v350
    %v352 = vpop.f32.mrf.mxu0
    %v353 = vadd.f32 %v142, %v352
    %354 = vdwg.mxu0
    %355 = vmatpush.bf16.msra.mxu0 %v272
    %356 = vmatpush.bf16.msra.mxu0 %v270
    %357 = vmatpush.bf16.msra.mxu0 %v268
    %358 = vmatpush.bf16.msra.mxu0 %v266
    %359 = vmatpush.bf16.msra.mxu0 %v264
    %360 = vmatpush.bf16.msra.mxu0 %v262
    %361 = vmatpush.bf16.msra.mxu0 %v260
    %362 = vmatpush.bf16.msra.mxu0 %v258
    %363 = vmatmul.bf16.gmra.mxu0 %v93
    %v364 = vpop.f32.mrf.mxu0
    %v365 = vadd.f32 %v316, %v364
    %v366 = vpop.f32.mrf.mxu0
    %v367 = vadd.f32 %v318, %v366
    %368 = vmatmul.bf16.gmra.mxu0 %v95
    %v369 = vpop.f32.mrf.mxu0
    %v370 = vadd.f32 %v321, %v369
    %v371 = vpop.f32.mrf.mxu0
    %v372 = vadd.f32 %v323, %v371
    %373 = vmatmul.bf16.gmra.mxu0 %v97
    %v374 = vpop.f32.mrf.mxu0
    %v375 = vadd.f32 %v326, %v374
    %v376 = vpop.f32.mrf.mxu0
    %v377 = vadd.f32 %v328, %v376
    %378 = vmatmul.bf16.gmra.mxu0 %v99
    %v379 = vpop.f32.mrf.mxu0
    %v380 = vadd.f32 %v331, %v379
    %v381 = vpop.f32.mrf.mxu0
    %v382 = vadd.f32 %v333, %v381
    %383 = vmatmul.bf16.gmra.mxu0 %v101
    %v384 = vpop.f32.mrf.mxu0
    %v385 = vadd.f32 %v336, %v384
    %v386 = vpop.f32.mrf.mxu0
    %v387 = vadd.f32 %v338, %v386
    %388 = vmatmul.bf16.gmra.mxu0 %v103
    %v389 = vpop.f32.mrf.mxu0
    %v390 = vadd.f32 %v341, %v389
    %v391 = vpop.f32.mrf.mxu0
    %v392 = vadd.f32 %v343, %v391
    %393 = vmatmul.bf16.gmra.mxu0 %v105
    %v394 = vpop.f32.mrf.mxu0
    %v395 = vadd.f32 %v346, %v394
    %v396 = vpop.f32.mrf.mxu0
    %v397 = vadd.f32 %v348, %v396
    %398 = vmatmul.bf16.gmra.mxu0 %v107
    %v399 = vpop.f32.mrf.mxu0
    %v400 = vadd.f32 %v351, %v399
    %v401 = vpop.f32.mrf.mxu0
    %v402 = vadd.f32 %v353, %v401
    %403 = vdwg.mxu0
    %404 = vmatpush.bf16.msra.mxu0 %v257
    %405 = vmatpush.bf16.msra.mxu0 %v255
    %406 = vmatpush.bf16.msra.mxu0 %v253
    %407 = vmatpush.bf16.msra.mxu0 %v251
    %408 = vmatpush.bf16.msra.mxu0 %v249
    %409 = vmatpush.bf16.msra.mxu0 %v247
    %410 = vmatpush.bf16.msra.mxu0 %v245
    %411 = vmatpush.bf16.msra.mxu0 %v243
    %412 = vmatmul.bf16.gmra.mxu0 %v92
    %v413 = vpop.f32.mrf.mxu0
    %v414 = vadd.f32 %v143, %v413
    %v415 = vpop.f32.mrf.mxu0
    %v416 = vadd.f32 %v143, %v415
    %417 = vmatmul.bf16.gmra.mxu0 %v94
    %v418 = vpop.f32.mrf.mxu0
    %v419 = vadd.f32 %v143, %v418
    %v420 = vpop.f32.mrf.mxu0
    %v421 = vadd.f32 %v143, %v420
    %422 = vmatmul.bf16.gmra.mxu0 %v96
    %v423 = vpop.f32.mrf.mxu0
    %v424 = vadd.f32 %v143, %v423
    %v425 = vpop.f32.mrf.mxu0
    %v426 = vadd.f32 %v143, %v425
    %427 = vmatmul.bf16.gmra.mxu0 %v98
    %v428 = vpop.f32.mrf.mxu0
    %v429 = vadd.f32 %v143, %v428
    %v430 = vpop.f32.mrf.mxu0
    %v431 = vadd.f32 %v143, %v430
    %432 = vmatmul.bf16.gmra.mxu0 %v100
    %v433 = vpop.f32.mrf.mxu0
    %v434 = vadd.f32 %v143, %v433
    %v435 = vpop.f32.mrf.mxu0
    %v436 = vadd.f32 %v143, %v435
    %437 = vmatmul.bf16.gmra.mxu0 %v102
    %v438 = vpop.f32.mrf.mxu0
    %v439 = vadd.f32 %v143, %v438
    %v440 = vpop.f32.mrf.mxu0
    %v441 = vadd.f32 %v143, %v440
    %442 = vmatmul.bf16.gmra.mxu0 %v104
    %v443 = vpop.f32.mrf.mxu0
    %v444 = vadd.f32 %v143, %v443
    %v445 = vpop.f32.mrf.mxu0
    %v446 = vadd.f32 %v143, %v445
    %447 = vmatmul.bf16.gmra.mxu0 %v106
    %v448 = vpop.f32.mrf.mxu0
    %v449 = vadd.f32 %v143, %v448
    %v450 = vpop.f32.mrf.mxu0
    %v451 = vadd.f32 %v143, %v450
    %452 = vdwg.mxu0
    %453 = vmatpush.bf16.msra.mxu0 %v273
    %454 = vmatpush.bf16.msra.mxu0 %v271
    %455 = vmatpush.bf16.msra.mxu0 %v269
    %456 = vmatpush.bf16.msra.mxu0 %v267
    %457 = vmatpush.bf16.msra.mxu0 %v265
    %458 = vmatpush.bf16.msra.mxu0 %v263
    %459 = vmatpush.bf16.msra.mxu0 %v261
    %460 = vmatpush.bf16.msra.mxu0 %v259
    %461 = vmatmul.bf16.gmra.mxu0 %v93
    %v462 = vpop.f32.mrf.mxu0
    %v463 = vadd.f32 %v414, %v462
    %v464 = vpop.f32.mrf.mxu0
    %v465 = vadd.f32 %v416, %v464
    %466 = vmatmul.bf16.gmra.mxu0 %v95
    %v467 = vpop.f32.mrf.mxu0
    %v468 = vadd.f32 %v419, %v467
    %v469 = vpop.f32.mrf.mxu0
    %v470 = vadd.f32 %v421, %v469
    %471 = vmatmul.bf16.gmra.mxu0 %v97
    %v472 = vpop.f32.mrf.mxu0
    %v473 = vadd.f32 %v424, %v472
    %v474 = vpop.f32.mrf.mxu0
    %v475 = vadd.f32 %v426, %v474
    %476 = vmatmul.bf16.gmra.mxu0 %v99
    %v477 = vpop.f32.mrf.mxu0
    %v478 = vadd.f32 %v429, %v477
    %v479 = vpop.f32.mrf.mxu0
    %v480 = vadd.f32 %v431, %v479
    %481 = vmatmul.bf16.gmra.mxu0 %v101
    %v482 = vpop.f32.mrf.mxu0
    %v483 = vadd.f32 %v434, %v482
    %v484 = vpop.f32.mrf.mxu0
    %v485 = vadd.f32 %v436, %v484
    %486 = vmatmul.bf16.gmra.mxu0 %v103
    %v487 = vpop.f32.mrf.mxu0
    %v488 = vadd.f32 %v439, %v487
    %v489 = vpop.f32.mrf.mxu0
    %v490 = vadd.f32 %v441, %v489
    %491 = vmatmul.bf16.gmra.mxu0 %v105
    %v492 = vpop.f32.mrf.mxu0
    %v493 = vadd.f32 %v444, %v492
    %v494 = vpop.f32.mrf.mxu0
    %v495 = vadd.f32 %v446, %v494
    %496 = vmatmul.bf16.gmra.mxu0 %v107
    %v497 = vpop.f32.mrf.mxu0
    %v498 = vadd.f32 %v449, %v497
    %v499 = vpop.f32.mrf.mxu0
    %v500 = vadd.f32 %v451, %v499
    %501 = vdwg.mxu0
    %v502 = vmul.f32 %v365, 0.5
    %v503 = vmul.f32 %v463, 0.5
    %v504 = vmul.f32 %v367, 0.5
    %v505 = vmul.f32 %v465, 0.5
    %v506 = vmul.f32 %v370, 0.5
    %v507 = vmul.f32 %v468, 0.5
    %v508 = vmul.f32 %v372, 0.5
    %v509 = vmul.f32 %v470, 0.5
    %v510 = vmul.f32 %v375, 0.5
    %v511 = vmul.f32 %v473, 0.5
    %v512 = vmul.f32 %v377, 0.5
    %v513 = vmul.f32 %v475, 0.5
    %v514 = vmul.f32 %v380, 0.5
    %v515 = vmul.f32 %v478, 0.5
    %v516 = vmul.f32 %v382, 0.5
    %v517 = vmul.f32 %v480, 0.5
    %v518 = vmul.f32 %v385, 0.5
    %v519 = vmul.f32 %v483, 0.5
    %v520 = vmul.f32 %v387, 0.5
    %v521 = vmul.f32 %v485, 0.5
    %v522 = vmul.f32 %v390, 0.5
    %v523 = vmul.f32 %v488, 0.5
    %v524 = vmul.f32 %v392, 0.5
    %v525 = vmul.f32 %v490, 0.5
    %v526 = vmul.f32 %v395, 0.5
    %v527 = vmul.f32 %v493, 0.5
    %v528 = vmul.f32 %v397, 0.5
    %v529 = vmul.f32 %v495, 0.5
    %v530 = vmul.f32 %v400, 0.5
    %v531 = vmul.f32 %v498, 0.5
    %v532 = vmul.f32 %v402, 0.5
    %v533 = vmul.f32 %v500, 0.5
    %v534 = vmul.f32 %v365, 0.70710677
    %v535 = vmul.f32 %v463, 0.70710677
    %v536 = vmul.f32 %v367, 0.70710677
    %v537 = vmul.f32 %v465, 0.70710677
    %v538 = vmul.f32 %v370, 0.70710677
    %v539 = vmul.f32 %v468, 0.70710677
    %v540 = vmul.f32 %v372, 0.70710677
    %v541 = vmul.f32 %v470, 0.70710677
    %v542 = vmul.f32 %v375, 0.70710677
    %v543 = vmul.f32 %v473, 0.70710677
    %v544 = vmul.f32 %v377, 0.70710677
    %v545 = vmul.f32 %v475, 0.70710677
    %v546 = vmul.f32 %v380, 0.70710677
    %v547 = vmul.f32 %v478, 0.70710677
    %v548 = vmul.f32 %v382, 0.70710677
    %v549 = vmul.f32 %v480, 0.70710677
    %v550 = vmul.f32 %v385, 0.70710677
    %v551 = vmul.f32 %v483, 0.70710677
    %v552 = vmul.f32 %v387, 0.70710677
    %v553 = vmul.f32 %v485, 0.70710677
    %v554 = vmul.f32 %v390, 0.70710677
    %v555 = vmul.f32 %v488, 0.70710677
    %v556 = vmul.f32 %v392, 0.70710677
    %v557 = vmul.f32 %v490, 0.70710677
    %v558 = vmul.f32 %v395, 0.70710677
    %v559 = vmul.f32 %v493, 0.70710677
    %v560 = vmul.f32 %v397, 0.70710677
    %v561 = vmul.f32 %v495, 0.70710677
    %v562 = vmul.f32 %v400, 0.70710677
    %v563 = vmul.f32 %v498, 0.70710677
    %v564 = vmul.f32 %v402, 0.70710677
    %v565 = vmul.f32 %v500, 0.70710677
    %v566 = vmul.f32 %v534, %v534
    %v567 = vmin.f32 16.0, %v566
    %v568 = vmul.f32 %v567, 2.1237322e-06
    %v569 = vadd.f32 %v568, 0.00028619796
    %v570 = vmul.f32 %v567, %v569
    %v571 = vadd.f32 %v570, 0.0036580483
    %v572 = vmul.f32 %v567, %v571
    %v573 = vadd.f32 %v572, 0.05243302
    %v574 = vmul.f32 %v567, %v573
    %v575 = vadd.f32 %v574, 0.18741608
    %v576 = vmul.f32 %v567, %v575
    %v577 = vadd.f32 %v576, 1.1283791
    %v578 = vmul.f32 %v534, %v577
    %v579 = vmul.f32 %v567, 3.8918573e-05
    %v580 = vadd.f32 %v579, 0.001143296
    %v581 = vmul.f32 %v567, %v580
    %v582 = vadd.f32 %v581, 0.014752088
    %v583 = vmul.f32 %v567, %v582
    %v584 = vadd.f32 %v583, 0.112945676
    %v585 = vmul.f32 %v567, %v584
    %v586 = vadd.f32 %v585, 0.4994258
    %v587 = vmul.f32 %v567, %v586
    %v588 = vadd.f32 %v587, 1.0
    %v589 = vrcp.pop %v588
    %v590 = vmul.f32 %v588, %v589
    %v591 = vsub.f32 1.0, %v590
    %v592 = vmul.f32 %v589, %v591
    %v593 = vadd.f32 %v589, %v592
    %vm594 = vweird.f32 %v588
    %vm595 = vweird.f32 %v589
    %vm596 = vmor %vm594, %vm595
    %v597 = vsel %vm596, %v589, %v593
    %v598 = vand.u32 2147483647, %v588
    %vm599 = vcmp.eq.f32.partialorder %v598, 8.507059e+37
    %v600 = vand.u32 %v588, 2147483648
    %v601 = vor.u32 1.1754944e-38, %v600
    %v602 = vsel %vm599, %v601, %v597
    %v603 = vmul.f32 %v578, %v602
    %v604 = vmin.f32 %v603, 1.0
    %v605 = vmax.f32 %v604, -1.0
    %v606 = vmul.f32 %v535, %v535
    %v607 = vmin.f32 16.0, %v606
    %v608 = vmul.f32 %v607, 2.1237322e-06
    %v609 = vadd.f32 %v608, 0.00028619796
    %v610 = vmul.f32 %v607, %v609
    %v611 = vadd.f32 %v610, 0.0036580483
    %v612 = vmul.f32 %v607, %v611
    %v613 = vadd.f32 %v612, 0.05243302
    %v614 = vmul.f32 %v607, %v613
    %v615 = vadd.f32 %v614, 0.18741608
    %v616 = vmul.f32 %v607, %v615
    %v617 = vadd.f32 %v616, 1.1283791
    %v618 = vmul.f32 %v535, %v617
    %v619 = vmul.f32 %v607, 3.8918573e-05
    %v620 = vadd.f32 %v619, 0.001143296
    %v621 = vmul.f32 %v607, %v620
    %v622 = vadd.f32 %v621, 0.014752088
    %v623 = vmul.f32 %v607, %v622
    %v624 = vadd.f32 %v623, 0.112945676
    %v625 = vmul.f32 %v607, %v624
    %v626 = vadd.f32 %v625, 0.4994258
    %v627 = vmul.f32 %v607, %v626
    %v628 = vadd.f32 %v627, 1.0
    %v629 = vrcp.pop %v628
    %v630 = vmul.f32 %v628, %v629
    %v631 = vsub.f32 1.0, %v630
    %v632 = vmul.f32 %v629, %v631
    %v633 = vadd.f32 %v629, %v632
    %vm634 = vweird.f32 %v628
    %vm635 = vweird.f32 %v629
    %vm636 = vmor %vm634, %vm635
    %v637 = vsel %vm636, %v629, %v633
    %v638 = vand.u32 2147483647, %v628
    %vm639 = vcmp.eq.f32.partialorder %v638, 8.507059e+37
    %v640 = vand.u32 %v628, 2147483648
    %v641 = vor.u32 1.1754944e-38, %v640
    %v642 = vsel %vm639, %v641, %v637
    %v643 = vmul.f32 %v618, %v642
    %v644 = vmin.f32 %v643, 1.0
    %v645 = vmax.f32 %v644, -1.0
    %v646 = vmul.f32 %v536, %v536
    %v647 = vmin.f32 16.0, %v646
    %v648 = vmul.f32 %v647, 2.1237322e-06
    %v649 = vadd.f32 %v648, 0.00028619796
    %v650 = vmul.f32 %v647, %v649
    %v651 = vadd.f32 %v650, 0.0036580483
    %v652 = vmul.f32 %v647, %v651
    %v653 = vadd.f32 %v652, 0.05243302
    %v654 = vmul.f32 %v647, %v653
    %v655 = vadd.f32 %v654, 0.18741608
    %v656 = vmul.f32 %v647, %v655
    %v657 = vadd.f32 %v656, 1.1283791
    %v658 = vmul.f32 %v536, %v657
    %v659 = vmul.f32 %v647, 3.8918573e-05
    %v660 = vadd.f32 %v659, 0.001143296
    %v661 = vmul.f32 %v647, %v660
    %v662 = vadd.f32 %v661, 0.014752088
    %v663 = vmul.f32 %v647, %v662
    %v664 = vadd.f32 %v663, 0.112945676
    %v665 = vmul.f32 %v647, %v664
    %v666 = vadd.f32 %v665, 0.4994258
    %v667 = vmul.f32 %v647, %v666
    %v668 = vadd.f32 %v667, 1.0
    %v669 = vrcp.pop %v668
    %v670 = vmul.f32 %v668, %v669
    %v671 = vsub.f32 1.0, %v670
    %v672 = vmul.f32 %v669, %v671
    %v673 = vadd.f32 %v669, %v672
    %vm674 = vweird.f32 %v668
    %vm675 = vweird.f32 %v669
    %vm676 = vmor %vm674, %vm675
    %v677 = vsel %vm676, %v669, %v673
    %v678 = vand.u32 2147483647, %v668
    %vm679 = vcmp.eq.f32.partialorder %v678, 8.507059e+37
    %v680 = vand.u32 %v668, 2147483648
    %v681 = vor.u32 1.1754944e-38, %v680
    %v682 = vsel %vm679, %v681, %v677
    %v683 = vmul.f32 %v658, %v682
    %v684 = vmin.f32 %v683, 1.0
    %v685 = vmax.f32 %v684, -1.0
    %v686 = vmul.f32 %v537, %v537
    %v687 = vmin.f32 16.0, %v686
    %v688 = vmul.f32 %v687, 2.1237322e-06
    %v689 = vadd.f32 %v688, 0.00028619796
    %v690 = vmul.f32 %v687, %v689
    %v691 = vadd.f32 %v690, 0.0036580483
    %v692 = vmul.f32 %v687, %v691
    %v693 = vadd.f32 %v692, 0.05243302
    %v694 = vmul.f32 %v687, %v693
    %v695 = vadd.f32 %v694, 0.18741608
    %v696 = vmul.f32 %v687, %v695
    %v697 = vadd.f32 %v696, 1.1283791
    %v698 = vmul.f32 %v537, %v697
    %v699 = vmul.f32 %v687, 3.8918573e-05
    %v700 = vadd.f32 %v699, 0.001143296
    %v701 = vmul.f32 %v687, %v700
    %v702 = vadd.f32 %v701, 0.014752088
    %v703 = vmul.f32 %v687, %v702
    %v704 = vadd.f32 %v703, 0.112945676
    %v705 = vmul.f32 %v687, %v704
    %v706 = vadd.f32 %v705, 0.4994258
    %v707 = vmul.f32 %v687, %v706
    %v708 = vadd.f32 %v707, 1.0
    %v709 = vrcp.pop %v708
    %v710 = vmul.f32 %v708, %v709
    %v711 = vsub.f32 1.0, %v710
    %v712 = vmul.f32 %v709, %v711
    %v713 = vadd.f32 %v709, %v712
    %vm714 = vweird.f32 %v708
    %vm715 = vweird.f32 %v709
    %vm716 = vmor %vm714, %vm715
    %v717 = vsel %vm716, %v709, %v713
    %v718 = vand.u32 2147483647, %v708
    %vm719 = vcmp.eq.f32.partialorder %v718, 8.507059e+37
    %v720 = vand.u32 %v708, 2147483648
    %v721 = vor.u32 1.1754944e-38, %v720
    %v722 = vsel %vm719, %v721, %v717
    %v723 = vmul.f32 %v698, %v722
    %v724 = vmin.f32 %v723, 1.0
    %v725 = vmax.f32 %v724, -1.0
    %v726 = vmul.f32 %v538, %v538
    %v727 = vmin.f32 16.0, %v726
    %v728 = vmul.f32 %v727, 2.1237322e-06
    %v729 = vadd.f32 %v728, 0.00028619796
    %v730 = vmul.f32 %v727, %v729
    %v731 = vadd.f32 %v730, 0.0036580483
    %v732 = vmul.f32 %v727, %v731
    %v733 = vadd.f32 %v732, 0.05243302
    %v734 = vmul.f32 %v727, %v733
    %v735 = vadd.f32 %v734, 0.18741608
    %v736 = vmul.f32 %v727, %v735
    %v737 = vadd.f32 %v736, 1.1283791
    %v738 = vmul.f32 %v538, %v737
    %v739 = vmul.f32 %v727, 3.8918573e-05
    %v740 = vadd.f32 %v739, 0.001143296
    %v741 = vmul.f32 %v727, %v740
    %v742 = vadd.f32 %v741, 0.014752088
    %v743 = vmul.f32 %v727, %v742
    %v744 = vadd.f32 %v743, 0.112945676
    %v745 = vmul.f32 %v727, %v744
    %v746 = vadd.f32 %v745, 0.4994258
    %v747 = vmul.f32 %v727, %v746
    %v748 = vadd.f32 %v747, 1.0
    %v749 = vrcp.pop %v748
    %v750 = vmul.f32 %v748, %v749
    %v751 = vsub.f32 1.0, %v750
    %v752 = vmul.f32 %v749, %v751
    %v753 = vadd.f32 %v749, %v752
    %vm754 = vweird.f32 %v748
    %vm755 = vweird.f32 %v749
    %vm756 = vmor %vm754, %vm755
    %v757 = vsel %vm756, %v749, %v753
    %v758 = vand.u32 2147483647, %v748
    %vm759 = vcmp.eq.f32.partialorder %v758, 8.507059e+37
    %v760 = vand.u32 %v748, 2147483648
    %v761 = vor.u32 1.1754944e-38, %v760
    %v762 = vsel %vm759, %v761, %v757
    %v763 = vmul.f32 %v738, %v762
    %v764 = vmin.f32 %v763, 1.0
    %v765 = vmax.f32 %v764, -1.0
    %v766 = vmul.f32 %v539, %v539
    %v767 = vmin.f32 16.0, %v766
    %v768 = vmul.f32 %v767, 2.1237322e-06
    %v769 = vadd.f32 %v768, 0.00028619796
    %v770 = vmul.f32 %v767, %v769
    %v771 = vadd.f32 %v770, 0.0036580483
    %v772 = vmul.f32 %v767, %v771
    %v773 = vadd.f32 %v772, 0.05243302
    %v774 = vmul.f32 %v767, %v773
    %v775 = vadd.f32 %v774, 0.18741608
    %v776 = vmul.f32 %v767, %v775
    %v777 = vadd.f32 %v776, 1.1283791
    %v778 = vmul.f32 %v539, %v777
    %v779 = vmul.f32 %v767, 3.8918573e-05
    %v780 = vadd.f32 %v779, 0.001143296
    %v781 = vmul.f32 %v767, %v780
    %v782 = vadd.f32 %v781, 0.014752088
    %v783 = vmul.f32 %v767, %v782
    %v784 = vadd.f32 %v783, 0.112945676
    %v785 = vmul.f32 %v767, %v784
    %v786 = vadd.f32 %v785, 0.4994258
    %v787 = vmul.f32 %v767, %v786
    %v788 = vadd.f32 %v787, 1.0
    %v789 = vrcp.pop %v788
    %v790 = vmul.f32 %v788, %v789
    %v791 = vsub.f32 1.0, %v790
    %v792 = vmul.f32 %v789, %v791
    %v793 = vadd.f32 %v789, %v792
    %vm794 = vweird.f32 %v788
    %vm795 = vweird.f32 %v789
    %vm796 = vmor %vm794, %vm795
    %v797 = vsel %vm796, %v789, %v793
    %v798 = vand.u32 2147483647, %v788
    %vm799 = vcmp.eq.f32.partialorder %v798, 8.507059e+37
    %v800 = vand.u32 %v788, 2147483648
    %v801 = vor.u32 1.1754944e-38, %v800
    %v802 = vsel %vm799, %v801, %v797
    %v803 = vmul.f32 %v778, %v802
    %v804 = vmin.f32 %v803, 1.0
    %v805 = vmax.f32 %v804, -1.0
    %v806 = vmul.f32 %v540, %v540
    %v807 = vmin.f32 16.0, %v806
    %v808 = vmul.f32 %v807, 2.1237322e-06
    %v809 = vadd.f32 %v808, 0.00028619796
    %v810 = vmul.f32 %v807, %v809
    %v811 = vadd.f32 %v810, 0.0036580483
    %v812 = vmul.f32 %v807, %v811
    %v813 = vadd.f32 %v812, 0.05243302
    %v814 = vmul.f32 %v807, %v813
    %v815 = vadd.f32 %v814, 0.18741608
    %v816 = vmul.f32 %v807, %v815
    %v817 = vadd.f32 %v816, 1.1283791
    %v818 = vmul.f32 %v540, %v817
    %v819 = vmul.f32 %v807, 3.8918573e-05
    %v820 = vadd.f32 %v819, 0.001143296
    %v821 = vmul.f32 %v807, %v820
    %v822 = vadd.f32 %v821, 0.014752088
    %v823 = vmul.f32 %v807, %v822
    %v824 = vadd.f32 %v823, 0.112945676
    %v825 = vmul.f32 %v807, %v824
    %v826 = vadd.f32 %v825, 0.4994258
    %v827 = vmul.f32 %v807, %v826
    %v828 = vadd.f32 %v827, 1.0
    %v829 = vrcp.pop %v828
    %v830 = vmul.f32 %v828, %v829
    %v831 = vsub.f32 1.0, %v830
    %v832 = vmul.f32 %v829, %v831
    %v833 = vadd.f32 %v829, %v832
    %vm834 = vweird.f32 %v828
    %vm835 = vweird.f32 %v829
    %vm836 = vmor %vm834, %vm835
    %v837 = vsel %vm836, %v829, %v833
    %v838 = vand.u32 2147483647, %v828
    %vm839 = vcmp.eq.f32.partialorder %v838, 8.507059e+37
    %v840 = vand.u32 %v828, 2147483648
    %v841 = vor.u32 1.1754944e-38, %v840
    %v842 = vsel %vm839, %v841, %v837
    %v843 = vmul.f32 %v818, %v842
    %v844 = vmin.f32 %v843, 1.0
    %v845 = vmax.f32 %v844, -1.0
    %v846 = vmul.f32 %v541, %v541
    %v847 = vmin.f32 16.0, %v846
    %v848 = vmul.f32 %v847, 2.1237322e-06
    %v849 = vadd.f32 %v848, 0.00028619796
    %v850 = vmul.f32 %v847, %v849
    %v851 = vadd.f32 %v850, 0.0036580483
    %v852 = vmul.f32 %v847, %v851
    %v853 = vadd.f32 %v852, 0.05243302
    %v854 = vmul.f32 %v847, %v853
    %v855 = vadd.f32 %v854, 0.18741608
    %v856 = vmul.f32 %v847, %v855
    %v857 = vadd.f32 %v856, 1.1283791
    %v858 = vmul.f32 %v541, %v857
    %v859 = vmul.f32 %v847, 3.8918573e-05
    %v860 = vadd.f32 %v859, 0.001143296
    %v861 = vmul.f32 %v847, %v860
    %v862 = vadd.f32 %v861, 0.014752088
    %v863 = vmul.f32 %v847, %v862
    %v864 = vadd.f32 %v863, 0.112945676
    %v865 = vmul.f32 %v847, %v864
    %v866 = vadd.f32 %v865, 0.4994258
    %v867 = vmul.f32 %v847, %v866
    %v868 = vadd.f32 %v867, 1.0
    %v869 = vrcp.pop %v868
    %v870 = vmul.f32 %v868, %v869
    %v871 = vsub.f32 1.0, %v870
    %v872 = vmul.f32 %v869, %v871
    %v873 = vadd.f32 %v869, %v872
    %vm874 = vweird.f32 %v868
    %vm875 = vweird.f32 %v869
    %vm876 = vmor %vm874, %vm875
    %v877 = vsel %vm876, %v869, %v873
    %v878 = vand.u32 2147483647, %v868
    %vm879 = vcmp.eq.f32.partialorder %v878, 8.507059e+37
    %v880 = vand.u32 %v868, 2147483648
    %v881 = vor.u32 1.1754944e-38, %v880
    %v882 = vsel %vm879, %v881, %v877
    %v883 = vmul.f32 %v858, %v882
    %v884 = vmin.f32 %v883, 1.0
    %v885 = vmax.f32 %v884, -1.0
    %v886 = vmul.f32 %v542, %v542
    %v887 = vmin.f32 16.0, %v886
    %v888 = vmul.f32 %v887, 2.1237322e-06
    %v889 = vadd.f32 %v888, 0.00028619796
    %v890 = vmul.f32 %v887, %v889
    %v891 = vadd.f32 %v890, 0.0036580483
    %v892 = vmul.f32 %v887, %v891
    %v893 = vadd.f32 %v892, 0.05243302
    %v894 = vmul.f32 %v887, %v893
    %v895 = vadd.f32 %v894, 0.18741608
    %v896 = vmul.f32 %v887, %v895
    %v897 = vadd.f32 %v896, 1.1283791
    %v898 = vmul.f32 %v542, %v897
    %v899 = vmul.f32 %v887, 3.8918573e-05
    %v900 = vadd.f32 %v899, 0.001143296
    %v901 = vmul.f32 %v887, %v900
    %v902 = vadd.f32 %v901, 0.014752088
    %v903 = vmul.f32 %v887, %v902
    %v904 = vadd.f32 %v903, 0.112945676
    %v905 = vmul.f32 %v887, %v904
    %v906 = vadd.f32 %v905, 0.4994258
    %v907 = vmul.f32 %v887, %v906
    %v908 = vadd.f32 %v907, 1.0
    %v909 = vrcp.pop %v908
    %v910 = vmul.f32 %v908, %v909
    %v911 = vsub.f32 1.0, %v910
    %v912 = vmul.f32 %v909, %v911
    %v913 = vadd.f32 %v909, %v912
    %vm914 = vweird.f32 %v908
    %vm915 = vweird.f32 %v909
    %vm916 = vmor %vm914, %vm915
    %v917 = vsel %vm916, %v909, %v913
    %v918 = vand.u32 2147483647, %v908
    %vm919 = vcmp.eq.f32.partialorder %v918, 8.507059e+37
    %v920 = vand.u32 %v908, 2147483648
    %v921 = vor.u32 1.1754944e-38, %v920
    %v922 = vsel %vm919, %v921, %v917
    %v923 = vmul.f32 %v898, %v922
    %v924 = vmin.f32 %v923, 1.0
    %v925 = vmax.f32 %v924, -1.0
    %v926 = vmul.f32 %v543, %v543
    %v927 = vmin.f32 16.0, %v926
    %v928 = vmul.f32 %v927, 2.1237322e-06
    %v929 = vadd.f32 %v928, 0.00028619796
    %v930 = vmul.f32 %v927, %v929
    %v931 = vadd.f32 %v930, 0.0036580483
    %v932 = vmul.f32 %v927, %v931
    %v933 = vadd.f32 %v932, 0.05243302
    %v934 = vmul.f32 %v927, %v933
    %v935 = vadd.f32 %v934, 0.18741608
    %v936 = vmul.f32 %v927, %v935
    %v937 = vadd.f32 %v936, 1.1283791
    %v938 = vmul.f32 %v543, %v937
    %v939 = vmul.f32 %v927, 3.8918573e-05
    %v940 = vadd.f32 %v939, 0.001143296
    %v941 = vmul.f32 %v927, %v940
    %v942 = vadd.f32 %v941, 0.014752088
    %v943 = vmul.f32 %v927, %v942
    %v944 = vadd.f32 %v943, 0.112945676
    %v945 = vmul.f32 %v927, %v944
    %v946 = vadd.f32 %v945, 0.4994258
    %v947 = vmul.f32 %v927, %v946
    %v948 = vadd.f32 %v947, 1.0
    %v949 = vrcp.pop %v948
    %v950 = vmul.f32 %v948, %v949
    %v951 = vsub.f32 1.0, %v950
    %v952 = vmul.f32 %v949, %v951
    %v953 = vadd.f32 %v949, %v952
    %vm954 = vweird.f32 %v948
    %vm955 = vweird.f32 %v949
    %vm956 = vmor %vm954, %vm955
    %v957 = vsel %vm956, %v949, %v953
    %v958 = vand.u32 2147483647, %v948
    %vm959 = vcmp.eq.f32.partialorder %v958, 8.507059e+37
    %v960 = vand.u32 %v948, 2147483648
    %v961 = vor.u32 1.1754944e-38, %v960
    %v962 = vsel %vm959, %v961, %v957
    %v963 = vmul.f32 %v938, %v962
    %v964 = vmin.f32 %v963, 1.0
    %v965 = vmax.f32 %v964, -1.0
    %v966 = vmul.f32 %v544, %v544
    %v967 = vmin.f32 16.0, %v966
    %v968 = vmul.f32 %v967, 2.1237322e-06
    %v969 = vadd.f32 %v968, 0.00028619796
    %v970 = vmul.f32 %v967, %v969
    %v971 = vadd.f32 %v970, 0.0036580483
    %v972 = vmul.f32 %v967, %v971
    %v973 = vadd.f32 %v972, 0.05243302
    %v974 = vmul.f32 %v967, %v973
    %v975 = vadd.f32 %v974, 0.18741608
    %v976 = vmul.f32 %v967, %v975
    %v977 = vadd.f32 %v976, 1.1283791
    %v978 = vmul.f32 %v544, %v977
    %v979 = vmul.f32 %v967, 3.8918573e-05
    %v980 = vadd.f32 %v979, 0.001143296
    %v981 = vmul.f32 %v967, %v980
    %v982 = vadd.f32 %v981, 0.014752088
    %v983 = vmul.f32 %v967, %v982
    %v984 = vadd.f32 %v983, 0.112945676
    %v985 = vmul.f32 %v967, %v984
    %v986 = vadd.f32 %v985, 0.4994258
    %v987 = vmul.f32 %v967, %v986
    %v988 = vadd.f32 %v987, 1.0
    %v989 = vrcp.pop %v988
    %v990 = vmul.f32 %v988, %v989
    %v991 = vsub.f32 1.0, %v990
    %v992 = vmul.f32 %v989, %v991
    %v993 = vadd.f32 %v989, %v992
    %vm994 = vweird.f32 %v988
    %vm995 = vweird.f32 %v989
    %vm996 = vmor %vm994, %vm995
    %v997 = vsel %vm996, %v989, %v993
    %v998 = vand.u32 2147483647, %v988
    %vm999 = vcmp.eq.f32.partialorder %v998, 8.507059e+37
    %v1000 = vand.u32 %v988, 2147483648
    %v1001 = vor.u32 1.1754944e-38, %v1000
    %v1002 = vsel %vm999, %v1001, %v997
    %v1003 = vmul.f32 %v978, %v1002
    %v1004 = vmin.f32 %v1003, 1.0
    %v1005 = vmax.f32 %v1004, -1.0
    %v1006 = vmul.f32 %v545, %v545
    %v1007 = vmin.f32 16.0, %v1006
    %v1008 = vmul.f32 %v1007, 2.1237322e-06
    %v1009 = vadd.f32 %v1008, 0.00028619796
    %v1010 = vmul.f32 %v1007, %v1009
    %v1011 = vadd.f32 %v1010, 0.0036580483
    %v1012 = vmul.f32 %v1007, %v1011
    %v1013 = vadd.f32 %v1012, 0.05243302
    %v1014 = vmul.f32 %v1007, %v1013
    %v1015 = vadd.f32 %v1014, 0.18741608
    %v1016 = vmul.f32 %v1007, %v1015
    %v1017 = vadd.f32 %v1016, 1.1283791
    %v1018 = vmul.f32 %v545, %v1017
    %v1019 = vmul.f32 %v1007, 3.8918573e-05
    %v1020 = vadd.f32 %v1019, 0.001143296
    %v1021 = vmul.f32 %v1007, %v1020
    %v1022 = vadd.f32 %v1021, 0.014752088
    %v1023 = vmul.f32 %v1007, %v1022
    %v1024 = vadd.f32 %v1023, 0.112945676
    %v1025 = vmul.f32 %v1007, %v1024
    %v1026 = vadd.f32 %v1025, 0.4994258
    %v1027 = vmul.f32 %v1007, %v1026
    %v1028 = vadd.f32 %v1027, 1.0
    %v1029 = vrcp.pop %v1028
    %v1030 = vmul.f32 %v1028, %v1029
    %v1031 = vsub.f32 1.0, %v1030
    %v1032 = vmul.f32 %v1029, %v1031
    %v1033 = vadd.f32 %v1029, %v1032
    %vm1034 = vweird.f32 %v1028
    %vm1035 = vweird.f32 %v1029
    %vm1036 = vmor %vm1034, %vm1035
    %v1037 = vsel %vm1036, %v1029, %v1033
    %v1038 = vand.u32 2147483647, %v1028
    %vm1039 = vcmp.eq.f32.partialorder %v1038, 8.507059e+37
    %v1040 = vand.u32 %v1028, 2147483648
    %v1041 = vor.u32 1.1754944e-38, %v1040
    %v1042 = vsel %vm1039, %v1041, %v1037
    %v1043 = vmul.f32 %v1018, %v1042
    %v1044 = vmin.f32 %v1043, 1.0
    %v1045 = vmax.f32 %v1044, -1.0
    %v1046 = vmul.f32 %v546, %v546
    %v1047 = vmin.f32 16.0, %v1046
    %v1048 = vmul.f32 %v1047, 2.1237322e-06
    %v1049 = vadd.f32 %v1048, 0.00028619796
    %v1050 = vmul.f32 %v1047, %v1049
    %v1051 = vadd.f32 %v1050, 0.0036580483
    %v1052 = vmul.f32 %v1047, %v1051
    %v1053 = vadd.f32 %v1052, 0.05243302
    %v1054 = vmul.f32 %v1047, %v1053
    %v1055 = vadd.f32 %v1054, 0.18741608
    %v1056 = vmul.f32 %v1047, %v1055
    %v1057 = vadd.f32 %v1056, 1.1283791
    %v1058 = vmul.f32 %v546, %v1057
    %v1059 = vmul.f32 %v1047, 3.8918573e-05
    %v1060 = vadd.f32 %v1059, 0.001143296
    %v1061 = vmul.f32 %v1047, %v1060
    %v1062 = vadd.f32 %v1061, 0.014752088
    %v1063 = vmul.f32 %v1047, %v1062
    %v1064 = vadd.f32 %v1063, 0.112945676
    %v1065 = vmul.f32 %v1047, %v1064
    %v1066 = vadd.f32 %v1065, 0.4994258
    %v1067 = vmul.f32 %v1047, %v1066
    %v1068 = vadd.f32 %v1067, 1.0
    %v1069 = vrcp.pop %v1068
    %v1070 = vmul.f32 %v1068, %v1069
    %v1071 = vsub.f32 1.0, %v1070
    %v1072 = vmul.f32 %v1069, %v1071
    %v1073 = vadd.f32 %v1069, %v1072
    %vm1074 = vweird.f32 %v1068
    %vm1075 = vweird.f32 %v1069
    %vm1076 = vmor %vm1074, %vm1075
    %v1077 = vsel %vm1076, %v1069, %v1073
    %v1078 = vand.u32 2147483647, %v1068
    %vm1079 = vcmp.eq.f32.partialorder %v1078, 8.507059e+37
    %v1080 = vand.u32 %v1068, 2147483648
    %v1081 = vor.u32 1.1754944e-38, %v1080
    %v1082 = vsel %vm1079, %v1081, %v1077
    %v1083 = vmul.f32 %v1058, %v1082
    %v1084 = vmin.f32 %v1083, 1.0
    %v1085 = vmax.f32 %v1084, -1.0
    %v1086 = vmul.f32 %v547, %v547
    %v1087 = vmin.f32 16.0, %v1086
    %v1088 = vmul.f32 %v1087, 2.1237322e-06
    %v1089 = vadd.f32 %v1088, 0.00028619796
    %v1090 = vmul.f32 %v1087, %v1089
    %v1091 = vadd.f32 %v1090, 0.0036580483
    %v1092 = vmul.f32 %v1087, %v1091
    %v1093 = vadd.f32 %v1092, 0.05243302
    %v1094 = vmul.f32 %v1087, %v1093
    %v1095 = vadd.f32 %v1094, 0.18741608
    %v1096 = vmul.f32 %v1087, %v1095
    %v1097 = vadd.f32 %v1096, 1.1283791
    %v1098 = vmul.f32 %v547, %v1097
    %v1099 = vmul.f32 %v1087, 3.8918573e-05
    %v1100 = vadd.f32 %v1099, 0.001143296
    %v1101 = vmul.f32 %v1087, %v1100
    %v1102 = vadd.f32 %v1101, 0.014752088
    %v1103 = vmul.f32 %v1087, %v1102
    %v1104 = vadd.f32 %v1103, 0.112945676
    %v1105 = vmul.f32 %v1087, %v1104
    %v1106 = vadd.f32 %v1105, 0.4994258
    %v1107 = vmul.f32 %v1087, %v1106
    %v1108 = vadd.f32 %v1107, 1.0
    %v1109 = vrcp.pop %v1108
    %v1110 = vmul.f32 %v1108, %v1109
    %v1111 = vsub.f32 1.0, %v1110
    %v1112 = vmul.f32 %v1109, %v1111
    %v1113 = vadd.f32 %v1109, %v1112
    %vm1114 = vweird.f32 %v1108
    %vm1115 = vweird.f32 %v1109
    %vm1116 = vmor %vm1114, %vm1115
    %v1117 = vsel %vm1116, %v1109, %v1113
    %v1118 = vand.u32 2147483647, %v1108
    %vm1119 = vcmp.eq.f32.partialorder %v1118, 8.507059e+37
    %v1120 = vand.u32 %v1108, 2147483648
    %v1121 = vor.u32 1.1754944e-38, %v1120
    %v1122 = vsel %vm1119, %v1121, %v1117
    %v1123 = vmul.f32 %v1098, %v1122
    %v1124 = vmin.f32 %v1123, 1.0
    %v1125 = vmax.f32 %v1124, -1.0
    %v1126 = vmul.f32 %v548, %v548
    %v1127 = vmin.f32 16.0, %v1126
    %v1128 = vmul.f32 %v1127, 2.1237322e-06
    %v1129 = vadd.f32 %v1128, 0.00028619796
    %v1130 = vmul.f32 %v1127, %v1129
    %v1131 = vadd.f32 %v1130, 0.0036580483
    %v1132 = vmul.f32 %v1127, %v1131
    %v1133 = vadd.f32 %v1132, 0.05243302
    %v1134 = vmul.f32 %v1127, %v1133
    %v1135 = vadd.f32 %v1134, 0.18741608
    %v1136 = vmul.f32 %v1127, %v1135
    %v1137 = vadd.f32 %v1136, 1.1283791
    %v1138 = vmul.f32 %v548, %v1137
    %v1139 = vmul.f32 %v1127, 3.8918573e-05
    %v1140 = vadd.f32 %v1139, 0.001143296
    %v1141 = vmul.f32 %v1127, %v1140
    %v1142 = vadd.f32 %v1141, 0.014752088
    %v1143 = vmul.f32 %v1127, %v1142
    %v1144 = vadd.f32 %v1143, 0.112945676
    %v1145 = vmul.f32 %v1127, %v1144
    %v1146 = vadd.f32 %v1145, 0.4994258
    %v1147 = vmul.f32 %v1127, %v1146
    %v1148 = vadd.f32 %v1147, 1.0
    %v1149 = vrcp.pop %v1148
    %v1150 = vmul.f32 %v1148, %v1149
    %v1151 = vsub.f32 1.0, %v1150
    %v1152 = vmul.f32 %v1149, %v1151
    %v1153 = vadd.f32 %v1149, %v1152
    %vm1154 = vweird.f32 %v1148
    %vm1155 = vweird.f32 %v1149
    %vm1156 = vmor %vm1154, %vm1155
    %v1157 = vsel %vm1156, %v1149, %v1153
    %v1158 = vand.u32 2147483647, %v1148
    %vm1159 = vcmp.eq.f32.partialorder %v1158, 8.507059e+37
    %v1160 = vand.u32 %v1148, 2147483648
    %v1161 = vor.u32 1.1754944e-38, %v1160
    %v1162 = vsel %vm1159, %v1161, %v1157
    %v1163 = vmul.f32 %v1138, %v1162
    %v1164 = vmin.f32 %v1163, 1.0
    %v1165 = vmax.f32 %v1164, -1.0
    %v1166 = vmul.f32 %v549, %v549
    %v1167 = vmin.f32 16.0, %v1166
    %v1168 = vmul.f32 %v1167, 2.1237322e-06
    %v1169 = vadd.f32 %v1168, 0.00028619796
    %v1170 = vmul.f32 %v1167, %v1169
    %v1171 = vadd.f32 %v1170, 0.0036580483
    %v1172 = vmul.f32 %v1167, %v1171
    %v1173 = vadd.f32 %v1172, 0.05243302
    %v1174 = vmul.f32 %v1167, %v1173
    %v1175 = vadd.f32 %v1174, 0.18741608
    %v1176 = vmul.f32 %v1167, %v1175
    %v1177 = vadd.f32 %v1176, 1.1283791
    %v1178 = vmul.f32 %v549, %v1177
    %v1179 = vmul.f32 %v1167, 3.8918573e-05
    %v1180 = vadd.f32 %v1179, 0.001143296
    %v1181 = vmul.f32 %v1167, %v1180
    %v1182 = vadd.f32 %v1181, 0.014752088
    %v1183 = vmul.f32 %v1167, %v1182
    %v1184 = vadd.f32 %v1183, 0.112945676
    %v1185 = vmul.f32 %v1167, %v1184
    %v1186 = vadd.f32 %v1185, 0.4994258
    %v1187 = vmul.f32 %v1167, %v1186
    %v1188 = vadd.f32 %v1187, 1.0
    %v1189 = vrcp.pop %v1188
    %v1190 = vmul.f32 %v1188, %v1189
    %v1191 = vsub.f32 1.0, %v1190
    %v1192 = vmul.f32 %v1189, %v1191
    %v1193 = vadd.f32 %v1189, %v1192
    %vm1194 = vweird.f32 %v1188
    %vm1195 = vweird.f32 %v1189
    %vm1196 = vmor %vm1194, %vm1195
    %v1197 = vsel %vm1196, %v1189, %v1193
    %v1198 = vand.u32 2147483647, %v1188
    %vm1199 = vcmp.eq.f32.partialorder %v1198, 8.507059e+37
    %v1200 = vand.u32 %v1188, 2147483648
    %v1201 = vor.u32 1.1754944e-38, %v1200
    %v1202 = vsel %vm1199, %v1201, %v1197
    %v1203 = vmul.f32 %v1178, %v1202
    %v1204 = vmin.f32 %v1203, 1.0
    %v1205 = vmax.f32 %v1204, -1.0
    %v1206 = vmul.f32 %v550, %v550
    %v1207 = vmin.f32 16.0, %v1206
    %v1208 = vmul.f32 %v1207, 2.1237322e-06
    %v1209 = vadd.f32 %v1208, 0.00028619796
    %v1210 = vmul.f32 %v1207, %v1209
    %v1211 = vadd.f32 %v1210, 0.0036580483
    %v1212 = vmul.f32 %v1207, %v1211
    %v1213 = vadd.f32 %v1212, 0.05243302
    %v1214 = vmul.f32 %v1207, %v1213
    %v1215 = vadd.f32 %v1214, 0.18741608
    %v1216 = vmul.f32 %v1207, %v1215
    %v1217 = vadd.f32 %v1216, 1.1283791
    %v1218 = vmul.f32 %v550, %v1217
    %v1219 = vmul.f32 %v1207, 3.8918573e-05
    %v1220 = vadd.f32 %v1219, 0.001143296
    %v1221 = vmul.f32 %v1207, %v1220
    %v1222 = vadd.f32 %v1221, 0.014752088
    %v1223 = vmul.f32 %v1207, %v1222
    %v1224 = vadd.f32 %v1223, 0.112945676
    %v1225 = vmul.f32 %v1207, %v1224
    %v1226 = vadd.f32 %v1225, 0.4994258
    %v1227 = vmul.f32 %v1207, %v1226
    %v1228 = vadd.f32 %v1227, 1.0
    %v1229 = vrcp.pop %v1228
    %v1230 = vmul.f32 %v1228, %v1229
    %v1231 = vsub.f32 1.0, %v1230
    %v1232 = vmul.f32 %v1229, %v1231
    %v1233 = vadd.f32 %v1229, %v1232
    %vm1234 = vweird.f32 %v1228
    %vm1235 = vweird.f32 %v1229
    %vm1236 = vmor %vm1234, %vm1235
    %v1237 = vsel %vm1236, %v1229, %v1233
    %v1238 = vand.u32 2147483647, %v1228
    %vm1239 = vcmp.eq.f32.partialorder %v1238, 8.507059e+37
    %v1240 = vand.u32 %v1228, 2147483648
    %v1241 = vor.u32 1.1754944e-38, %v1240
    %v1242 = vsel %vm1239, %v1241, %v1237
    %v1243 = vmul.f32 %v1218, %v1242
    %v1244 = vmin.f32 %v1243, 1.0
    %v1245 = vmax.f32 %v1244, -1.0
    %v1246 = vmul.f32 %v551, %v551
    %v1247 = vmin.f32 16.0, %v1246
    %v1248 = vmul.f32 %v1247, 2.1237322e-06
    %v1249 = vadd.f32 %v1248, 0.00028619796
    %v1250 = vmul.f32 %v1247, %v1249
    %v1251 = vadd.f32 %v1250, 0.0036580483
    %v1252 = vmul.f32 %v1247, %v1251
    %v1253 = vadd.f32 %v1252, 0.05243302
    %v1254 = vmul.f32 %v1247, %v1253
    %v1255 = vadd.f32 %v1254, 0.18741608
    %v1256 = vmul.f32 %v1247, %v1255
    %v1257 = vadd.f32 %v1256, 1.1283791
    %v1258 = vmul.f32 %v551, %v1257
    %v1259 = vmul.f32 %v1247, 3.8918573e-05
    %v1260 = vadd.f32 %v1259, 0.001143296
    %v1261 = vmul.f32 %v1247, %v1260
    %v1262 = vadd.f32 %v1261, 0.014752088
    %v1263 = vmul.f32 %v1247, %v1262
    %v1264 = vadd.f32 %v1263, 0.112945676
    %v1265 = vmul.f32 %v1247, %v1264
    %v1266 = vadd.f32 %v1265, 0.4994258
    %v1267 = vmul.f32 %v1247, %v1266
    %v1268 = vadd.f32 %v1267, 1.0
    %v1269 = vrcp.pop %v1268
    %v1270 = vmul.f32 %v1268, %v1269
    %v1271 = vsub.f32 1.0, %v1270
    %v1272 = vmul.f32 %v1269, %v1271
    %v1273 = vadd.f32 %v1269, %v1272
    %vm1274 = vweird.f32 %v1268
    %vm1275 = vweird.f32 %v1269
    %vm1276 = vmor %vm1274, %vm1275
    %v1277 = vsel %vm1276, %v1269, %v1273
    %v1278 = vand.u32 2147483647, %v1268
    %vm1279 = vcmp.eq.f32.partialorder %v1278, 8.507059e+37
    %v1280 = vand.u32 %v1268, 2147483648
    %v1281 = vor.u32 1.1754944e-38, %v1280
    %v1282 = vsel %vm1279, %v1281, %v1277
    %v1283 = vmul.f32 %v1258, %v1282
    %v1284 = vmin.f32 %v1283, 1.0
    %v1285 = vmax.f32 %v1284, -1.0
    %v1286 = vmul.f32 %v552, %v552
    %v1287 = vmin.f32 16.0, %v1286
    %v1288 = vmul.f32 %v1287, 2.1237322e-06
    %v1289 = vadd.f32 %v1288, 0.00028619796
    %v1290 = vmul.f32 %v1287, %v1289
    %v1291 = vadd.f32 %v1290, 0.0036580483
    %v1292 = vmul.f32 %v1287, %v1291
    %v1293 = vadd.f32 %v1292, 0.05243302
    %v1294 = vmul.f32 %v1287, %v1293
    %v1295 = vadd.f32 %v1294, 0.18741608
    %v1296 = vmul.f32 %v1287, %v1295
    %v1297 = vadd.f32 %v1296, 1.1283791
    %v1298 = vmul.f32 %v552, %v1297
    %v1299 = vmul.f32 %v1287, 3.8918573e-05
    %v1300 = vadd.f32 %v1299, 0.001143296
    %v1301 = vmul.f32 %v1287, %v1300
    %v1302 = vadd.f32 %v1301, 0.014752088
    %v1303 = vmul.f32 %v1287, %v1302
    %v1304 = vadd.f32 %v1303, 0.112945676
    %v1305 = vmul.f32 %v1287, %v1304
    %v1306 = vadd.f32 %v1305, 0.4994258
    %v1307 = vmul.f32 %v1287, %v1306
    %v1308 = vadd.f32 %v1307, 1.0
    %v1309 = vrcp.pop %v1308
    %v1310 = vmul.f32 %v1308, %v1309
    %v1311 = vsub.f32 1.0, %v1310
    %v1312 = vmul.f32 %v1309, %v1311
    %v1313 = vadd.f32 %v1309, %v1312
    %vm1314 = vweird.f32 %v1308
    %vm1315 = vweird.f32 %v1309
    %vm1316 = vmor %vm1314, %vm1315
    %v1317 = vsel %vm1316, %v1309, %v1313
    %v1318 = vand.u32 2147483647, %v1308
    %vm1319 = vcmp.eq.f32.partialorder %v1318, 8.507059e+37
    %v1320 = vand.u32 %v1308, 2147483648
    %v1321 = vor.u32 1.1754944e-38, %v1320
    %v1322 = vsel %vm1319, %v1321, %v1317
    %v1323 = vmul.f32 %v1298, %v1322
    %v1324 = vmin.f32 %v1323, 1.0
    %v1325 = vmax.f32 %v1324, -1.0
    %v1326 = vmul.f32 %v553, %v553
    %v1327 = vmin.f32 16.0, %v1326
    %v1328 = vmul.f32 %v1327, 2.1237322e-06
    %v1329 = vadd.f32 %v1328, 0.00028619796
    %v1330 = vmul.f32 %v1327, %v1329
    %v1331 = vadd.f32 %v1330, 0.0036580483
    %v1332 = vmul.f32 %v1327, %v1331
    %v1333 = vadd.f32 %v1332, 0.05243302
    %v1334 = vmul.f32 %v1327, %v1333
    %v1335 = vadd.f32 %v1334, 0.18741608
    %v1336 = vmul.f32 %v1327, %v1335
    %v1337 = vadd.f32 %v1336, 1.1283791
    %v1338 = vmul.f32 %v553, %v1337
    %v1339 = vmul.f32 %v1327, 3.8918573e-05
    %v1340 = vadd.f32 %v1339, 0.001143296
    %v1341 = vmul.f32 %v1327, %v1340
    %v1342 = vadd.f32 %v1341, 0.014752088
    %v1343 = vmul.f32 %v1327, %v1342
    %v1344 = vadd.f32 %v1343, 0.112945676
    %v1345 = vmul.f32 %v1327, %v1344
    %v1346 = vadd.f32 %v1345, 0.4994258
    %v1347 = vmul.f32 %v1327, %v1346
    %v1348 = vadd.f32 %v1347, 1.0
    %v1349 = vrcp.pop %v1348
    %v1350 = vmul.f32 %v1348, %v1349
    %v1351 = vsub.f32 1.0, %v1350
    %v1352 = vmul.f32 %v1349, %v1351
    %v1353 = vadd.f32 %v1349, %v1352
    %vm1354 = vweird.f32 %v1348
    %vm1355 = vweird.f32 %v1349
    %vm1356 = vmor %vm1354, %vm1355
    %v1357 = vsel %vm1356, %v1349, %v1353
    %v1358 = vand.u32 2147483647, %v1348
    %vm1359 = vcmp.eq.f32.partialorder %v1358, 8.507059e+37
    %v1360 = vand.u32 %v1348, 2147483648
    %v1361 = vor.u32 1.1754944e-38, %v1360
    %v1362 = vsel %vm1359, %v1361, %v1357
    %v1363 = vmul.f32 %v1338, %v1362
    %v1364 = vmin.f32 %v1363, 1.0
    %v1365 = vmax.f32 %v1364, -1.0
    %v1366 = vmul.f32 %v554, %v554
    %v1367 = vmin.f32 16.0, %v1366
    %v1368 = vmul.f32 %v1367, 2.1237322e-06
    %v1369 = vadd.f32 %v1368, 0.00028619796
    %v1370 = vmul.f32 %v1367, %v1369
    %v1371 = vadd.f32 %v1370, 0.0036580483
    %v1372 = vmul.f32 %v1367, %v1371
    %v1373 = vadd.f32 %v1372, 0.05243302
    %v1374 = vmul.f32 %v1367, %v1373
    %v1375 = vadd.f32 %v1374, 0.18741608
    %v1376 = vmul.f32 %v1367, %v1375
    %v1377 = vadd.f32 %v1376, 1.1283791
    %v1378 = vmul.f32 %v554, %v1377
    %v1379 = vmul.f32 %v1367, 3.8918573e-05
    %v1380 = vadd.f32 %v1379, 0.001143296
    %v1381 = vmul.f32 %v1367, %v1380
    %v1382 = vadd.f32 %v1381, 0.014752088
    %v1383 = vmul.f32 %v1367, %v1382
    %v1384 = vadd.f32 %v1383, 0.112945676
    %v1385 = vmul.f32 %v1367, %v1384
    %v1386 = vadd.f32 %v1385, 0.4994258
    %v1387 = vmul.f32 %v1367, %v1386
    %v1388 = vadd.f32 %v1387, 1.0
    %v1389 = vrcp.pop %v1388
    %v1390 = vmul.f32 %v1388, %v1389
    %v1391 = vsub.f32 1.0, %v1390
    %v1392 = vmul.f32 %v1389, %v1391
    %v1393 = vadd.f32 %v1389, %v1392
    %vm1394 = vweird.f32 %v1388
    %vm1395 = vweird.f32 %v1389
    %vm1396 = vmor %vm1394, %vm1395
    %v1397 = vsel %vm1396, %v1389, %v1393
    %v1398 = vand.u32 2147483647, %v1388
    %vm1399 = vcmp.eq.f32.partialorder %v1398, 8.507059e+37
    %v1400 = vand.u32 %v1388, 2147483648
    %v1401 = vor.u32 1.1754944e-38, %v1400
    %v1402 = vsel %vm1399, %v1401, %v1397
    %v1403 = vmul.f32 %v1378, %v1402
    %v1404 = vmin.f32 %v1403, 1.0
    %v1405 = vmax.f32 %v1404, -1.0
    %v1406 = vmul.f32 %v555, %v555
    %v1407 = vmin.f32 16.0, %v1406
    %v1408 = vmul.f32 %v1407, 2.1237322e-06
    %v1409 = vadd.f32 %v1408, 0.00028619796
    %v1410 = vmul.f32 %v1407, %v1409
    %v1411 = vadd.f32 %v1410, 0.0036580483
    %v1412 = vmul.f32 %v1407, %v1411
    %v1413 = vadd.f32 %v1412, 0.05243302
    %v1414 = vmul.f32 %v1407, %v1413
    %v1415 = vadd.f32 %v1414, 0.18741608
    %v1416 = vmul.f32 %v1407, %v1415
    %v1417 = vadd.f32 %v1416, 1.1283791
    %v1418 = vmul.f32 %v555, %v1417
    %v1419 = vmul.f32 %v1407, 3.8918573e-05
    %v1420 = vadd.f32 %v1419, 0.001143296
    %v1421 = vmul.f32 %v1407, %v1420
    %v1422 = vadd.f32 %v1421, 0.014752088
    %v1423 = vmul.f32 %v1407, %v1422
    %v1424 = vadd.f32 %v1423, 0.112945676
    %v1425 = vmul.f32 %v1407, %v1424
    %v1426 = vadd.f32 %v1425, 0.4994258
    %v1427 = vmul.f32 %v1407, %v1426
    %v1428 = vadd.f32 %v1427, 1.0
    %v1429 = vrcp.pop %v1428
    %v1430 = vmul.f32 %v1428, %v1429
    %v1431 = vsub.f32 1.0, %v1430
    %v1432 = vmul.f32 %v1429, %v1431
    %v1433 = vadd.f32 %v1429, %v1432
    %vm1434 = vweird.f32 %v1428
    %vm1435 = vweird.f32 %v1429
    %vm1436 = vmor %vm1434, %vm1435
    %v1437 = vsel %vm1436, %v1429, %v1433
    %v1438 = vand.u32 2147483647, %v1428
    %vm1439 = vcmp.eq.f32.partialorder %v1438, 8.507059e+37
    %v1440 = vand.u32 %v1428, 2147483648
    %v1441 = vor.u32 1.1754944e-38, %v1440
    %v1442 = vsel %vm1439, %v1441, %v1437
    %v1443 = vmul.f32 %v1418, %v1442
    %v1444 = vmin.f32 %v1443, 1.0
    %v1445 = vmax.f32 %v1444, -1.0
    %v1446 = vmul.f32 %v556, %v556
    %v1447 = vmin.f32 16.0, %v1446
    %v1448 = vmul.f32 %v1447, 2.1237322e-06
    %v1449 = vadd.f32 %v1448, 0.00028619796
    %v1450 = vmul.f32 %v1447, %v1449
    %v1451 = vadd.f32 %v1450, 0.0036580483
    %v1452 = vmul.f32 %v1447, %v1451
    %v1453 = vadd.f32 %v1452, 0.05243302
    %v1454 = vmul.f32 %v1447, %v1453
    %v1455 = vadd.f32 %v1454, 0.18741608
    %v1456 = vmul.f32 %v1447, %v1455
    %v1457 = vadd.f32 %v1456, 1.1283791
    %v1458 = vmul.f32 %v556, %v1457
    %v1459 = vmul.f32 %v1447, 3.8918573e-05
    %v1460 = vadd.f32 %v1459, 0.001143296
    %v1461 = vmul.f32 %v1447, %v1460
    %v1462 = vadd.f32 %v1461, 0.014752088
    %v1463 = vmul.f32 %v1447, %v1462
    %v1464 = vadd.f32 %v1463, 0.112945676
    %v1465 = vmul.f32 %v1447, %v1464
    %v1466 = vadd.f32 %v1465, 0.4994258
    %v1467 = vmul.f32 %v1447, %v1466
    %v1468 = vadd.f32 %v1467, 1.0
    %v1469 = vrcp.pop %v1468
    %v1470 = vmul.f32 %v1468, %v1469
    %v1471 = vsub.f32 1.0, %v1470
    %v1472 = vmul.f32 %v1469, %v1471
    %v1473 = vadd.f32 %v1469, %v1472
    %vm1474 = vweird.f32 %v1468
    %vm1475 = vweird.f32 %v1469
    %vm1476 = vmor %vm1474, %vm1475
    %v1477 = vsel %vm1476, %v1469, %v1473
    %v1478 = vand.u32 2147483647, %v1468
    %vm1479 = vcmp.eq.f32.partialorder %v1478, 8.507059e+37
    %v1480 = vand.u32 %v1468, 2147483648
    %v1481 = vor.u32 1.1754944e-38, %v1480
    %v1482 = vsel %vm1479, %v1481, %v1477
    %v1483 = vmul.f32 %v1458, %v1482
    %v1484 = vmin.f32 %v1483, 1.0
    %v1485 = vmax.f32 %v1484, -1.0
    %v1486 = vmul.f32 %v557, %v557
    %v1487 = vmin.f32 16.0, %v1486
    %v1488 = vmul.f32 %v1487, 2.1237322e-06
    %v1489 = vadd.f32 %v1488, 0.00028619796
    %v1490 = vmul.f32 %v1487, %v1489
    %v1491 = vadd.f32 %v1490, 0.0036580483
    %v1492 = vmul.f32 %v1487, %v1491
    %v1493 = vadd.f32 %v1492, 0.05243302
    %v1494 = vmul.f32 %v1487, %v1493
    %v1495 = vadd.f32 %v1494, 0.18741608
    %v1496 = vmul.f32 %v1487, %v1495
    %v1497 = vadd.f32 %v1496, 1.1283791
    %v1498 = vmul.f32 %v557, %v1497
    %v1499 = vmul.f32 %v1487, 3.8918573e-05
    %v1500 = vadd.f32 %v1499, 0.001143296
    %v1501 = vmul.f32 %v1487, %v1500
    %v1502 = vadd.f32 %v1501, 0.014752088
    %v1503 = vmul.f32 %v1487, %v1502
    %v1504 = vadd.f32 %v1503, 0.112945676
    %v1505 = vmul.f32 %v1487, %v1504
    %v1506 = vadd.f32 %v1505, 0.4994258
    %v1507 = vmul.f32 %v1487, %v1506
    %v1508 = vadd.f32 %v1507, 1.0
    %v1509 = vrcp.pop %v1508
    %v1510 = vmul.f32 %v1508, %v1509
    %v1511 = vsub.f32 1.0, %v1510
    %v1512 = vmul.f32 %v1509, %v1511
    %v1513 = vadd.f32 %v1509, %v1512
    %vm1514 = vweird.f32 %v1508
    %vm1515 = vweird.f32 %v1509
    %vm1516 = vmor %vm1514, %vm1515
    %v1517 = vsel %vm1516, %v1509, %v1513
    %v1518 = vand.u32 2147483647, %v1508
    %vm1519 = vcmp.eq.f32.partialorder %v1518, 8.507059e+37
    %v1520 = vand.u32 %v1508, 2147483648
    %v1521 = vor.u32 1.1754944e-38, %v1520
    %v1522 = vsel %vm1519, %v1521, %v1517
    %v1523 = vmul.f32 %v1498, %v1522
    %v1524 = vmin.f32 %v1523, 1.0
    %v1525 = vmax.f32 %v1524, -1.0
    %v1526 = vmul.f32 %v558, %v558
    %v1527 = vmin.f32 16.0, %v1526
    %v1528 = vmul.f32 %v1527, 2.1237322e-06
    %v1529 = vadd.f32 %v1528, 0.00028619796
    %v1530 = vmul.f32 %v1527, %v1529
    %v1531 = vadd.f32 %v1530, 0.0036580483
    %v1532 = vmul.f32 %v1527, %v1531
    %v1533 = vadd.f32 %v1532, 0.05243302
    %v1534 = vmul.f32 %v1527, %v1533
    %v1535 = vadd.f32 %v1534, 0.18741608
    %v1536 = vmul.f32 %v1527, %v1535
    %v1537 = vadd.f32 %v1536, 1.1283791
    %v1538 = vmul.f32 %v558, %v1537
    %v1539 = vmul.f32 %v1527, 3.8918573e-05
    %v1540 = vadd.f32 %v1539, 0.001143296
    %v1541 = vmul.f32 %v1527, %v1540
    %v1542 = vadd.f32 %v1541, 0.014752088
    %v1543 = vmul.f32 %v1527, %v1542
    %v1544 = vadd.f32 %v1543, 0.112945676
    %v1545 = vmul.f32 %v1527, %v1544
    %v1546 = vadd.f32 %v1545, 0.4994258
    %v1547 = vmul.f32 %v1527, %v1546
    %v1548 = vadd.f32 %v1547, 1.0
    %v1549 = vrcp.pop %v1548
    %v1550 = vmul.f32 %v1548, %v1549
    %v1551 = vsub.f32 1.0, %v1550
    %v1552 = vmul.f32 %v1549, %v1551
    %v1553 = vadd.f32 %v1549, %v1552
    %vm1554 = vweird.f32 %v1548
    %vm1555 = vweird.f32 %v1549
    %vm1556 = vmor %vm1554, %vm1555
    %v1557 = vsel %vm1556, %v1549, %v1553
    %v1558 = vand.u32 2147483647, %v1548
    %vm1559 = vcmp.eq.f32.partialorder %v1558, 8.507059e+37
    %v1560 = vand.u32 %v1548, 2147483648
    %v1561 = vor.u32 1.1754944e-38, %v1560
    %v1562 = vsel %vm1559, %v1561, %v1557
    %v1563 = vmul.f32 %v1538, %v1562
    %v1564 = vmin.f32 %v1563, 1.0
    %v1565 = vmax.f32 %v1564, -1.0
    %v1566 = vmul.f32 %v559, %v559
    %v1567 = vmin.f32 16.0, %v1566
    %v1568 = vmul.f32 %v1567, 2.1237322e-06
    %v1569 = vadd.f32 %v1568, 0.00028619796
    %v1570 = vmul.f32 %v1567, %v1569
    %v1571 = vadd.f32 %v1570, 0.0036580483
    %v1572 = vmul.f32 %v1567, %v1571
    %v1573 = vadd.f32 %v1572, 0.05243302
    %v1574 = vmul.f32 %v1567, %v1573
    %v1575 = vadd.f32 %v1574, 0.18741608
    %v1576 = vmul.f32 %v1567, %v1575
    %v1577 = vadd.f32 %v1576, 1.1283791
    %v1578 = vmul.f32 %v559, %v1577
    %v1579 = vmul.f32 %v1567, 3.8918573e-05
    %v1580 = vadd.f32 %v1579, 0.001143296
    %v1581 = vmul.f32 %v1567, %v1580
    %v1582 = vadd.f32 %v1581, 0.014752088
    %v1583 = vmul.f32 %v1567, %v1582
    %v1584 = vadd.f32 %v1583, 0.112945676
    %v1585 = vmul.f32 %v1567, %v1584
    %v1586 = vadd.f32 %v1585, 0.4994258
    %v1587 = vmul.f32 %v1567, %v1586
    %v1588 = vadd.f32 %v1587, 1.0
    %v1589 = vrcp.pop %v1588
    %v1590 = vmul.f32 %v1588, %v1589
    %v1591 = vsub.f32 1.0, %v1590
    %v1592 = vmul.f32 %v1589, %v1591
    %v1593 = vadd.f32 %v1589, %v1592
    %vm1594 = vweird.f32 %v1588
    %vm1595 = vweird.f32 %v1589
    %vm1596 = vmor %vm1594, %vm1595
    %v1597 = vsel %vm1596, %v1589, %v1593
    %v1598 = vand.u32 2147483647, %v1588
    %vm1599 = vcmp.eq.f32.partialorder %v1598, 8.507059e+37
    %v1600 = vand.u32 %v1588, 2147483648
    %v1601 = vor.u32 1.1754944e-38, %v1600
    %v1602 = vsel %vm1599, %v1601, %v1597
    %v1603 = vmul.f32 %v1578, %v1602
    %v1604 = vmin.f32 %v1603, 1.0
    %v1605 = vmax.f32 %v1604, -1.0
    %v1606 = vmul.f32 %v560, %v560
    %v1607 = vmin.f32 16.0, %v1606
    %v1608 = vmul.f32 %v1607, 2.1237322e-06
    %v1609 = vadd.f32 %v1608, 0.00028619796
    %v1610 = vmul.f32 %v1607, %v1609
    %v1611 = vadd.f32 %v1610, 0.0036580483
    %v1612 = vmul.f32 %v1607, %v1611
    %v1613 = vadd.f32 %v1612, 0.05243302
    %v1614 = vmul.f32 %v1607, %v1613
    %v1615 = vadd.f32 %v1614, 0.18741608
    %v1616 = vmul.f32 %v1607, %v1615
    %v1617 = vadd.f32 %v1616, 1.1283791
    %v1618 = vmul.f32 %v560, %v1617
    %v1619 = vmul.f32 %v1607, 3.8918573e-05
    %v1620 = vadd.f32 %v1619, 0.001143296
    %v1621 = vmul.f32 %v1607, %v1620
    %v1622 = vadd.f32 %v1621, 0.014752088
    %v1623 = vmul.f32 %v1607, %v1622
    %v1624 = vadd.f32 %v1623, 0.112945676
    %v1625 = vmul.f32 %v1607, %v1624
    %v1626 = vadd.f32 %v1625, 0.4994258
    %v1627 = vmul.f32 %v1607, %v1626
    %v1628 = vadd.f32 %v1627, 1.0
    %v1629 = vrcp.pop %v1628
    %v1630 = vmul.f32 %v1628, %v1629
    %v1631 = vsub.f32 1.0, %v1630
    %v1632 = vmul.f32 %v1629, %v1631
    %v1633 = vadd.f32 %v1629, %v1632
    %vm1634 = vweird.f32 %v1628
    %vm1635 = vweird.f32 %v1629
    %vm1636 = vmor %vm1634, %vm1635
    %v1637 = vsel %vm1636, %v1629, %v1633
    %v1638 = vand.u32 2147483647, %v1628
    %vm1639 = vcmp.eq.f32.partialorder %v1638, 8.507059e+37
    %v1640 = vand.u32 %v1628, 2147483648
    %v1641 = vor.u32 1.1754944e-38, %v1640
    %v1642 = vsel %vm1639, %v1641, %v1637
    %v1643 = vmul.f32 %v1618, %v1642
    %v1644 = vmin.f32 %v1643, 1.0
    %v1645 = vmax.f32 %v1644, -1.0
    %v1646 = vmul.f32 %v561, %v561
    %v1647 = vmin.f32 16.0, %v1646
    %v1648 = vmul.f32 %v1647, 2.1237322e-06
    %v1649 = vadd.f32 %v1648, 0.00028619796
    %v1650 = vmul.f32 %v1647, %v1649
    %v1651 = vadd.f32 %v1650, 0.0036580483
    %v1652 = vmul.f32 %v1647, %v1651
    %v1653 = vadd.f32 %v1652, 0.05243302
    %v1654 = vmul.f32 %v1647, %v1653
    %v1655 = vadd.f32 %v1654, 0.18741608
    %v1656 = vmul.f32 %v1647, %v1655
    %v1657 = vadd.f32 %v1656, 1.1283791
    %v1658 = vmul.f32 %v561, %v1657
    %v1659 = vmul.f32 %v1647, 3.8918573e-05
    %v1660 = vadd.f32 %v1659, 0.001143296
    %v1661 = vmul.f32 %v1647, %v1660
    %v1662 = vadd.f32 %v1661, 0.014752088
    %v1663 = vmul.f32 %v1647, %v1662
    %v1664 = vadd.f32 %v1663, 0.112945676
    %v1665 = vmul.f32 %v1647, %v1664
    %v1666 = vadd.f32 %v1665, 0.4994258
    %v1667 = vmul.f32 %v1647, %v1666
    %v1668 = vadd.f32 %v1667, 1.0
    %v1669 = vrcp.pop %v1668
    %v1670 = vmul.f32 %v1668, %v1669
    %v1671 = vsub.f32 1.0, %v1670
    %v1672 = vmul.f32 %v1669, %v1671
    %v1673 = vadd.f32 %v1669, %v1672
    %vm1674 = vweird.f32 %v1668
    %vm1675 = vweird.f32 %v1669
    %vm1676 = vmor %vm1674, %vm1675
    %v1677 = vsel %vm1676, %v1669, %v1673
    %v1678 = vand.u32 2147483647, %v1668
    %vm1679 = vcmp.eq.f32.partialorder %v1678, 8.507059e+37
    %v1680 = vand.u32 %v1668, 2147483648
    %v1681 = vor.u32 1.1754944e-38, %v1680
    %v1682 = vsel %vm1679, %v1681, %v1677
    %v1683 = vmul.f32 %v1658, %v1682
    %v1684 = vmin.f32 %v1683, 1.0
    %v1685 = vmax.f32 %v1684, -1.0
    %v1686 = vmul.f32 %v562, %v562
    %v1687 = vmin.f32 16.0, %v1686
    %v1688 = vmul.f32 %v1687, 2.1237322e-06
    %v1689 = vadd.f32 %v1688, 0.00028619796
    %v1690 = vmul.f32 %v1687, %v1689
    %v1691 = vadd.f32 %v1690, 0.0036580483
    %v1692 = vmul.f32 %v1687, %v1691
    %v1693 = vadd.f32 %v1692, 0.05243302
    %v1694 = vmul.f32 %v1687, %v1693
    %v1695 = vadd.f32 %v1694, 0.18741608
    %v1696 = vmul.f32 %v1687, %v1695
    %v1697 = vadd.f32 %v1696, 1.1283791
    %v1698 = vmul.f32 %v562, %v1697
    %v1699 = vmul.f32 %v1687, 3.8918573e-05
    %v1700 = vadd.f32 %v1699, 0.001143296
    %v1701 = vmul.f32 %v1687, %v1700
    %v1702 = vadd.f32 %v1701, 0.014752088
    %v1703 = vmul.f32 %v1687, %v1702
    %v1704 = vadd.f32 %v1703, 0.112945676
    %v1705 = vmul.f32 %v1687, %v1704
    %v1706 = vadd.f32 %v1705, 0.4994258
    %v1707 = vmul.f32 %v1687, %v1706
    %v1708 = vadd.f32 %v1707, 1.0
    %v1709 = vrcp.pop %v1708
    %v1710 = vmul.f32 %v1708, %v1709
    %v1711 = vsub.f32 1.0, %v1710
    %v1712 = vmul.f32 %v1709, %v1711
    %v1713 = vadd.f32 %v1709, %v1712
    %vm1714 = vweird.f32 %v1708
    %vm1715 = vweird.f32 %v1709
    %vm1716 = vmor %vm1714, %vm1715
    %v1717 = vsel %vm1716, %v1709, %v1713
    %v1718 = vand.u32 2147483647, %v1708
    %vm1719 = vcmp.eq.f32.partialorder %v1718, 8.507059e+37
    %v1720 = vand.u32 %v1708, 2147483648
    %v1721 = vor.u32 1.1754944e-38, %v1720
    %v1722 = vsel %vm1719, %v1721, %v1717
    %v1723 = vmul.f32 %v1698, %v1722
    %v1724 = vmin.f32 %v1723, 1.0
    %v1725 = vmax.f32 %v1724, -1.0
    %v1726 = vmul.f32 %v563, %v563
    %v1727 = vmin.f32 16.0, %v1726
    %v1728 = vmul.f32 %v1727, 2.1237322e-06
    %v1729 = vadd.f32 %v1728, 0.00028619796
    %v1730 = vmul.f32 %v1727, %v1729
    %v1731 = vadd.f32 %v1730, 0.0036580483
    %v1732 = vmul.f32 %v1727, %v1731
    %v1733 = vadd.f32 %v1732, 0.05243302
    %v1734 = vmul.f32 %v1727, %v1733
    %v1735 = vadd.f32 %v1734, 0.18741608
    %v1736 = vmul.f32 %v1727, %v1735
    %v1737 = vadd.f32 %v1736, 1.1283791
    %v1738 = vmul.f32 %v563, %v1737
    %v1739 = vmul.f32 %v1727, 3.8918573e-05
    %v1740 = vadd.f32 %v1739, 0.001143296
    %v1741 = vmul.f32 %v1727, %v1740
    %v1742 = vadd.f32 %v1741, 0.014752088
    %v1743 = vmul.f32 %v1727, %v1742
    %v1744 = vadd.f32 %v1743, 0.112945676
    %v1745 = vmul.f32 %v1727, %v1744
    %v1746 = vadd.f32 %v1745, 0.4994258
    %v1747 = vmul.f32 %v1727, %v1746
    %v1748 = vadd.f32 %v1747, 1.0
    %v1749 = vrcp.pop %v1748
    %v1750 = vmul.f32 %v1748, %v1749
    %v1751 = vsub.f32 1.0, %v1750
    %v1752 = vmul.f32 %v1749, %v1751
    %v1753 = vadd.f32 %v1749, %v1752
    %vm1754 = vweird.f32 %v1748
    %vm1755 = vweird.f32 %v1749
    %vm1756 = vmor %vm1754, %vm1755
    %v1757 = vsel %vm1756, %v1749, %v1753
    %v1758 = vand.u32 2147483647, %v1748
    %vm1759 = vcmp.eq.f32.partialorder %v1758, 8.507059e+37
    %v1760 = vand.u32 %v1748, 2147483648
    %v1761 = vor.u32 1.1754944e-38, %v1760
    %v1762 = vsel %vm1759, %v1761, %v1757
    %v1763 = vmul.f32 %v1738, %v1762
    %v1764 = vmin.f32 %v1763, 1.0
    %v1765 = vmax.f32 %v1764, -1.0
    %v1766 = vmul.f32 %v564, %v564
    %v1767 = vmin.f32 16.0, %v1766
    %v1768 = vmul.f32 %v1767, 2.1237322e-06
    %v1769 = vadd.f32 %v1768, 0.00028619796
    %v1770 = vmul.f32 %v1767, %v1769
    %v1771 = vadd.f32 %v1770, 0.0036580483
    %v1772 = vmul.f32 %v1767, %v1771
    %v1773 = vadd.f32 %v1772, 0.05243302
    %v1774 = vmul.f32 %v1767, %v1773
    %v1775 = vadd.f32 %v1774, 0.18741608
    %v1776 = vmul.f32 %v1767, %v1775
    %v1777 = vadd.f32 %v1776, 1.1283791
    %v1778 = vmul.f32 %v564, %v1777
    %v1779 = vmul.f32 %v1767, 3.8918573e-05
    %v1780 = vadd.f32 %v1779, 0.001143296
    %v1781 = vmul.f32 %v1767, %v1780
    %v1782 = vadd.f32 %v1781, 0.014752088
    %v1783 = vmul.f32 %v1767, %v1782
    %v1784 = vadd.f32 %v1783, 0.112945676
    %v1785 = vmul.f32 %v1767, %v1784
    %v1786 = vadd.f32 %v1785, 0.4994258
    %v1787 = vmul.f32 %v1767, %v1786
    %v1788 = vadd.f32 %v1787, 1.0
    %v1789 = vrcp.pop %v1788
    %v1790 = vmul.f32 %v1788, %v1789
    %v1791 = vsub.f32 1.0, %v1790
    %v1792 = vmul.f32 %v1789, %v1791
    %v1793 = vadd.f32 %v1789, %v1792
    %vm1794 = vweird.f32 %v1788
    %vm1795 = vweird.f32 %v1789
    %vm1796 = vmor %vm1794, %vm1795
    %v1797 = vsel %vm1796, %v1789, %v1793
    %v1798 = vand.u32 2147483647, %v1788
    %vm1799 = vcmp.eq.f32.partialorder %v1798, 8.507059e+37
    %v1800 = vand.u32 %v1788, 2147483648
    %v1801 = vor.u32 1.1754944e-38, %v1800
    %v1802 = vsel %vm1799, %v1801, %v1797
    %v1803 = vmul.f32 %v1778, %v1802
    %v1804 = vmin.f32 %v1803, 1.0
    %v1805 = vmax.f32 %v1804, -1.0
    %v1806 = vmul.f32 %v565, %v565
    %v1807 = vmin.f32 16.0, %v1806
    %v1808 = vmul.f32 %v1807, 2.1237322e-06
    %v1809 = vadd.f32 %v1808, 0.00028619796
    %v1810 = vmul.f32 %v1807, %v1809
    %v1811 = vadd.f32 %v1810, 0.0036580483
    %v1812 = vmul.f32 %v1807, %v1811
    %v1813 = vadd.f32 %v1812, 0.05243302
    %v1814 = vmul.f32 %v1807, %v1813
    %v1815 = vadd.f32 %v1814, 0.18741608
    %v1816 = vmul.f32 %v1807, %v1815
    %v1817 = vadd.f32 %v1816, 1.1283791
    %v1818 = vmul.f32 %v565, %v1817
    %v1819 = vmul.f32 %v1807, 3.8918573e-05
    %v1820 = vadd.f32 %v1819, 0.001143296
    %v1821 = vmul.f32 %v1807, %v1820
    %v1822 = vadd.f32 %v1821, 0.014752088
    %v1823 = vmul.f32 %v1807, %v1822
    %v1824 = vadd.f32 %v1823, 0.112945676
    %v1825 = vmul.f32 %v1807, %v1824
    %v1826 = vadd.f32 %v1825, 0.4994258
    %v1827 = vmul.f32 %v1807, %v1826
    %v1828 = vadd.f32 %v1827, 1.0
    %v1829 = vrcp.pop %v1828
    %v1830 = vmul.f32 %v1828, %v1829
    %v1831 = vsub.f32 1.0, %v1830
    %v1832 = vmul.f32 %v1829, %v1831
    %v1833 = vadd.f32 %v1829, %v1832
    %vm1834 = vweird.f32 %v1828
    %vm1835 = vweird.f32 %v1829
    %vm1836 = vmor %vm1834, %vm1835
    %v1837 = vsel %vm1836, %v1829, %v1833
    %v1838 = vand.u32 2147483647, %v1828
    %vm1839 = vcmp.eq.f32.partialorder %v1838, 8.507059e+37
    %v1840 = vand.u32 %v1828, 2147483648
    %v1841 = vor.u32 1.1754944e-38, %v1840
    %v1842 = vsel %vm1839, %v1841, %v1837
    %v1843 = vmul.f32 %v1818, %v1842
    %v1844 = vmin.f32 %v1843, 1.0
    %v1845 = vmax.f32 %v1844, -1.0
    %v1846 = vadd.f32 %v605, 1.0
    %v1847 = vadd.f32 %v645, 1.0
    %v1848 = vadd.f32 %v685, 1.0
    %v1849 = vadd.f32 %v725, 1.0
    %v1850 = vadd.f32 %v765, 1.0
    %v1851 = vadd.f32 %v805, 1.0
    %v1852 = vadd.f32 %v845, 1.0
    %v1853 = vadd.f32 %v885, 1.0
    %v1854 = vadd.f32 %v925, 1.0
    %v1855 = vadd.f32 %v965, 1.0
    %v1856 = vadd.f32 %v1005, 1.0
    %v1857 = vadd.f32 %v1045, 1.0
    %v1858 = vadd.f32 %v1085, 1.0
    %v1859 = vadd.f32 %v1125, 1.0
    %v1860 = vadd.f32 %v1165, 1.0
    %v1861 = vadd.f32 %v1205, 1.0
    %v1862 = vadd.f32 %v1245, 1.0
    %v1863 = vadd.f32 %v1285, 1.0
    %v1864 = vadd.f32 %v1325, 1.0
    %v1865 = vadd.f32 %v1365, 1.0
    %v1866 = vadd.f32 %v1405, 1.0
    %v1867 = vadd.f32 %v1445, 1.0
    %v1868 = vadd.f32 %v1485, 1.0
    %v1869 = vadd.f32 %v1525, 1.0
    %v1870 = vadd.f32 %v1565, 1.0
    %v1871 = vadd.f32 %v1605, 1.0
    %v1872 = vadd.f32 %v1645, 1.0
    %v1873 = vadd.f32 %v1685, 1.0
    %v1874 = vadd.f32 %v1725, 1.0
    %v1875 = vadd.f32 %v1765, 1.0
    %v1876 = vadd.f32 %v1805, 1.0
    %v1877 = vadd.f32 %v1845, 1.0
    %v1878 = vmul.f32 %v502, %v1846
    %v1879 = vmul.f32 %v503, %v1847
    %v1880 = vmul.f32 %v504, %v1848
    %v1881 = vmul.f32 %v505, %v1849
    %v1882 = vmul.f32 %v506, %v1850
    %v1883 = vmul.f32 %v507, %v1851
    %v1884 = vmul.f32 %v508, %v1852
    %v1885 = vmul.f32 %v509, %v1853
    %v1886 = vmul.f32 %v510, %v1854
    %v1887 = vmul.f32 %v511, %v1855
    %v1888 = vmul.f32 %v512, %v1856
    %v1889 = vmul.f32 %v513, %v1857
    %v1890 = vmul.f32 %v514, %v1858
    %v1891 = vmul.f32 %v515, %v1859
    %v1892 = vmul.f32 %v516, %v1860
    %v1893 = vmul.f32 %v517, %v1861
    %v1894 = vmul.f32 %v518, %v1862
    %v1895 = vmul.f32 %v519, %v1863
    %v1896 = vmul.f32 %v520, %v1864
    %v1897 = vmul.f32 %v521, %v1865
    %v1898 = vmul.f32 %v522, %v1866
    %v1899 = vmul.f32 %v523, %v1867
    %v1900 = vmul.f32 %v524, %v1868
    %v1901 = vmul.f32 %v525, %v1869
    %v1902 = vmul.f32 %v526, %v1870
    %v1903 = vmul.f32 %v527, %v1871
    %v1904 = vmul.f32 %v528, %v1872
    %v1905 = vmul.f32 %v529, %v1873
    %v1906 = vmul.f32 %v530, %v1874
    %v1907 = vmul.f32 %v531, %v1875
    %v1908 = vmul.f32 %v532, %v1876
    %v1909 = vmul.f32 %v533, %v1877
    %s1910 = smul.u32 0, 256
    %s1911 = sshra.s32 %s1910, 7
    %s1912 = sand.u32 %s1910, 127
    %s1913 = smul.addr %s1911, 8
    %s1914 = scalar_lea.vmem [#allocation2], %s1913
    %v1915 = vld [vmem:[%s1914] sm:$0xff]
    %v1916 = vld [vmem:[%s1914 + $0x8] sm:$0xff]
    %v1917 = vld [vmem:[%s1914 + $0x10] sm:$0xff]
    %v1918 = vld [vmem:[%s1914 + $0x18] sm:$0xff]
    %v1919 = vld [vmem:[%s1914 + $0x20] sm:$0xff]
    %v1920 = vld [vmem:[%s1914 + $0x28] sm:$0xff]
    %v1921 = vld [vmem:[%s1914 + $0x30] sm:$0xff]
    %v1922 = vld [vmem:[%s1914 + $0x38] sm:$0xff]
    %v1923 = vld [vmem:[%s1914 + $0x40] sm:$0xff]
    %v1924 = vld [vmem:[%s1914 + $0x48] sm:$0xff]
    %v1925 = vld [vmem:[%s1914 + $0x50] sm:$0xff]
    %v1926 = vld [vmem:[%s1914 + $0x58] sm:$0xff]
    %v1927 = vld [vmem:[%s1914 + $0x60] sm:$0xff]
    %v1928 = vld [vmem:[%s1914 + $0x68] sm:$0xff]
    %v1929 = vld [vmem:[%s1914 + $0x70] sm:$0xff]
    %v1930 = vld [vmem:[%s1914 + $0x78] sm:$0xff]
    %v1931 = vld [vmem:[%s1914 + $0x80] sm:$0xff]
    %v1932 = vld [vmem:[%s1914 + $0x88] sm:$0xff]
    %v1933 = vld [vmem:[%s1914 + $0x90] sm:$0xff]
    %v1934 = vld [vmem:[%s1914 + $0x98] sm:$0xff]
    %v1935 = vld [vmem:[%s1914 + $0xa0] sm:$0xff]
    %v1936 = vld [vmem:[%s1914 + $0xa8] sm:$0xff]
    %v1937 = vld [vmem:[%s1914 + $0xb0] sm:$0xff]
    %v1938 = vld [vmem:[%s1914 + $0xb8] sm:$0xff]
    %v1939 = vld [vmem:[%s1914 + $0xc0] sm:$0xff]
    %v1940 = vld [vmem:[%s1914 + $0xc8] sm:$0xff]
    %v1941 = vld [vmem:[%s1914 + $0xd0] sm:$0xff]
    %v1942 = vld [vmem:[%s1914 + $0xd8] sm:$0xff]
    %v1943 = vld [vmem:[%s1914 + $0xe0] sm:$0xff]
    %v1944 = vld [vmem:[%s1914 + $0xe8] sm:$0xff]
    %v1945 = vld [vmem:[%s1914 + $0xf0] sm:$0xff]
    %v1946 = vld [vmem:[%s1914 + $0xf8] sm:$0xff]
    %v1947 = vadd.f32 %v1915, %v1878
    %v1948 = vadd.f32 %v1916, %v1879
    %v1949 = vadd.f32 %v1917, %v1880
    %v1950 = vadd.f32 %v1918, %v1881
    %v1951 = vadd.f32 %v1919, %v1882
    %v1952 = vadd.f32 %v1920, %v1883
    %v1953 = vadd.f32 %v1921, %v1884
    %v1954 = vadd.f32 %v1922, %v1885
    %v1955 = vadd.f32 %v1923, %v1886
    %v1956 = vadd.f32 %v1924, %v1887
    %v1957 = vadd.f32 %v1925, %v1888
    %v1958 = vadd.f32 %v1926, %v1889
    %v1959 = vadd.f32 %v1927, %v1890
    %v1960 = vadd.f32 %v1928, %v1891
    %v1961 = vadd.f32 %v1929, %v1892
    %v1962 = vadd.f32 %v1930, %v1893
    %v1963 = vadd.f32 %v1931, %v1894
    %v1964 = vadd.f32 %v1932, %v1895
    %v1965 = vadd.f32 %v1933, %v1896
    %v1966 = vadd.f32 %v1934, %v1897
    %v1967 = vadd.f32 %v1935, %v1898
    %v1968 = vadd.f32 %v1936, %v1899
    %v1969 = vadd.f32 %v1937, %v1900
    %v1970 = vadd.f32 %v1938, %v1901
    %v1971 = vadd.f32 %v1939, %v1902
    %v1972 = vadd.f32 %v1940, %v1903
    %v1973 = vadd.f32 %v1941, %v1904
    %v1974 = vadd.f32 %v1942, %v1905
    %v1975 = vadd.f32 %v1943, %v1906
    %v1976 = vadd.f32 %v1944, %v1907
    %v1977 = vadd.f32 %v1945, %v1908
    %v1978 = vadd.f32 %v1946, %v1909
    %1979 = vst [vmem:[#allocation8] sm:$0xff] %v1947
    %1980 = vst [vmem:[#allocation8 + $0x8] sm:$0xff] %v1948
    %1981 = vst [vmem:[#allocation8 + $0x10] sm:$0xff] %v1949
    %1982 = vst [vmem:[#allocation8 + $0x18] sm:$0xff] %v1950
    %1983 = vst [vmem:[#allocation8 + $0x20] sm:$0xff] %v1951
    %1984 = vst [vmem:[#allocation8 + $0x28] sm:$0xff] %v1952
    %1985 = vst [vmem:[#allocation8 + $0x30] sm:$0xff] %v1953
    %1986 = vst [vmem:[#allocation8 + $0x38] sm:$0xff] %v1954
    %1987 = vst [vmem:[#allocation8 + $0x40] sm:$0xff] %v1955
    %1988 = vst [vmem:[#allocation8 + $0x48] sm:$0xff] %v1956
    %1989 = vst [vmem:[#allocation8 + $0x50] sm:$0xff] %v1957
    %1990 = vst [vmem:[#allocation8 + $0x58] sm:$0xff] %v1958
    %1991 = vst [vmem:[#allocation8 + $0x60] sm:$0xff] %v1959
    %1992 = vst [vmem:[#allocation8 + $0x68] sm:$0xff] %v1960
    %1993 = vst [vmem:[#allocation8 + $0x70] sm:$0xff] %v1961
    %1994 = vst [vmem:[#allocation8 + $0x78] sm:$0xff] %v1962
    %1995 = vst [vmem:[#allocation8 + $0x80] sm:$0xff] %v1963
    %1996 = vst [vmem:[#allocation8 + $0x88] sm:$0xff] %v1964
    %1997 = vst [vmem:[#allocation8 + $0x90] sm:$0xff] %v1965
    %1998 = vst [vmem:[#allocation8 + $0x98] sm:$0xff] %v1966
    %1999 = vst [vmem:[#allocation8 + $0xa0] sm:$0xff] %v1967
    %2000 = vst [vmem:[#allocation8 + $0xa8] sm:$0xff] %v1968
    %2001 = vst [vmem:[#allocation8 + $0xb0] sm:$0xff] %v1969
    %2002 = vst [vmem:[#allocation8 + $0xb8] sm:$0xff] %v1970
    %2003 = vst [vmem:[#allocation8 + $0xc0] sm:$0xff] %v1971
    %2004 = vst [vmem:[#allocation8 + $0xc8] sm:$0xff] %v1972
    %2005 = vst [vmem:[#allocation8 + $0xd0] sm:$0xff] %v1973
    %2006 = vst [vmem:[#allocation8 + $0xd8] sm:$0xff] %v1974
    %2007 = vst [vmem:[#allocation8 + $0xe0] sm:$0xff] %v1975
    %2008 = vst [vmem:[#allocation8 + $0xe8] sm:$0xff] %v1976
    %2009 = vst [vmem:[#allocation8 + $0xf0] sm:$0xff] %v1977
    %2010 = vst [vmem:[#allocation8 + $0xf8] sm:$0xff] %v1978
    // Predicated region
    $region26: #{tpu_custom_call.1} parent=1 // pred_check
      _
    $region27: #{tpu_custom_call.1} parent=1 // pred_check_branch
      %2012 = sbr.rel (0) target = $region29
    $region28: #{tpu_custom_call.1} parent=1 // pred_region
      %2014 = vsyncadd [#allocation4], 0
      %s2015 = sshll.u32 [#allocation8], 4
      %s2016 = int_to_ptr.vmem [resolvable:$true] %s2015
      %s2017 = sshll.u32 %s3, 4
      %s2018 = int_to_ptr.hbm [resolvable:$true] %s2017
      %2023 = dma.vmem_to_hbm [thread:$0]  %s2016, 4096, %s2018, [#allocation4], 256, 256, 16
    $region29: #{tpu_custom_call.1} parent=1 // pred_fallthru
      _
    // Predicated region
    $region30: #{tpu_custom_call.1} parent=1 // pred_check
      _
    $region31: #{tpu_custom_call.1} parent=1 // pred_check_branch
      %2025 = sbr.rel (0) target = $region33
    $region32: #{tpu_custom_call.1} parent=1 // pred_region
      %2027 = dma.done [#allocation4], 4096
    $region33: #{tpu_custom_call.1} parent=1 // pred_fallthru
      _
    %2028 = vsyncpa [#allocation3], 1
    %2029 = vsyncpa [#allocation6], 1
    %2030 = vsyncpa [#allocation4], 1

// kernel: tpu_custom_call.1
$region0: #{tpu_custom_call.1}
  #allocation0 [shape = 'u32[]', space=smem, size = 0x4, offset = 0x4, fixed_abs, tag = 'smem constant byte address 0x4 - core index']
  #allocation1 [shape = 'u32[72,128]{1,0:T(1,128)}', space=vmem, size = 0x9000, scoped, tag = 'internal scratch']
  %s0 = inlined_call_operand.hbm [shape: f32[128,256], index: 0, kind: input, shape index: {}]
  %s1 = inlined_call_operand.hbm [shape: bf16[256,256], index: 1, kind: input, shape index: {}]
  %s2 = inlined_call_operand.hbm [shape: f32[1,256], index: 2, kind: input, shape index: {}]
  %s3 = inlined_call_operand.hbm [shape: f32[128,256], index: 3, kind: output, shape index: {}]
  %s4 = sld [smem:[#allocation0]]
  $region34: #{tpu_custom_call.1} parent=0
    _
  %s6 = ssub.s32 1, %s4
  %s7 = scalar_select 0, %s6, %s4
  $region1: #{tpu_custom_call.1} parent=0
    #allocation2 [shape = 'u8[131072]{0}', space=vmem, size = 0x20000, scoped, tag = 'input window, operand 0, single buffered']
    #allocation3 [shape = 's32[1]{0}', space=sflag, size = 0x4, scoped, tag = 'scoped memory for tpu_custom_call.1']
    #allocation4 [shape = 's32[1]{0}', space=sflag, size = 0x4, scoped, tag = 'scoped memory for tpu_custom_call.1']
    #allocation5 [shape = 'u8[131072]{0}', space=vmem, size = 0x20000, scoped, tag = 'input window, operand 1, single buffered']
    #allocation6 [shape = 's32[1]{0}', space=sflag, size = 0x4, scoped, tag = 'scoped memory for tpu_custom_call.1']
    #allocation7 [shape = 'u8[1024]{0}', space=vmem, size = 0x400, scoped, tag = 'input window, operand 2, single buffered']
    #allocation8 [shape = 'u8[131072]{0}', space=vmem, size = 0x20000, scoped, tag = 'output window, operand 0, single buffered']
    %8 = vsyncpa [#allocation3], 0
    %9 = vsyncpa [#allocation6], 0
    %10 = vsyncpa [#allocation4], 0
    // Predicated region
    $region2: #{tpu_custom_call.1} parent=1 // pred_check
      _
    $region3: #{tpu_custom_call.1} parent=1 // pred_check_branch
      %12 = sbr.rel (0) target = $region5
    $region4: #{tpu_custom_call.1} parent=1 // pred_region
      %14 = vsyncadd [#allocation3], 0
      %s15 = sshll.u32 %s0, 4
      %s16 = int_to_ptr.hbm [resolvable:$true] %s15
      %s17 = sshll.u32 [#allocation2], 4
      %s18 = int_to_ptr.vmem [resolvable:$true] %s17
      %23 = dma.hbm_to_vmem [thread:$0]  %s16, 4096, %s18, [#allocation3], 256, 256, 16
    $region5: #{tpu_custom_call.1} parent=1 // pred_fallthru
      _
    // Predicated region
    $region6: #{tpu_custom_call.1} parent=1 // pred_check
      _
    $region7: #{tpu_custom_call.1} parent=1 // pred_check_branch
      %25 = sbr.rel (0) target = $region9
    $region8: #{tpu_custom_call.1} parent=1 // pred_region
      %27 = vsyncadd [#allocation6], 0
      %s28 = sshll.u32 %s1, 4
      %s29 = int_to_ptr.hbm [resolvable:$true] %s28
      %s30 = sshll.u32 [#allocation5], 4
      %s31 = int_to_ptr.vmem [resolvable:$true] %s30
      %36 = dma.hbm_to_vmem [thread:$0]  %s29, 4096, %s31, [#allocation6], 128, 128, 8
    $region9: #{tpu_custom_call.1} parent=1 // pred_fallthru
      _
    // Predicated region
    $region10: #{tpu_custom_call.1} parent=1 // pred_check
      _
    $region11: #{tpu_custom_call.1} parent=1 // pred_check_branch
      %38 = sbr.rel (0) target = $region13
    $region12: #{tpu_custom_call.1} parent=1 // pred_region
      %40 = vsyncadd [#allocation6], 0
      %s42 = sshll.u32 %s2, 4
      %s43 = int_to_ptr.hbm [resolvable:$true] %s42
      %s44 = sshll.u32 [#allocation7], 4
      %s45 = int_to_ptr.vmem [resolvable:$true] %s44
      %47 = dma.hbm_to_vmem [thread:$0]  %s43, 32, %s45, [#allocation6]
    $region13: #{tpu_custom_call.1} parent=1 // pred_fallthru
      _
    // Predicated region
    $region14: #{tpu_custom_call.1} parent=1 // pred_check
      _
    $region15: #{tpu_custom_call.1} parent=1 // pred_check_branch
      %49 = sbr.rel (0) target = $region17
    $region16: #{tpu_custom_call.1} parent=1 // pred_region
      %51 = dma.done [#allocation3], 4096
    $region17: #{tpu_custom_call.1} parent=1 // pred_fallthru
      _
    // Predicated region
    $region18: #{tpu_custom_call.1} parent=1 // pred_check
      _
    $region19: #{tpu_custom_call.1} parent=1 // pred_check_branch
      %53 = sbr.rel (0) target = $region21
    $region20: #{tpu_custom_call.1} parent=1 // pred_region
      %55 = dma.done [#allocation6], 4096
    $region21: #{tpu_custom_call.1} parent=1 // pred_fallthru
      _
    // Predicated region
    $region22: #{tpu_custom_call.1} parent=1 // pred_check
      _
    $region23: #{tpu_custom_call.1} parent=1 // pred_check_branch
      %57 = sbr.rel (0) target = $region25
    $region24: #{tpu_custom_call.1} parent=1 // pred_region
      %59 = dma.done [#allocation6], 32
    $region25: #{tpu_custom_call.1} parent=1 // pred_fallthru
      _
    %v60 = vld [vmem:[#allocation2] sm:$0xff]
    %v61 = vld [vmem:[#allocation2 + $0x8] sm:$0xff]
    %v62 = vld [vmem:[#allocation2 + $0x10] sm:$0xff]
    %v63 = vld [vmem:[#allocation2 + $0x18] sm:$0xff]
    %v64 = vld [vmem:[#allocation2 + $0x20] sm:$0xff]
    %v65 = vld [vmem:[#allocation2 + $0x28] sm:$0xff]
    %v66 = vld [vmem:[#allocation2 + $0x30] sm:$0xff]
    %v67 = vld [vmem:[#allocation2 + $0x38] sm:$0xff]
    %v68 = vld [vmem:[#allocation2 + $0x40] sm:$0xff]
    %v69 = vld [vmem:[#allocation2 + $0x48] sm:$0xff]
    %v70 = vld [vmem:[#allocation2 + $0x50] sm:$0xff]
    %v71 = vld [vmem:[#allocation2 + $0x58] sm:$0xff]
    %v72 = vld [vmem:[#allocation2 + $0x60] sm:$0xff]
    %v73 = vld [vmem:[#allocation2 + $0x68] sm:$0xff]
    %v74 = vld [vmem:[#allocation2 + $0x70] sm:$0xff]
    %v75 = vld [vmem:[#allocation2 + $0x78] sm:$0xff]
    %v76 = vld [vmem:[#allocation2 + $0x80] sm:$0xff]
    %v77 = vld [vmem:[#allocation2 + $0x88] sm:$0xff]
    %v78 = vld [vmem:[#allocation2 + $0x90] sm:$0xff]
    %v79 = vld [vmem:[#allocation2 + $0x98] sm:$0xff]
    %v80 = vld [vmem:[#allocation2 + $0xa0] sm:$0xff]
    %v81 = vld [vmem:[#allocation2 + $0xa8] sm:$0xff]
    %v82 = vld [vmem:[#allocation2 + $0xb0] sm:$0xff]
    %v83 = vld [vmem:[#allocation2 + $0xb8] sm:$0xff]
    %v84 = vld [vmem:[#allocation2 + $0xc0] sm:$0xff]
    %v85 = vld [vmem:[#allocation2 + $0xc8] sm:$0xff]
    %v86 = vld [vmem:[#allocation2 + $0xd0] sm:$0xff]
    %v87 = vld [vmem:[#allocation2 + $0xd8] sm:$0xff]
    %v88 = vld [vmem:[#allocation2 + $0xe0] sm:$0xff]
    %v89 = vld [vmem:[#allocation2 + $0xe8] sm:$0xff]
    %v90 = vld [vmem:[#allocation2 + $0xf0] sm:$0xff]
    %v91 = vld [vmem:[#allocation2 + $0xf8] sm:$0xff]
    %v92 = vpack.c.bf16 %v62, %v60
    %v93 = vpack.c.bf16 %v63, %v61
    %v94 = vpack.c.bf16 %v66, %v64
    %v95 = vpack.c.bf16 %v67, %v65
    %v96 = vpack.c.bf16 %v70, %v68
    %v97 = vpack.c.bf16 %v71, %v69
    %v98 = vpack.c.bf16 %v74, %v72
    %v99 = vpack.c.bf16 %v75, %v73
    %v100 = vpack.c.bf16 %v78, %v76
    %v101 = vpack.c.bf16 %v79, %v77
    %v102 = vpack.c.bf16 %v82, %v80
    %v103 = vpack.c.bf16 %v83, %v81
    %v104 = vpack.c.bf16 %v86, %v84
    %v105 = vpack.c.bf16 %v87, %v85
    %v106 = vpack.c.bf16 %v90, %v88
    %v107 = vpack.c.bf16 %v91, %v89
    %v108 = vld [vmem:[#allocation5] sm:$0xff]
    %v109 = vld [vmem:[#allocation5 + $0x8] sm:$0xff]
    %v110 = vld [vmem:[#allocation5 + $0x10] sm:$0xff]
    %v111 = vld [vmem:[#allocation5 + $0x18] sm:$0xff]
    %v112 = vld [vmem:[#allocation5 + $0x20] sm:$0xff]
    %v113 = vld [vmem:[#allocation5 + $0x28] sm:$0xff]
    %v114 = vld [vmem:[#allocation5 + $0x30] sm:$0xff]
    %v115 = vld [vmem:[#allocation5 + $0x38] sm:$0xff]
    %v116 = vld [vmem:[#allocation5 + $0x40] sm:$0xff]
    %v117 = vld [vmem:[#allocation5 + $0x48] sm:$0xff]
    %v118 = vld [vmem:[#allocation5 + $0x50] sm:$0xff]
    %v119 = vld [vmem:[#allocation5 + $0x58] sm:$0xff]
    %v120 = vld [vmem:[#allocation5 + $0x60] sm:$0xff]
    %v121 = vld [vmem:[#allocation5 + $0x68] sm:$0xff]
    %v122 = vld [vmem:[#allocation5 + $0x70] sm:$0xff]
    %v123 = vld [vmem:[#allocation5 + $0x78] sm:$0xff]
    %v124 = vld [vmem:[#allocation5 + $0x80] sm:$0xff]
    %v125 = vld [vmem:[#allocation5 + $0x88] sm:$0xff]
    %v126 = vld [vmem:[#allocation5 + $0x90] sm:$0xff]
    %v127 = vld [vmem:[#allocation5 + $0x98] sm:$0xff]
    %v128 = vld [vmem:[#allocation5 + $0xa0] sm:$0xff]
    %v129 = vld [vmem:[#allocation5 + $0xa8] sm:$0xff]
    %v130 = vld [vmem:[#allocation5 + $0xb0] sm:$0xff]
    %v131 = vld [vmem:[#allocation5 + $0xb8] sm:$0xff]
    %v132 = vld [vmem:[#allocation5 + $0xc0] sm:$0xff]
    %v133 = vld [vmem:[#allocation5 + $0xc8] sm:$0xff]
    %v134 = vld [vmem:[#allocation5 + $0xd0] sm:$0xff]
    %v135 = vld [vmem:[#allocation5 + $0xd8] sm:$0xff]
    %v136 = vld [vmem:[#allocation5 + $0xe0] sm:$0xff]
    %v137 = vld [vmem:[#allocation5 + $0xe8] sm:$0xff]
    %v138 = vld [vmem:[#allocation5 + $0xf0] sm:$0xff]
    %v139 = vld [vmem:[#allocation5 + $0xf8] sm:$0xff]
    %v140 = vld [vmem:[#allocation7] sm:$0x3]
    %v142 = vperm.slane %v140, 0
    %v143 = vperm.slane %v140, 1
    %v178 = vunpack.c.l.b16 %v108
    %v179 = vunpack.c.h.b16 %v108
    %v180 = vunpack.c.l.b16 %v109
    %v181 = vunpack.c.h.b16 %v109
    %v182 = vunpack.c.l.b16 %v110
    %v183 = vunpack.c.h.b16 %v110
    %v184 = vunpack.c.l.b16 %v111
    %v185 = vunpack.c.h.b16 %v111
    %v186 = vunpack.c.l.b16 %v112
    %v187 = vunpack.c.h.b16 %v112
    %v188 = vunpack.c.l.b16 %v113
    %v189 = vunpack.c.h.b16 %v113
    %v190 = vunpack.c.l.b16 %v114
    %v191 = vunpack.c.h.b16 %v114
    %v192 = vunpack.c.l.b16 %v115
    %v193 = vunpack.c.h.b16 %v115
    %v194 = vunpack.c.l.b16 %v116
    %v195 = vunpack.c.h.b16 %v116
    %v196 = vunpack.c.l.b16 %v117
    %v197 = vunpack.c.h.b16 %v117
    %v198 = vunpack.c.l.b16 %v118
    %v199 = vunpack.c.h.b16 %v118
    %v200 = vunpack.c.l.b16 %v119
    %v201 = vunpack.c.h.b16 %v119
    %v202 = vunpack.c.l.b16 %v120
    %v203 = vunpack.c.h.b16 %v120
    %v204 = vunpack.c.l.b16 %v121
    %v205 = vunpack.c.h.b16 %v121
    %v206 = vunpack.c.l.b16 %v122
    %v207 = vunpack.c.h.b16 %v122
    %v208 = vunpack.c.l.b16 %v123
    %v209 = vunpack.c.h.b16 %v123
    %v210 = vunpack.c.l.b16 %v124
    %v211 = vunpack.c.h.b16 %v124
    %v212 = vunpack.c.l.b16 %v125
    %v213 = vunpack.c.h.b16 %v125
    %v214 = vunpack.c.l.b16 %v126
    %v215 = vunpack.c.h.b16 %v126
    %v216 = vunpack.c.l.b16 %v127
    %v217 = vunpack.c.h.b16 %v127
    %v218 = vunpack.c.l.b16 %v128
    %v219 = vunpack.c.h.b16 %v128
    %v220 = vunpack.c.l.b16 %v129
    %v221 = vunpack.c.h.b16 %v129
    %v222 = vunpack.c.l.b16 %v130
    %v223 = vunpack.c.h.b16 %v130
    %v224 = vunpack.c.l.b16 %v131
    %v225 = vunpack.c.h.b16 %v131
    %v226 = vunpack.c.l.b16 %v132
    %v227 = vunpack.c.h.b16 %v132
    %v228 = vunpack.c.l.b16 %v133
    %v229 = vunpack.c.h.b16 %v133
    %v230 = vunpack.c.l.b16 %v134
    %v231 = vunpack.c.h.b16 %v134
    %v232 = vunpack.c.l.b16 %v135
    %v233 = vunpack.c.h.b16 %v135
    %v234 = vunpack.c.l.b16 %v136
    %v235 = vunpack.c.h.b16 %v136
    %v236 = vunpack.c.l.b16 %v137
    %v237 = vunpack.c.h.b16 %v137
    %v238 = vunpack.c.l.b16 %v138
    %v239 = vunpack.c.h.b16 %v138
    %v240 = vunpack.c.l.b16 %v139
    %v241 = vunpack.c.h.b16 %v139
    %v242 = vpack.c.b16 %v180, %v178
    %v243 = vpack.c.b16 %v181, %v179
    %v244 = vpack.c.b16 %v184, %v182
    %v245 = vpack.c.b16 %v185, %v183
    %v246 = vpack.c.b16 %v188, %v186
    %v247 = vpack.c.b16 %v189, %v187
    %v248 = vpack.c.b16 %v192, %v190
    %v249 = vpack.c.b16 %v193, %v191
    %v250 = vpack.c.b16 %v196, %v194
    %v251 = vpack.c.b16 %v197, %v195
    %v252 = vpack.c.b16 %v200, %v198
    %v253 = vpack.c.b16 %v201, %v199
    %v254 = vpack.c.b16 %v204, %v202
    %v255 = vpack.c.b16 %v205, %v203
    %v256 = vpack.c.b16 %v208, %v206
    %v257 = vpack.c.b16 %v209, %v207
    %v258 = vpack.c.b16 %v212, %v210
    %v259 = vpack.c.b16 %v213, %v211
    %v260 = vpack.c.b16 %v216, %v214
    %v261 = vpack.c.b16 %v217, %v215
    %v262 = vpack.c.b16 %v220, %v218
    %v263 = vpack.c.b16 %v221, %v219
    %v264 = vpack.c.b16 %v224, %v222
    %v265 = vpack.c.b16 %v225, %v223
    %v266 = vpack.c.b16 %v228, %v226
    %v267 = vpack.c.b16 %v229, %v227
    %v268 = vpack.c.b16 %v232, %v230
    %v269 = vpack.c.b16 %v233, %v231
    %v270 = vpack.c.b16 %v236, %v234
    %v271 = vpack.c.b16 %v237, %v235
    %v272 = vpack.c.b16 %v240, %v238
    %v273 = vpack.c.b16 %v241, %v239
    %306 = vmatpush.bf16.msra.mxu0 %v256
    %307 = vmatpush.bf16.msra.mxu0 %v254
    %308 = vmatpush.bf16.msra.mxu0 %v252
    %309 = vmatpush.bf16.msra.mxu0 %v250
    %310 = vmatpush.bf16.msra.mxu0 %v248
    %311 = vmatpush.bf16.msra.mxu0 %v246
    %312 = vmatpush.bf16.msra.mxu0 %v244
    %313 = vmatpush.bf16.msra.mxu0 %v242
    %314 = vmatmul.bf16.gmra.mxu0 %v92
    %v315 = vpop.f32.mrf.mxu0
    %v316 = vadd.f32 %v142, %v315
    %v317 = vpop.f32.mrf.mxu0
    %v318 = vadd.f32 %v142, %v317
    %319 = vmatmul.bf16.gmra.mxu0 %v94
    %v320 = vpop.f32.mrf.mxu0
    %v321 = vadd.f32 %v142, %v320
    %v322 = vpop.f32.mrf.mxu0
    %v323 = vadd.f32 %v142, %v322
    %324 = vmatmul.bf16.gmra.mxu0 %v96
    %v325 = vpop.f32.mrf.mxu0
    %v326 = vadd.f32 %v142, %v325
    %v327 = vpop.f32.mrf.mxu0
    %v328 = vadd.f32 %v142, %v327
    %329 = vmatmul.bf16.gmra.mxu0 %v98
    %v330 = vpop.f32.mrf.mxu0
    %v331 = vadd.f32 %v142, %v330
    %v332 = vpop.f32.mrf.mxu0
    %v333 = vadd.f32 %v142, %v332
    %334 = vmatmul.bf16.gmra.mxu0 %v100
    %v335 = vpop.f32.mrf.mxu0
    %v336 = vadd.f32 %v142, %v335
    %v337 = vpop.f32.mrf.mxu0
    %v338 = vadd.f32 %v142, %v337
    %339 = vmatmul.bf16.gmra.mxu0 %v102
    %v340 = vpop.f32.mrf.mxu0
    %v341 = vadd.f32 %v142, %v340
    %v342 = vpop.f32.mrf.mxu0
    %v343 = vadd.f32 %v142, %v342
    %344 = vmatmul.bf16.gmra.mxu0 %v104
    %v345 = vpop.f32.mrf.mxu0
    %v346 = vadd.f32 %v142, %v345
    %v347 = vpop.f32.mrf.mxu0
    %v348 = vadd.f32 %v142, %v347
    %349 = vmatmul.bf16.gmra.mxu0 %v106
    %v350 = vpop.f32.mrf.mxu0
    %v351 = vadd.f32 %v142, %v350
    %v352 = vpop.f32.mrf.mxu0
    %v353 = vadd.f32 %v142, %v352
    %354 = vdwg.mxu0
    %355 = vmatpush.bf16.msra.mxu0 %v272
    %356 = vmatpush.bf16.msra.mxu0 %v270
    %357 = vmatpush.bf16.msra.mxu0 %v268
    %358 = vmatpush.bf16.msra.mxu0 %v266
    %359 = vmatpush.bf16.msra.mxu0 %v264
    %360 = vmatpush.bf16.msra.mxu0 %v262
    %361 = vmatpush.bf16.msra.mxu0 %v260
    %362 = vmatpush.bf16.msra.mxu0 %v258
    %363 = vmatmul.bf16.gmra.mxu0 %v93
    %v364 = vpop.f32.mrf.mxu0
    %v365 = vadd.f32 %v316, %v364
    %v366 = vpop.f32.mrf.mxu0
    %v367 = vadd.f32 %v318, %v366
    %368 = vmatmul.bf16.gmra.mxu0 %v95
    %v369 = vpop.f32.mrf.mxu0
    %v370 = vadd.f32 %v321, %v369
    %v371 = vpop.f32.mrf.mxu0
    %v372 = vadd.f32 %v323, %v371
    %373 = vmatmul.bf16.gmra.mxu0 %v97
    %v374 = vpop.f32.mrf.mxu0
    %v375 = vadd.f32 %v326, %v374
    %v376 = vpop.f32.mrf.mxu0
    %v377 = vadd.f32 %v328, %v376
    %378 = vmatmul.bf16.gmra.mxu0 %v99
    %v379 = vpop.f32.mrf.mxu0
    %v380 = vadd.f32 %v331, %v379
    %v381 = vpop.f32.mrf.mxu0
    %v382 = vadd.f32 %v333, %v381
    %383 = vmatmul.bf16.gmra.mxu0 %v101
    %v384 = vpop.f32.mrf.mxu0
    %v385 = vadd.f32 %v336, %v384
    %v386 = vpop.f32.mrf.mxu0
    %v387 = vadd.f32 %v338, %v386
    %388 = vmatmul.bf16.gmra.mxu0 %v103
    %v389 = vpop.f32.mrf.mxu0
    %v390 = vadd.f32 %v341, %v389
    %v391 = vpop.f32.mrf.mxu0
    %v392 = vadd.f32 %v343, %v391
    %393 = vmatmul.bf16.gmra.mxu0 %v105
    %v394 = vpop.f32.mrf.mxu0
    %v395 = vadd.f32 %v346, %v394
    %v396 = vpop.f32.mrf.mxu0
    %v397 = vadd.f32 %v348, %v396
    %398 = vmatmul.bf16.gmra.mxu0 %v107
    %v399 = vpop.f32.mrf.mxu0
    %v400 = vadd.f32 %v351, %v399
    %v401 = vpop.f32.mrf.mxu0
    %v402 = vadd.f32 %v353, %v401
    %403 = vdwg.mxu0
    %404 = vmatpush.bf16.msra.mxu0 %v257
    %405 = vmatpush.bf16.msra.mxu0 %v255
    %406 = vmatpush.bf16.msra.mxu0 %v253
    %407 = vmatpush.bf16.msra.mxu0 %v251
    %408 = vmatpush.bf16.msra.mxu0 %v249
    %409 = vmatpush.bf16.msra.mxu0 %v247
    %410 = vmatpush.bf16.msra.mxu0 %v245
    %411 = vmatpush.bf16.msra.mxu0 %v243
    %412 = vmatmul.bf16.gmra.mxu0 %v92
    %v413 = vpop.f32.mrf.mxu0
    %v414 = vadd.f32 %v143, %v413
    %v415 = vpop.f32.mrf.mxu0
    %v416 = vadd.f32 %v143, %v415
    %417 = vmatmul.bf16.gmra.mxu0 %v94
    %v418 = vpop.f32.mrf.mxu0
    %v419 = vadd.f32 %v143, %v418
    %v420 = vpop.f32.mrf.mxu0
    %v421 = vadd.f32 %v143, %v420
    %422 = vmatmul.bf16.gmra.mxu0 %v96
    %v423 = vpop.f32.mrf.mxu0
    %v424 = vadd.f32 %v143, %v423
    %v425 = vpop.f32.mrf.mxu0
    %v426 = vadd.f32 %v143, %v425
    %427 = vmatmul.bf16.gmra.mxu0 %v98
    %v428 = vpop.f32.mrf.mxu0
    %v429 = vadd.f32 %v143, %v428
    %v430 = vpop.f32.mrf.mxu0
    %v431 = vadd.f32 %v143, %v430
    %432 = vmatmul.bf16.gmra.mxu0 %v100
    %v433 = vpop.f32.mrf.mxu0
    %v434 = vadd.f32 %v143, %v433
    %v435 = vpop.f32.mrf.mxu0
    %v436 = vadd.f32 %v143, %v435
    %437 = vmatmul.bf16.gmra.mxu0 %v102
    %v438 = vpop.f32.mrf.mxu0
    %v439 = vadd.f32 %v143, %v438
    %v440 = vpop.f32.mrf.mxu0
    %v441 = vadd.f32 %v143, %v440
    %442 = vmatmul.bf16.gmra.mxu0 %v104
    %v443 = vpop.f32.mrf.mxu0
    %v444 = vadd.f32 %v143, %v443
    %v445 = vpop.f32.mrf.mxu0
    %v446 = vadd.f32 %v143, %v445
    %447 = vmatmul.bf16.gmra.mxu0 %v106
    %v448 = vpop.f32.mrf.mxu0
    %v449 = vadd.f32 %v143, %v448
    %v450 = vpop.f32.mrf.mxu0
    %v451 = vadd.f32 %v143, %v450
    %452 = vdwg.mxu0
    %453 = vmatpush.bf16.msra.mxu0 %v273
    %454 = vmatpush.bf16.msra.mxu0 %v271
    %455 = vmatpush.bf16.msra.mxu0 %v269
    %456 = vmatpush.bf16.msra.mxu0 %v267
    %457 = vmatpush.bf16.msra.mxu0 %v265
    %458 = vmatpush.bf16.msra.mxu0 %v263
    %459 = vmatpush.bf16.msra.mxu0 %v261
    %460 = vmatpush.bf16.msra.mxu0 %v259
    %461 = vmatmul.bf16.gmra.mxu0 %v93
    %v462 = vpop.f32.mrf.mxu0
    %v463 = vadd.f32 %v414, %v462
    %v464 = vpop.f32.mrf.mxu0
    %v465 = vadd.f32 %v416, %v464
    %466 = vmatmul.bf16.gmra.mxu0 %v95
    %v467 = vpop.f32.mrf.mxu0
    %v468 = vadd.f32 %v419, %v467
    %v469 = vpop.f32.mrf.mxu0
    %v470 = vadd.f32 %v421, %v469
    %471 = vmatmul.bf16.gmra.mxu0 %v97
    %v472 = vpop.f32.mrf.mxu0
    %v473 = vadd.f32 %v424, %v472
    %v474 = vpop.f32.mrf.mxu0
    %v475 = vadd.f32 %v426, %v474
    %476 = vmatmul.bf16.gmra.mxu0 %v99
    %v477 = vpop.f32.mrf.mxu0
    %v478 = vadd.f32 %v429, %v477
    %v479 = vpop.f32.mrf.mxu0
    %v480 = vadd.f32 %v431, %v479
    %481 = vmatmul.bf16.gmra.mxu0 %v101
    %v482 = vpop.f32.mrf.mxu0
    %v483 = vadd.f32 %v434, %v482
    %v484 = vpop.f32.mrf.mxu0
    %v485 = vadd.f32 %v436, %v484
    %486 = vmatmul.bf16.gmra.mxu0 %v103
    %v487 = vpop.f32.mrf.mxu0
    %v488 = vadd.f32 %v439, %v487
    %v489 = vpop.f32.mrf.mxu0
    %v490 = vadd.f32 %v441, %v489
    %491 = vmatmul.bf16.gmra.mxu0 %v105
    %v492 = vpop.f32.mrf.mxu0
    %v493 = vadd.f32 %v444, %v492
    %v494 = vpop.f32.mrf.mxu0
    %v495 = vadd.f32 %v446, %v494
    %496 = vmatmul.bf16.gmra.mxu0 %v107
    %v497 = vpop.f32.mrf.mxu0
    %v498 = vadd.f32 %v449, %v497
    %v499 = vpop.f32.mrf.mxu0
    %v500 = vadd.f32 %v451, %v499
    %501 = vdwg.mxu0
    %v502 = vmul.f32 %v365, 0.5
    %v503 = vmul.f32 %v463, 0.5
    %v504 = vmul.f32 %v367, 0.5
    %v505 = vmul.f32 %v465, 0.5
    %v506 = vmul.f32 %v370, 0.5
    %v507 = vmul.f32 %v468, 0.5
    %v508 = vmul.f32 %v372, 0.5
    %v509 = vmul.f32 %v470, 0.5
    %v510 = vmul.f32 %v375, 0.5
    %v511 = vmul.f32 %v473, 0.5
    %v512 = vmul.f32 %v377, 0.5
    %v513 = vmul.f32 %v475, 0.5
    %v514 = vmul.f32 %v380, 0.5
    %v515 = vmul.f32 %v478, 0.5
    %v516 = vmul.f32 %v382, 0.5
    %v517 = vmul.f32 %v480, 0.5
    %v518 = vmul.f32 %v385, 0.5
    %v519 = vmul.f32 %v483, 0.5
    %v520 = vmul.f32 %v387, 0.5
    %v521 = vmul.f32 %v485, 0.5
    %v522 = vmul.f32 %v390, 0.5
    %v523 = vmul.f32 %v488, 0.5
    %v524 = vmul.f32 %v392, 0.5
    %v525 = vmul.f32 %v490, 0.5
    %v526 = vmul.f32 %v395, 0.5
    %v527 = vmul.f32 %v493, 0.5
    %v528 = vmul.f32 %v397, 0.5
    %v529 = vmul.f32 %v495, 0.5
    %v530 = vmul.f32 %v400, 0.5
    %v531 = vmul.f32 %v498, 0.5
    %v532 = vmul.f32 %v402, 0.5
    %v533 = vmul.f32 %v500, 0.5
    %v534 = vmul.f32 %v365, 0.70710677
    %v535 = vmul.f32 %v463, 0.70710677
    %v536 = vmul.f32 %v367, 0.70710677
    %v537 = vmul.f32 %v465, 0.70710677
    %v538 = vmul.f32 %v370, 0.70710677
    %v539 = vmul.f32 %v468, 0.70710677
    %v540 = vmul.f32 %v372, 0.70710677
    %v541 = vmul.f32 %v470, 0.70710677
    %v542 = vmul.f32 %v375, 0.70710677
    %v543 = vmul.f32 %v473, 0.70710677
    %v544 = vmul.f32 %v377, 0.70710677
    %v545 = vmul.f32 %v475, 0.70710677
    %v546 = vmul.f32 %v380, 0.70710677
    %v547 = vmul.f32 %v478, 0.70710677
    %v548 = vmul.f32 %v382, 0.70710677
    %v549 = vmul.f32 %v480, 0.70710677
    %v550 = vmul.f32 %v385, 0.70710677
    %v551 = vmul.f32 %v483, 0.70710677
    %v552 = vmul.f32 %v387, 0.70710677
    %v553 = vmul.f32 %v485, 0.70710677
    %v554 = vmul.f32 %v390, 0.70710677
    %v555 = vmul.f32 %v488, 0.70710677
    %v556 = vmul.f32 %v392, 0.70710677
    %v557 = vmul.f32 %v490, 0.70710677
    %v558 = vmul.f32 %v395, 0.70710677
    %v559 = vmul.f32 %v493, 0.70710677
    %v560 = vmul.f32 %v397, 0.70710677
    %v561 = vmul.f32 %v495, 0.70710677
    %v562 = vmul.f32 %v400, 0.70710677
    %v563 = vmul.f32 %v498, 0.70710677
    %v564 = vmul.f32 %v402, 0.70710677
    %v565 = vmul.f32 %v500, 0.70710677
    %v566 = vmul.f32 %v534, %v534
    %v567 = vmin.f32 16.0, %v566
    %v568 = vmul.f32 %v567, 2.1237322e-06
    %v569 = vadd.f32 %v568, 0.00028619796
    %v570 = vmul.f32 %v567, %v569
    %v571 = vadd.f32 %v570, 0.0036580483
    %v572 = vmul.f32 %v567, %v571
    %v573 = vadd.f32 %v572, 0.05243302
    %v574 = vmul.f32 %v567, %v573
    %v575 = vadd.f32 %v574, 0.18741608
    %v576 = vmul.f32 %v567, %v575
    %v577 = vadd.f32 %v576, 1.1283791
    %v578 = vmul.f32 %v534, %v577
    %v579 = vmul.f32 %v567, 3.8918573e-05
    %v580 = vadd.f32 %v579, 0.001143296
    %v581 = vmul.f32 %v567, %v580
    %v582 = vadd.f32 %v581, 0.014752088
    %v583 = vmul.f32 %v567, %v582
    %v584 = vadd.f32 %v583, 0.112945676
    %v585 = vmul.f32 %v567, %v584
    %v586 = vadd.f32 %v585, 0.4994258
    %v587 = vmul.f32 %v567, %v586
    %v588 = vadd.f32 %v587, 1.0
    %v589 = vrcp.pop %v588
    %v590 = vmul.f32 %v588, %v589
    %v591 = vsub.f32 1.0, %v590
    %v592 = vmul.f32 %v589, %v591
    %v593 = vadd.f32 %v589, %v592
    %vm594 = vweird.f32 %v588
    %vm595 = vweird.f32 %v589
    %vm596 = vmor %vm594, %vm595
    %v597 = vsel %vm596, %v589, %v593
    %v598 = vand.u32 2147483647, %v588
    %vm599 = vcmp.eq.f32.partialorder %v598, 8.507059e+37
    %v600 = vand.u32 %v588, 2147483648
    %v601 = vor.u32 1.1754944e-38, %v600
    %v602 = vsel %vm599, %v601, %v597
    %v603 = vmul.f32 %v578, %v602
    %v604 = vmin.f32 %v603, 1.0
    %v605 = vmax.f32 %v604, -1.0
    %v606 = vmul.f32 %v535, %v535
    %v607 = vmin.f32 16.0, %v606
    %v608 = vmul.f32 %v607, 2.1237322e-06
    %v609 = vadd.f32 %v608, 0.00028619796
    %v610 = vmul.f32 %v607, %v609
    %v611 = vadd.f32 %v610, 0.0036580483
    %v612 = vmul.f32 %v607, %v611
    %v613 = vadd.f32 %v612, 0.05243302
    %v614 = vmul.f32 %v607, %v613
    %v615 = vadd.f32 %v614, 0.18741608
    %v616 = vmul.f32 %v607, %v615
    %v617 = vadd.f32 %v616, 1.1283791
    %v618 = vmul.f32 %v535, %v617
    %v619 = vmul.f32 %v607, 3.8918573e-05
    %v620 = vadd.f32 %v619, 0.001143296
    %v621 = vmul.f32 %v607, %v620
    %v622 = vadd.f32 %v621, 0.014752088
    %v623 = vmul.f32 %v607, %v622
    %v624 = vadd.f32 %v623, 0.112945676
    %v625 = vmul.f32 %v607, %v624
    %v626 = vadd.f32 %v625, 0.4994258
    %v627 = vmul.f32 %v607, %v626
    %v628 = vadd.f32 %v627, 1.0
    %v629 = vrcp.pop %v628
    %v630 = vmul.f32 %v628, %v629
    %v631 = vsub.f32 1.0, %v630
    %v632 = vmul.f32 %v629, %v631
    %v633 = vadd.f32 %v629, %v632
    %vm634 = vweird.f32 %v628
    %vm635 = vweird.f32 %v629
    %vm636 = vmor %vm634, %vm635
    %v637 = vsel %vm636, %v629, %v633
    %v638 = vand.u32 2147483647, %v628
    %vm639 = vcmp.eq.f32.partialorder %v638, 8.507059e+37
    %v640 = vand.u32 %v628, 2147483648
    %v641 = vor.u32 1.1754944e-38, %v640
    %v642 = vsel %vm639, %v641, %v637
    %v643 = vmul.f32 %v618, %v642
    %v644 = vmin.f32 %v643, 1.0
    %v645 = vmax.f32 %v644, -1.0
    %v646 = vmul.f32 %v536, %v536
    %v647 = vmin.f32 16.0, %v646
    %v648 = vmul.f32 %v647, 2.1237322e-06
    %v649 = vadd.f32 %v648, 0.00028619796
    %v650 = vmul.f32 %v647, %v649
    %v651 = vadd.f32 %v650, 0.0036580483
    %v652 = vmul.f32 %v647, %v651
    %v653 = vadd.f32 %v652, 0.05243302
    %v654 = vmul.f32 %v647, %v653
    %v655 = vadd.f32 %v654, 0.18741608
    %v656 = vmul.f32 %v647, %v655
    %v657 = vadd.f32 %v656, 1.1283791
    %v658 = vmul.f32 %v536, %v657
    %v659 = vmul.f32 %v647, 3.8918573e-05
    %v660 = vadd.f32 %v659, 0.001143296
    %v661 = vmul.f32 %v647, %v660
    %v662 = vadd.f32 %v661, 0.014752088
    %v663 = vmul.f32 %v647, %v662
    %v664 = vadd.f32 %v663, 0.112945676
    %v665 = vmul.f32 %v647, %v664
    %v666 = vadd.f32 %v665, 0.4994258
    %v667 = vmul.f32 %v647, %v666
    %v668 = vadd.f32 %v667, 1.0
    %v669 = vrcp.pop %v668
    %v670 = vmul.f32 %v668, %v669
    %v671 = vsub.f32 1.0, %v670
    %v672 = vmul.f32 %v669, %v671
    %v673 = vadd.f32 %v669, %v672
    %vm674 = vweird.f32 %v668
    %vm675 = vweird.f32 %v669
    %vm676 = vmor %vm674, %vm675
    %v677 = vsel %vm676, %v669, %v673
    %v678 = vand.u32 2147483647, %v668
    %vm679 = vcmp.eq.f32.partialorder %v678, 8.507059e+37
    %v680 = vand.u32 %v668, 2147483648
    %v681 = vor.u32 1.1754944e-38, %v680
    %v682 = vsel %vm679, %v681, %v677
    %v683 = vmul.f32 %v658, %v682
    %v684 = vmin.f32 %v683, 1.0
    %v685 = vmax.f32 %v684, -1.0
    %v686 = vmul.f32 %v537, %v537
    %v687 = vmin.f32 16.0, %v686
    %v688 = vmul.f32 %v687, 2.1237322e-06
    %v689 = vadd.f32 %v688, 0.00028619796
    %v690 = vmul.f32 %v687, %v689
    %v691 = vadd.f32 %v690, 0.0036580483
    %v692 = vmul.f32 %v687, %v691
    %v693 = vadd.f32 %v692, 0.05243302
    %v694 = vmul.f32 %v687, %v693
    %v695 = vadd.f32 %v694, 0.18741608
    %v696 = vmul.f32 %v687, %v695
    %v697 = vadd.f32 %v696, 1.1283791
    %v698 = vmul.f32 %v537, %v697
    %v699 = vmul.f32 %v687, 3.8918573e-05
    %v700 = vadd.f32 %v699, 0.001143296
    %v701 = vmul.f32 %v687, %v700
    %v702 = vadd.f32 %v701, 0.014752088
    %v703 = vmul.f32 %v687, %v702
    %v704 = vadd.f32 %v703, 0.112945676
    %v705 = vmul.f32 %v687, %v704
    %v706 = vadd.f32 %v705, 0.4994258
    %v707 = vmul.f32 %v687, %v706
    %v708 = vadd.f32 %v707, 1.0
    %v709 = vrcp.pop %v708
    %v710 = vmul.f32 %v708, %v709
    %v711 = vsub.f32 1.0, %v710
    %v712 = vmul.f32 %v709, %v711
    %v713 = vadd.f32 %v709, %v712
    %vm714 = vweird.f32 %v708
    %vm715 = vweird.f32 %v709
    %vm716 = vmor %vm714, %vm715
    %v717 = vsel %vm716, %v709, %v713
    %v718 = vand.u32 2147483647, %v708
    %vm719 = vcmp.eq.f32.partialorder %v718, 8.507059e+37
    %v720 = vand.u32 %v708, 2147483648
    %v721 = vor.u32 1.1754944e-38, %v720
    %v722 = vsel %vm719, %v721, %v717
    %v723 = vmul.f32 %v698, %v722
    %v724 = vmin.f32 %v723, 1.0
    %v725 = vmax.f32 %v724, -1.0
    %v726 = vmul.f32 %v538, %v538
    %v727 = vmin.f32 16.0, %v726
    %v728 = vmul.f32 %v727, 2.1237322e-06
    %v729 = vadd.f32 %v728, 0.00028619796
    %v730 = vmul.f32 %v727, %v729
    %v731 = vadd.f32 %v730, 0.0036580483
    %v732 = vmul.f32 %v727, %v731
    %v733 = vadd.f32 %v732, 0.05243302
    %v734 = vmul.f32 %v727, %v733
    %v735 = vadd.f32 %v734, 0.18741608
    %v736 = vmul.f32 %v727, %v735
    %v737 = vadd.f32 %v736, 1.1283791
    %v738 = vmul.f32 %v538, %v737
    %v739 = vmul.f32 %v727, 3.8918573e-05
    %v740 = vadd.f32 %v739, 0.001143296
    %v741 = vmul.f32 %v727, %v740
    %v742 = vadd.f32 %v741, 0.014752088
    %v743 = vmul.f32 %v727, %v742
    %v744 = vadd.f32 %v743, 0.112945676
    %v745 = vmul.f32 %v727, %v744
    %v746 = vadd.f32 %v745, 0.4994258
    %v747 = vmul.f32 %v727, %v746
    %v748 = vadd.f32 %v747, 1.0
    %v749 = vrcp.pop %v748
    %v750 = vmul.f32 %v748, %v749
    %v751 = vsub.f32 1.0, %v750
    %v752 = vmul.f32 %v749, %v751
    %v753 = vadd.f32 %v749, %v752
    %vm754 = vweird.f32 %v748
    %vm755 = vweird.f32 %v749
    %vm756 = vmor %vm754, %vm755
    %v757 = vsel %vm756, %v749, %v753
    %v758 = vand.u32 2147483647, %v748
    %vm759 = vcmp.eq.f32.partialorder %v758, 8.507059e+37
    %v760 = vand.u32 %v748, 2147483648
    %v761 = vor.u32 1.1754944e-38, %v760
    %v762 = vsel %vm759, %v761, %v757
    %v763 = vmul.f32 %v738, %v762
    %v764 = vmin.f32 %v763, 1.0
    %v765 = vmax.f32 %v764, -1.0
    %v766 = vmul.f32 %v539, %v539
    %v767 = vmin.f32 16.0, %v766
    %v768 = vmul.f32 %v767, 2.1237322e-06
    %v769 = vadd.f32 %v768, 0.00028619796
    %v770 = vmul.f32 %v767, %v769
    %v771 = vadd.f32 %v770, 0.0036580483
    %v772 = vmul.f32 %v767, %v771
    %v773 = vadd.f32 %v772, 0.05243302
    %v774 = vmul.f32 %v767, %v773
    %v775 = vadd.f32 %v774, 0.18741608
    %v776 = vmul.f32 %v767, %v775
    %v777 = vadd.f32 %v776, 1.1283791
    %v778 = vmul.f32 %v539, %v777
    %v779 = vmul.f32 %v767, 3.8918573e-05
    %v780 = vadd.f32 %v779, 0.001143296
    %v781 = vmul.f32 %v767, %v780
    %v782 = vadd.f32 %v781, 0.014752088
    %v783 = vmul.f32 %v767, %v782
    %v784 = vadd.f32 %v783, 0.112945676
    %v785 = vmul.f32 %v767, %v784
    %v786 = vadd.f32 %v785, 0.4994258
    %v787 = vmul.f32 %v767, %v786
    %v788 = vadd.f32 %v787, 1.0
    %v789 = vrcp.pop %v788
    %v790 = vmul.f32 %v788, %v789
    %v791 = vsub.f32 1.0, %v790
    %v792 = vmul.f32 %v789, %v791
    %v793 = vadd.f32 %v789, %v792
    %vm794 = vweird.f32 %v788
    %vm795 = vweird.f32 %v789
    %vm796 = vmor %vm794, %vm795
    %v797 = vsel %vm796, %v789, %v793
    %v798 = vand.u32 2147483647, %v788
    %vm799 = vcmp.eq.f32.partialorder %v798, 8.507059e+37
    %v800 = vand.u32 %v788, 2147483648
    %v801 = vor.u32 1.1754944e-38, %v800
    %v802 = vsel %vm799, %v801, %v797
    %v803 = vmul.f32 %v778, %v802
    %v804 = vmin.f32 %v803, 1.0
    %v805 = vmax.f32 %v804, -1.0
    %v806 = vmul.f32 %v540, %v540
    %v807 = vmin.f32 16.0, %v806
    %v808 = vmul.f32 %v807, 2.1237322e-06
    %v809 = vadd.f32 %v808, 0.00028619796
    %v810 = vmul.f32 %v807, %v809
    %v811 = vadd.f32 %v810, 0.0036580483
    %v812 = vmul.f32 %v807, %v811
    %v813 = vadd.f32 %v812, 0.05243302
    %v814 = vmul.f32 %v807, %v813
    %v815 = vadd.f32 %v814, 0.18741608
    %v816 = vmul.f32 %v807, %v815
    %v817 = vadd.f32 %v816, 1.1283791
    %v818 = vmul.f32 %v540, %v817
    %v819 = vmul.f32 %v807, 3.8918573e-05
    %v820 = vadd.f32 %v819, 0.001143296
    %v821 = vmul.f32 %v807, %v820
    %v822 = vadd.f32 %v821, 0.014752088
    %v823 = vmul.f32 %v807, %v822
    %v824 = vadd.f32 %v823, 0.112945676
    %v825 = vmul.f32 %v807, %v824
    %v826 = vadd.f32 %v825, 0.4994258
    %v827 = vmul.f32 %v807, %v826
    %v828 = vadd.f32 %v827, 1.0
    %v829 = vrcp.pop %v828
    %v830 = vmul.f32 %v828, %v829
    %v831 = vsub.f32 1.0, %v830
    %v832 = vmul.f32 %v829, %v831
    %v833 = vadd.f32 %v829, %v832
    %vm834 = vweird.f32 %v828
    %vm835 = vweird.f32 %v829
    %vm836 = vmor %vm834, %vm835
    %v837 = vsel %vm836, %v829, %v833
    %v838 = vand.u32 2147483647, %v828
    %vm839 = vcmp.eq.f32.partialorder %v838, 8.507059e+37
    %v840 = vand.u32 %v828, 2147483648
    %v841 = vor.u32 1.1754944e-38, %v840
    %v842 = vsel %vm839, %v841, %v837
    %v843 = vmul.f32 %v818, %v842
    %v844 = vmin.f32 %v843, 1.0
    %v845 = vmax.f32 %v844, -1.0
    %v846 = vmul.f32 %v541, %v541
    %v847 = vmin.f32 16.0, %v846
    %v848 = vmul.f32 %v847, 2.1237322e-06
    %v849 = vadd.f32 %v848, 0.00028619796
    %v850 = vmul.f32 %v847, %v849
    %v851 = vadd.f32 %v850, 0.0036580483
    %v852 = vmul.f32 %v847, %v851
    %v853 = vadd.f32 %v852, 0.05243302
    %v854 = vmul.f32 %v847, %v853
    %v855 = vadd.f32 %v854, 0.18741608
    %v856 = vmul.f32 %v847, %v855
    %v857 = vadd.f32 %v856, 1.1283791
    %v858 = vmul.f32 %v541, %v857
    %v859 = vmul.f32 %v847, 3.8918573e-05
    %v860 = vadd.f32 %v859, 0.001143296
    %v861 = vmul.f32 %v847, %v860
    %v862 = vadd.f32 %v861, 0.014752088
    %v863 = vmul.f32 %v847, %v862
    %v864 = vadd.f32 %v863, 0.112945676
    %v865 = vmul.f32 %v847, %v864
    %v866 = vadd.f32 %v865, 0.4994258
    %v867 = vmul.f32 %v847, %v866
    %v868 = vadd.f32 %v867, 1.0
    %v869 = vrcp.pop %v868
    %v870 = vmul.f32 %v868, %v869
    %v871 = vsub.f32 1.0, %v870
    %v872 = vmul.f32 %v869, %v871
    %v873 = vadd.f32 %v869, %v872
    %vm874 = vweird.f32 %v868
    %vm875 = vweird.f32 %v869
    %vm876 = vmor %vm874, %vm875
    %v877 = vsel %vm876, %v869, %v873
    %v878 = vand.u32 2147483647, %v868
    %vm879 = vcmp.eq.f32.partialorder %v878, 8.507059e+37
    %v880 = vand.u32 %v868, 2147483648
    %v881 = vor.u32 1.1754944e-38, %v880
    %v882 = vsel %vm879, %v881, %v877
    %v883 = vmul.f32 %v858, %v882
    %v884 = vmin.f32 %v883, 1.0
    %v885 = vmax.f32 %v884, -1.0
    %v886 = vmul.f32 %v542, %v542
    %v887 = vmin.f32 16.0, %v886
    %v888 = vmul.f32 %v887, 2.1237322e-06
    %v889 = vadd.f32 %v888, 0.00028619796
    %v890 = vmul.f32 %v887, %v889
    %v891 = vadd.f32 %v890, 0.0036580483
    %v892 = vmul.f32 %v887, %v891
    %v893 = vadd.f32 %v892, 0.05243302
    %v894 = vmul.f32 %v887, %v893
    %v895 = vadd.f32 %v894, 0.18741608
    %v896 = vmul.f32 %v887, %v895
    %v897 = vadd.f32 %v896, 1.1283791
    %v898 = vmul.f32 %v542, %v897
    %v899 = vmul.f32 %v887, 3.8918573e-05
    %v900 = vadd.f32 %v899, 0.001143296
    %v901 = vmul.f32 %v887, %v900
    %v902 = vadd.f32 %v901, 0.014752088
    %v903 = vmul.f32 %v887, %v902
    %v904 = vadd.f32 %v903, 0.112945676
    %v905 = vmul.f32 %v887, %v904
    %v906 = vadd.f32 %v905, 0.4994258
    %v907 = vmul.f32 %v887, %v906
    %v908 = vadd.f32 %v907, 1.0
    %v909 = vrcp.pop %v908
    %v910 = vmul.f32 %v908, %v909
    %v911 = vsub.f32 1.0, %v910
    %v912 = vmul.f32 %v909, %v911
    %v913 = vadd.f32 %v909, %v912
    %vm914 = vweird.f32 %v908
    %vm915 = vweird.f32 %v909
    %vm916 = vmor %vm914, %vm915
    %v917 = vsel %vm916, %v909, %v913
    %v918 = vand.u32 2147483647, %v908
    %vm919 = vcmp.eq.f32.partialorder %v918, 8.507059e+37
    %v920 = vand.u32 %v908, 2147483648
    %v921 = vor.u32 1.1754944e-38, %v920
    %v922 = vsel %vm919, %v921, %v917
    %v923 = vmul.f32 %v898, %v922
    %v924 = vmin.f32 %v923, 1.0
    %v925 = vmax.f32 %v924, -1.0
    %v926 = vmul.f32 %v543, %v543
    %v927 = vmin.f32 16.0, %v926
    %v928 = vmul.f32 %v927, 2.1237322e-06
    %v929 = vadd.f32 %v928, 0.00028619796
    %v930 = vmul.f32 %v927, %v929
    %v931 = vadd.f32 %v930, 0.0036580483
    %v932 = vmul.f32 %v927, %v931
    %v933 = vadd.f32 %v932, 0.05243302
    %v934 = vmul.f32 %v927, %v933
    %v935 = vadd.f32 %v934, 0.18741608
    %v936 = vmul.f32 %v927, %v935
    %v937 = vadd.f32 %v936, 1.1283791
    %v938 = vmul.f32 %v543, %v937
    %v939 = vmul.f32 %v927, 3.8918573e-05
    %v940 = vadd.f32 %v939, 0.001143296
    %v941 = vmul.f32 %v927, %v940
    %v942 = vadd.f32 %v941, 0.014752088
    %v943 = vmul.f32 %v927, %v942
    %v944 = vadd.f32 %v943, 0.112945676
    %v945 = vmul.f32 %v927, %v944
    %v946 = vadd.f32 %v945, 0.4994258
    %v947 = vmul.f32 %v927, %v946
    %v948 = vadd.f32 %v947, 1.0
    %v949 = vrcp.pop %v948
    %v950 = vmul.f32 %v948, %v949
    %v951 = vsub.f32 1.0, %v950
    %v952 = vmul.f32 %v949, %v951
    %v953 = vadd.f32 %v949, %v952
    %vm954 = vweird.f32 %v948
    %vm955 = vweird.f32 %v949
    %vm956 = vmor %vm954, %vm955
    %v957 = vsel %vm956, %v949, %v953
    %v958 = vand.u32 2147483647, %v948
    %vm959 = vcmp.eq.f32.partialorder %v958, 8.507059e+37
    %v960 = vand.u32 %v948, 2147483648
    %v961 = vor.u32 1.1754944e-38, %v960
    %v962 = vsel %vm959, %v961, %v957
    %v963 = vmul.f32 %v938, %v962
    %v964 = vmin.f32 %v963, 1.0
    %v965 = vmax.f32 %v964, -1.0
    %v966 = vmul.f32 %v544, %v544
    %v967 = vmin.f32 16.0, %v966
    %v968 = vmul.f32 %v967, 2.1237322e-06
    %v969 = vadd.f32 %v968, 0.00028619796
    %v970 = vmul.f32 %v967, %v969
    %v971 = vadd.f32 %v970, 0.0036580483
    %v972 = vmul.f32 %v967, %v971
    %v973 = vadd.f32 %v972, 0.05243302
    %v974 = vmul.f32 %v967, %v973
    %v975 = vadd.f32 %v974, 0.18741608
    %v976 = vmul.f32 %v967, %v975
    %v977 = vadd.f32 %v976, 1.1283791
    %v978 = vmul.f32 %v544, %v977
    %v979 = vmul.f32 %v967, 3.8918573e-05
    %v980 = vadd.f32 %v979, 0.001143296
    %v981 = vmul.f32 %v967, %v980
    %v982 = vadd.f32 %v981, 0.014752088
    %v983 = vmul.f32 %v967, %v982
    %v984 = vadd.f32 %v983, 0.112945676
    %v985 = vmul.f32 %v967, %v984
    %v986 = vadd.f32 %v985, 0.4994258
    %v987 = vmul.f32 %v967, %v986
    %v988 = vadd.f32 %v987, 1.0
    %v989 = vrcp.pop %v988
    %v990 = vmul.f32 %v988, %v989
    %v991 = vsub.f32 1.0, %v990
    %v992 = vmul.f32 %v989, %v991
    %v993 = vadd.f32 %v989, %v992
    %vm994 = vweird.f32 %v988
    %vm995 = vweird.f32 %v989
    %vm996 = vmor %vm994, %vm995
    %v997 = vsel %vm996, %v989, %v993
    %v998 = vand.u32 2147483647, %v988
    %vm999 = vcmp.eq.f32.partialorder %v998, 8.507059e+37
    %v1000 = vand.u32 %v988, 2147483648
    %v1001 = vor.u32 1.1754944e-38, %v1000
    %v1002 = vsel %vm999, %v1001, %v997
    %v1003 = vmul.f32 %v978, %v1002
    %v1004 = vmin.f32 %v1003, 1.0
    %v1005 = vmax.f32 %v1004, -1.0
    %v1006 = vmul.f32 %v545, %v545
    %v1007 = vmin.f32 16.0, %v1006
    %v1008 = vmul.f32 %v1007, 2.1237322e-06
    %v1009 = vadd.f32 %v1008, 0.00028619796
    %v1010 = vmul.f32 %v1007, %v1009
    %v1011 = vadd.f32 %v1010, 0.0036580483
    %v1012 = vmul.f32 %v1007, %v1011
    %v1013 = vadd.f32 %v1012, 0.05243302
    %v1014 = vmul.f32 %v1007, %v1013
    %v1015 = vadd.f32 %v1014, 0.18741608
    %v1016 = vmul.f32 %v1007, %v1015
    %v1017 = vadd.f32 %v1016, 1.1283791
    %v1018 = vmul.f32 %v545, %v1017
    %v1019 = vmul.f32 %v1007, 3.8918573e-05
    %v1020 = vadd.f32 %v1019, 0.001143296
    %v1021 = vmul.f32 %v1007, %v1020
    %v1022 = vadd.f32 %v1021, 0.014752088
    %v1023 = vmul.f32 %v1007, %v1022
    %v1024 = vadd.f32 %v1023, 0.112945676
    %v1025 = vmul.f32 %v1007, %v1024
    %v1026 = vadd.f32 %v1025, 0.4994258
    %v1027 = vmul.f32 %v1007, %v1026
    %v1028 = vadd.f32 %v1027, 1.0
    %v1029 = vrcp.pop %v1028
    %v1030 = vmul.f32 %v1028, %v1029
    %v1031 = vsub.f32 1.0, %v1030
    %v1032 = vmul.f32 %v1029, %v1031
    %v1033 = vadd.f32 %v1029, %v1032
    %vm1034 = vweird.f32 %v1028
    %vm1035 = vweird.f32 %v1029
    %vm1036 = vmor %vm1034, %vm1035
    %v1037 = vsel %vm1036, %v1029, %v1033
    %v1038 = vand.u32 2147483647, %v1028
    %vm1039 = vcmp.eq.f32.partialorder %v1038, 8.507059e+37
    %v1040 = vand.u32 %v1028, 2147483648
    %v1041 = vor.u32 1.1754944e-38, %v1040
    %v1042 = vsel %vm1039, %v1041, %v1037
    %v1043 = vmul.f32 %v1018, %v1042
    %v1044 = vmin.f32 %v1043, 1.0
    %v1045 = vmax.f32 %v1044, -1.0
    %v1046 = vmul.f32 %v546, %v546
    %v1047 = vmin.f32 16.0, %v1046
    %v1048 = vmul.f32 %v1047, 2.1237322e-06
    %v1049 = vadd.f32 %v1048, 0.00028619796
    %v1050 = vmul.f32 %v1047, %v1049
    %v1051 = vadd.f32 %v1050, 0.0036580483
    %v1052 = vmul.f32 %v1047, %v1051
    %v1053 = vadd.f32 %v1052, 0.05243302
    %v1054 = vmul.f32 %v1047, %v1053
    %v1055 = vadd.f32 %v1054, 0.18741608
    %v1056 = vmul.f32 %v1047, %v1055
    %v1057 = vadd.f32 %v1056, 1.1283791
    %v1058 = vmul.f32 %v546, %v1057
    %v1059 = vmul.f32 %v1047, 3.8918573e-05
    %v1060 = vadd.f32 %v1059, 0.001143296
    %v1061 = vmul.f32 %v1047, %v1060
    %v1062 = vadd.f32 %v1061, 0.014752088
    %v1063 = vmul.f32 %v1047, %v1062
    %v1064 = vadd.f32 %v1063, 0.112945676
    %v1065 = vmul.f32 %v1047, %v1064
    %v1066 = vadd.f32 %v1065, 0.4994258
    %v1067 = vmul.f32 %v1047, %v1066
    %v1068 = vadd.f32 %v1067, 1.0
    %v1069 = vrcp.pop %v1068
    %v1070 = vmul.f32 %v1068, %v1069
    %v1071 = vsub.f32 1.0, %v1070
    %v1072 = vmul.f32 %v1069, %v1071
    %v1073 = vadd.f32 %v1069, %v1072
    %vm1074 = vweird.f32 %v1068
    %vm1075 = vweird.f32 %v1069
    %vm1076 = vmor %vm1074, %vm1075
    %v1077 = vsel %vm1076, %v1069, %v1073
    %v1078 = vand.u32 2147483647, %v1068
    %vm1079 = vcmp.eq.f32.partialorder %v1078, 8.507059e+37
    %v1080 = vand.u32 %v1068, 2147483648
    %v1081 = vor.u32 1.1754944e-38, %v1080
    %v1082 = vsel %vm1079, %v1081, %v1077
    %v1083 = vmul.f32 %v1058, %v1082
    %v1084 = vmin.f32 %v1083, 1.0
    %v1085 = vmax.f32 %v1084, -1.0
    %v1086 = vmul.f32 %v547, %v547
    %v1087 = vmin.f32 16.0, %v1086
    %v1088 = vmul.f32 %v1087, 2.1237322e-06
    %v1089 = vadd.f32 %v1088, 0.00028619796
    %v1090 = vmul.f32 %v1087, %v1089
    %v1091 = vadd.f32 %v1090, 0.0036580483
    %v1092 = vmul.f32 %v1087, %v1091
    %v1093 = vadd.f32 %v1092, 0.05243302
    %v1094 = vmul.f32 %v1087, %v1093
    %v1095 = vadd.f32 %v1094, 0.18741608
    %v1096 = vmul.f32 %v1087, %v1095
    %v1097 = vadd.f32 %v1096, 1.1283791
    %v1098 = vmul.f32 %v547, %v1097
    %v1099 = vmul.f32 %v1087, 3.8918573e-05
    %v1100 = vadd.f32 %v1099, 0.001143296
    %v1101 = vmul.f32 %v1087, %v1100
    %v1102 = vadd.f32 %v1101, 0.014752088
    %v1103 = vmul.f32 %v1087, %v1102
    %v1104 = vadd.f32 %v1103, 0.112945676
    %v1105 = vmul.f32 %v1087, %v1104
    %v1106 = vadd.f32 %v1105, 0.4994258
    %v1107 = vmul.f32 %v1087, %v1106
    %v1108 = vadd.f32 %v1107, 1.0
    %v1109 = vrcp.pop %v1108
    %v1110 = vmul.f32 %v1108, %v1109
    %v1111 = vsub.f32 1.0, %v1110
    %v1112 = vmul.f32 %v1109, %v1111
    %v1113 = vadd.f32 %v1109, %v1112
    %vm1114 = vweird.f32 %v1108
    %vm1115 = vweird.f32 %v1109
    %vm1116 = vmor %vm1114, %vm1115
    %v1117 = vsel %vm1116, %v1109, %v1113
    %v1118 = vand.u32 2147483647, %v1108
    %vm1119 = vcmp.eq.f32.partialorder %v1118, 8.507059e+37
    %v1120 = vand.u32 %v1108, 2147483648
    %v1121 = vor.u32 1.1754944e-38, %v1120
    %v1122 = vsel %vm1119, %v1121, %v1117
    %v1123 = vmul.f32 %v1098, %v1122
    %v1124 = vmin.f32 %v1123, 1.0
    %v1125 = vmax.f32 %v1124, -1.0
    %v1126 = vmul.f32 %v548, %v548
    %v1127 = vmin.f32 16.0, %v1126
    %v1128 = vmul.f32 %v1127, 2.1237322e-06
    %v1129 = vadd.f32 %v1128, 0.00028619796
    %v1130 = vmul.f32 %v1127, %v1129
    %v1131 = vadd.f32 %v1130, 0.0036580483
    %v1132 = vmul.f32 %v1127, %v1131
    %v1133 = vadd.f32 %v1132, 0.05243302
    %v1134 = vmul.f32 %v1127, %v1133
    %v1135 = vadd.f32 %v1134, 0.18741608
    %v1136 = vmul.f32 %v1127, %v1135
    %v1137 = vadd.f32 %v1136, 1.1283791
    %v1138 = vmul.f32 %v548, %v1137
    %v1139 = vmul.f32 %v1127, 3.8918573e-05
    %v1140 = vadd.f32 %v1139, 0.001143296
    %v1141 = vmul.f32 %v1127, %v1140
    %v1142 = vadd.f32 %v1141, 0.014752088
    %v1143 = vmul.f32 %v1127, %v1142
    %v1144 = vadd.f32 %v1143, 0.112945676
    %v1145 = vmul.f32 %v1127, %v1144
    %v1146 = vadd.f32 %v1145, 0.4994258
    %v1147 = vmul.f32 %v1127, %v1146
    %v1148 = vadd.f32 %v1147, 1.0
    %v1149 = vrcp.pop %v1148
    %v1150 = vmul.f32 %v1148, %v1149
    %v1151 = vsub.f32 1.0, %v1150
    %v1152 = vmul.f32 %v1149, %v1151
    %v1153 = vadd.f32 %v1149, %v1152
    %vm1154 = vweird.f32 %v1148
    %vm1155 = vweird.f32 %v1149
    %vm1156 = vmor %vm1154, %vm1155
    %v1157 = vsel %vm1156, %v1149, %v1153
    %v1158 = vand.u32 2147483647, %v1148
    %vm1159 = vcmp.eq.f32.partialorder %v1158, 8.507059e+37
    %v1160 = vand.u32 %v1148, 2147483648
    %v1161 = vor.u32 1.1754944e-38, %v1160
    %v1162 = vsel %vm1159, %v1161, %v1157
    %v1163 = vmul.f32 %v1138, %v1162
    %v1164 = vmin.f32 %v1163, 1.0
    %v1165 = vmax.f32 %v1164, -1.0
    %v1166 = vmul.f32 %v549, %v549
    %v1167 = vmin.f32 16.0, %v1166
    %v1168 = vmul.f32 %v1167, 2.1237322e-06
    %v1169 = vadd.f32 %v1168, 0.00028619796
    %v1170 = vmul.f32 %v1167, %v1169
    %v1171 = vadd.f32 %v1170, 0.0036580483
    %v1172 = vmul.f32 %v1167, %v1171
    %v1173 = vadd.f32 %v1172, 0.05243302
    %v1174 = vmul.f32 %v1167, %v1173
    %v1175 = vadd.f32 %v1174, 0.18741608
    %v1176 = vmul.f32 %v1167, %v1175
    %v1177 = vadd.f32 %v1176, 1.1283791
    %v1178 = vmul.f32 %v549, %v1177
    %v1179 = vmul.f32 %v1167, 3.8918573e-05
    %v1180 = vadd.f32 %v1179, 0.001143296
    %v1181 = vmul.f32 %v1167, %v1180
    %v1182 = vadd.f32 %v1181, 0.014752088
    %v1183 = vmul.f32 %v1167, %v1182
    %v1184 = vadd.f32 %v1183, 0.112945676
    %v1185 = vmul.f32 %v1167, %v1184
    %v1186 = vadd.f32 %v1185, 0.4994258
    %v1187 = vmul.f32 %v1167, %v1186
    %v1188 = vadd.f32 %v1187, 1.0
    %v1189 = vrcp.pop %v1188
    %v1190 = vmul.f32 %v1188, %v1189
    %v1191 = vsub.f32 1.0, %v1190
    %v1192 = vmul.f32 %v1189, %v1191
    %v1193 = vadd.f32 %v1189, %v1192
    %vm1194 = vweird.f32 %v1188
    %vm1195 = vweird.f32 %v1189
    %vm1196 = vmor %vm1194, %vm1195
    %v1197 = vsel %vm1196, %v1189, %v1193
    %v1198 = vand.u32 2147483647, %v1188
    %vm1199 = vcmp.eq.f32.partialorder %v1198, 8.507059e+37
    %v1200 = vand.u32 %v1188, 2147483648
    %v1201 = vor.u32 1.1754944e-38, %v1200
    %v1202 = vsel %vm1199, %v1201, %v1197
    %v1203 = vmul.f32 %v1178, %v1202
    %v1204 = vmin.f32 %v1203, 1.0
    %v1205 = vmax.f32 %v1204, -1.0
    %v1206 = vmul.f32 %v550, %v550
    %v1207 = vmin.f32 16.0, %v1206
    %v1208 = vmul.f32 %v1207, 2.1237322e-06
    %v1209 = vadd.f32 %v1208, 0.00028619796
    %v1210 = vmul.f32 %v1207, %v1209
    %v1211 = vadd.f32 %v1210, 0.0036580483
    %v1212 = vmul.f32 %v1207, %v1211
    %v1213 = vadd.f32 %v1212, 0.05243302
    %v1214 = vmul.f32 %v1207, %v1213
    %v1215 = vadd.f32 %v1214, 0.18741608
    %v1216 = vmul.f32 %v1207, %v1215
    %v1217 = vadd.f32 %v1216, 1.1283791
    %v1218 = vmul.f32 %v550, %v1217
    %v1219 = vmul.f32 %v1207, 3.8918573e-05
    %v1220 = vadd.f32 %v1219, 0.001143296
    %v1221 = vmul.f32 %v1207, %v1220
    %v1222 = vadd.f32 %v1221, 0.014752088
    %v1223 = vmul.f32 %v1207, %v1222
    %v1224 = vadd.f32 %v1223, 0.112945676
    %v1225 = vmul.f32 %v1207, %v1224
    %v1226 = vadd.f32 %v1225, 0.4994258
    %v1227 = vmul.f32 %v1207, %v1226
    %v1228 = vadd.f32 %v1227, 1.0
    %v1229 = vrcp.pop %v1228
    %v1230 = vmul.f32 %v1228, %v1229
    %v1231 = vsub.f32 1.0, %v1230
    %v1232 = vmul.f32 %v1229, %v1231
    %v1233 = vadd.f32 %v1229, %v1232
    %vm1234 = vweird.f32 %v1228
    %vm1235 = vweird.f32 %v1229
    %vm1236 = vmor %vm1234, %vm1235
    %v1237 = vsel %vm1236, %v1229, %v1233
    %v1238 = vand.u32 2147483647, %v1228
    %vm1239 = vcmp.eq.f32.partialorder %v1238, 8.507059e+37
    %v1240 = vand.u32 %v1228, 2147483648
    %v1241 = vor.u32 1.1754944e-38, %v1240
    %v1242 = vsel %vm1239, %v1241, %v1237
    %v1243 = vmul.f32 %v1218, %v1242
    %v1244 = vmin.f32 %v1243, 1.0
    %v1245 = vmax.f32 %v1244, -1.0
    %v1246 = vmul.f32 %v551, %v551
    %v1247 = vmin.f32 16.0, %v1246
    %v1248 = vmul.f32 %v1247, 2.1237322e-06
    %v1249 = vadd.f32 %v1248, 0.00028619796
    %v1250 = vmul.f32 %v1247, %v1249
    %v1251 = vadd.f32 %v1250, 0.0036580483
    %v1252 = vmul.f32 %v1247, %v1251
    %v1253 = vadd.f32 %v1252, 0.05243302
    %v1254 = vmul.f32 %v1247, %v1253
    %v1255 = vadd.f32 %v1254, 0.18741608
    %v1256 = vmul.f32 %v1247, %v1255
    %v1257 = vadd.f32 %v1256, 1.1283791
    %v1258 = vmul.f32 %v551, %v1257
    %v1259 = vmul.f32 %v1247, 3.8918573e-05
    %v1260 = vadd.f32 %v1259, 0.001143296
    %v1261 = vmul.f32 %v1247, %v1260
    %v1262 = vadd.f32 %v1261, 0.014752088
    %v1263 = vmul.f32 %v1247, %v1262
    %v1264 = vadd.f32 %v1263, 0.112945676
    %v1265 = vmul.f32 %v1247, %v1264
    %v1266 = vadd.f32 %v1265, 0.4994258
    %v1267 = vmul.f32 %v1247, %v1266
    %v1268 = vadd.f32 %v1267, 1.0
    %v1269 = vrcp.pop %v1268
    %v1270 = vmul.f32 %v1268, %v1269
    %v1271 = vsub.f32 1.0, %v1270
    %v1272 = vmul.f32 %v1269, %v1271
    %v1273 = vadd.f32 %v1269, %v1272
    %vm1274 = vweird.f32 %v1268
    %vm1275 = vweird.f32 %v1269
    %vm1276 = vmor %vm1274, %vm1275
    %v1277 = vsel %vm1276, %v1269, %v1273
    %v1278 = vand.u32 2147483647, %v1268
    %vm1279 = vcmp.eq.f32.partialorder %v1278, 8.507059e+37
    %v1280 = vand.u32 %v1268, 2147483648
    %v1281 = vor.u32 1.1754944e-38, %v1280
    %v1282 = vsel %vm1279, %v1281, %v1277
    %v1283 = vmul.f32 %v1258, %v1282
    %v1284 = vmin.f32 %v1283, 1.0
    %v1285 = vmax.f32 %v1284, -1.0
    %v1286 = vmul.f32 %v552, %v552
    %v1287 = vmin.f32 16.0, %v1286
    %v1288 = vmul.f32 %v1287, 2.1237322e-06
    %v1289 = vadd.f32 %v1288, 0.00028619796
    %v1290 = vmul.f32 %v1287, %v1289
    %v1291 = vadd.f32 %v1290, 0.0036580483
    %v1292 = vmul.f32 %v1287, %v1291
    %v1293 = vadd.f32 %v1292, 0.05243302
    %v1294 = vmul.f32 %v1287, %v1293
    %v1295 = vadd.f32 %v1294, 0.18741608
    %v1296 = vmul.f32 %v1287, %v1295
    %v1297 = vadd.f32 %v1296, 1.1283791
    %v1298 = vmul.f32 %v552, %v1297
    %v1299 = vmul.f32 %v1287, 3.8918573e-05
    %v1300 = vadd.f32 %v1299, 0.001143296
    %v1301 = vmul.f32 %v1287, %v1300
    %v1302 = vadd.f32 %v1301, 0.014752088
    %v1303 = vmul.f32 %v1287, %v1302
    %v1304 = vadd.f32 %v1303, 0.112945676
    %v1305 = vmul.f32 %v1287, %v1304
    %v1306 = vadd.f32 %v1305, 0.4994258
    %v1307 = vmul.f32 %v1287, %v1306
    %v1308 = vadd.f32 %v1307, 1.0
    %v1309 = vrcp.pop %v1308
    %v1310 = vmul.f32 %v1308, %v1309
    %v1311 = vsub.f32 1.0, %v1310
    %v1312 = vmul.f32 %v1309, %v1311
    %v1313 = vadd.f32 %v1309, %v1312
    %vm1314 = vweird.f32 %v1308
    %vm1315 = vweird.f32 %v1309
    %vm1316 = vmor %vm1314, %vm1315
    %v1317 = vsel %vm1316, %v1309, %v1313
    %v1318 = vand.u32 2147483647, %v1308
    %vm1319 = vcmp.eq.f32.partialorder %v1318, 8.507059e+37
    %v1320 = vand.u32 %v1308, 2147483648
    %v1321 = vor.u32 1.1754944e-38, %v1320
    %v1322 = vsel %vm1319, %v1321, %v1317
    %v1323 = vmul.f32 %v1298, %v1322
    %v1324 = vmin.f32 %v1323, 1.0
    %v1325 = vmax.f32 %v1324, -1.0
    %v1326 = vmul.f32 %v553, %v553
    %v1327 = vmin.f32 16.0, %v1326
    %v1328 = vmul.f32 %v1327, 2.1237322e-06
    %v1329 = vadd.f32 %v1328, 0.00028619796
    %v1330 = vmul.f32 %v1327, %v1329
    %v1331 = vadd.f32 %v1330, 0.0036580483
    %v1332 = vmul.f32 %v1327, %v1331
    %v1333 = vadd.f32 %v1332, 0.05243302
    %v1334 = vmul.f32 %v1327, %v1333
    %v1335 = vadd.f32 %v1334, 0.18741608
    %v1336 = vmul.f32 %v1327, %v1335
    %v1337 = vadd.f32 %v1336, 1.1283791
    %v1338 = vmul.f32 %v553, %v1337
    %v1339 = vmul.f32 %v1327, 3.8918573e-05
    %v1340 = vadd.f32 %v1339, 0.001143296
    %v1341 = vmul.f32 %v1327, %v1340
    %v1342 = vadd.f32 %v1341, 0.014752088
    %v1343 = vmul.f32 %v1327, %v1342
    %v1344 = vadd.f32 %v1343, 0.112945676
    %v1345 = vmul.f32 %v1327, %v1344
    %v1346 = vadd.f32 %v1345, 0.4994258
    %v1347 = vmul.f32 %v1327, %v1346
    %v1348 = vadd.f32 %v1347, 1.0
    %v1349 = vrcp.pop %v1348
    %v1350 = vmul.f32 %v1348, %v1349
    %v1351 = vsub.f32 1.0, %v1350
    %v1352 = vmul.f32 %v1349, %v1351
    %v1353 = vadd.f32 %v1349, %v1352
    %vm1354 = vweird.f32 %v1348
    %vm1355 = vweird.f32 %v1349
    %vm1356 = vmor %vm1354, %vm1355
    %v1357 = vsel %vm1356, %v1349, %v1353
    %v1358 = vand.u32 2147483647, %v1348
    %vm1359 = vcmp.eq.f32.partialorder %v1358, 8.507059e+37
    %v1360 = vand.u32 %v1348, 2147483648
    %v1361 = vor.u32 1.1754944e-38, %v1360
    %v1362 = vsel %vm1359, %v1361, %v1357
    %v1363 = vmul.f32 %v1338, %v1362
    %v1364 = vmin.f32 %v1363, 1.0
    %v1365 = vmax.f32 %v1364, -1.0
    %v1366 = vmul.f32 %v554, %v554
    %v1367 = vmin.f32 16.0, %v1366
    %v1368 = vmul.f32 %v1367, 2.1237322e-06
    %v1369 = vadd.f32 %v1368, 0.00028619796
    %v1370 = vmul.f32 %v1367, %v1369
    %v1371 = vadd.f32 %v1370, 0.0036580483
    %v1372 = vmul.f32 %v1367, %v1371
    %v1373 = vadd.f32 %v1372, 0.05243302
    %v1374 = vmul.f32 %v1367, %v1373
    %v1375 = vadd.f32 %v1374, 0.18741608
    %v1376 = vmul.f32 %v1367, %v1375
    %v1377 = vadd.f32 %v1376, 1.1283791
    %v1378 = vmul.f32 %v554, %v1377
    %v1379 = vmul.f32 %v1367, 3.8918573e-05
    %v1380 = vadd.f32 %v1379, 0.001143296
    %v1381 = vmul.f32 %v1367, %v1380
    %v1382 = vadd.f32 %v1381, 0.014752088
    %v1383 = vmul.f32 %v1367, %v1382
    %v1384 = vadd.f32 %v1383, 0.112945676
    %v1385 = vmul.f32 %v1367, %v1384
    %v1386 = vadd.f32 %v1385, 0.4994258
    %v1387 = vmul.f32 %v1367, %v1386
    %v1388 = vadd.f32 %v1387, 1.0
    %v1389 = vrcp.pop %v1388
    %v1390 = vmul.f32 %v1388, %v1389
    %v1391 = vsub.f32 1.0, %v1390
    %v1392 = vmul.f32 %v1389, %v1391
    %v1393 = vadd.f32 %v1389, %v1392
    %vm1394 = vweird.f32 %v1388
    %vm1395 = vweird.f32 %v1389
    %vm1396 = vmor %vm1394, %vm1395
    %v1397 = vsel %vm1396, %v1389, %v1393
    %v1398 = vand.u32 2147483647, %v1388
    %vm1399 = vcmp.eq.f32.partialorder %v1398, 8.507059e+37
    %v1400 = vand.u32 %v1388, 2147483648
    %v1401 = vor.u32 1.1754944e-38, %v1400
    %v1402 = vsel %vm1399, %v1401, %v1397
    %v1403 = vmul.f32 %v1378, %v1402
    %v1404 = vmin.f32 %v1403, 1.0
    %v1405 = vmax.f32 %v1404, -1.0
    %v1406 = vmul.f32 %v555, %v555
    %v1407 = vmin.f32 16.0, %v1406
    %v1408 = vmul.f32 %v1407, 2.1237322e-06
    %v1409 = vadd.f32 %v1408, 0.00028619796
    %v1410 = vmul.f32 %v1407, %v1409
    %v1411 = vadd.f32 %v1410, 0.0036580483
    %v1412 = vmul.f32 %v1407, %v1411
    %v1413 = vadd.f32 %v1412, 0.05243302
    %v1414 = vmul.f32 %v1407, %v1413
    %v1415 = vadd.f32 %v1414, 0.18741608
    %v1416 = vmul.f32 %v1407, %v1415
    %v1417 = vadd.f32 %v1416, 1.1283791
    %v1418 = vmul.f32 %v555, %v1417
    %v1419 = vmul.f32 %v1407, 3.8918573e-05
    %v1420 = vadd.f32 %v1419, 0.001143296
    %v1421 = vmul.f32 %v1407, %v1420
    %v1422 = vadd.f32 %v1421, 0.014752088
    %v1423 = vmul.f32 %v1407, %v1422
    %v1424 = vadd.f32 %v1423, 0.112945676
    %v1425 = vmul.f32 %v1407, %v1424
    %v1426 = vadd.f32 %v1425, 0.4994258
    %v1427 = vmul.f32 %v1407, %v1426
    %v1428 = vadd.f32 %v1427, 1.0
    %v1429 = vrcp.pop %v1428
    %v1430 = vmul.f32 %v1428, %v1429
    %v1431 = vsub.f32 1.0, %v1430
    %v1432 = vmul.f32 %v1429, %v1431
    %v1433 = vadd.f32 %v1429, %v1432
    %vm1434 = vweird.f32 %v1428
    %vm1435 = vweird.f32 %v1429
    %vm1436 = vmor %vm1434, %vm1435
    %v1437 = vsel %vm1436, %v1429, %v1433
    %v1438 = vand.u32 2147483647, %v1428
    %vm1439 = vcmp.eq.f32.partialorder %v1438, 8.507059e+37
    %v1440 = vand.u32 %v1428, 2147483648
    %v1441 = vor.u32 1.1754944e-38, %v1440
    %v1442 = vsel %vm1439, %v1441, %v1437
    %v1443 = vmul.f32 %v1418, %v1442
    %v1444 = vmin.f32 %v1443, 1.0
    %v1445 = vmax.f32 %v1444, -1.0
    %v1446 = vmul.f32 %v556, %v556
    %v1447 = vmin.f32 16.0, %v1446
    %v1448 = vmul.f32 %v1447, 2.1237322e-06
    %v1449 = vadd.f32 %v1448, 0.00028619796
    %v1450 = vmul.f32 %v1447, %v1449
    %v1451 = vadd.f32 %v1450, 0.0036580483
    %v1452 = vmul.f32 %v1447, %v1451
    %v1453 = vadd.f32 %v1452, 0.05243302
    %v1454 = vmul.f32 %v1447, %v1453
    %v1455 = vadd.f32 %v1454, 0.18741608
    %v1456 = vmul.f32 %v1447, %v1455
    %v1457 = vadd.f32 %v1456, 1.1283791
    %v1458 = vmul.f32 %v556, %v1457
    %v1459 = vmul.f32 %v1447, 3.8918573e-05
    %v1460 = vadd.f32 %v1459, 0.001143296
    %v1461 = vmul.f32 %v1447, %v1460
    %v1462 = vadd.f32 %v1461, 0.014752088
    %v1463 = vmul.f32 %v1447, %v1462
    %v1464 = vadd.f32 %v1463, 0.112945676
    %v1465 = vmul.f32 %v1447, %v1464
    %v1466 = vadd.f32 %v1465, 0.4994258
    %v1467 = vmul.f32 %v1447, %v1466
    %v1468 = vadd.f32 %v1467, 1.0
    %v1469 = vrcp.pop %v1468
    %v1470 = vmul.f32 %v1468, %v1469
    %v1471 = vsub.f32 1.0, %v1470
    %v1472 = vmul.f32 %v1469, %v1471
    %v1473 = vadd.f32 %v1469, %v1472
    %vm1474 = vweird.f32 %v1468
    %vm1475 = vweird.f32 %v1469
    %vm1476 = vmor %vm1474, %vm1475
    %v1477 = vsel %vm1476, %v1469, %v1473
    %v1478 = vand.u32 2147483647, %v1468
    %vm1479 = vcmp.eq.f32.partialorder %v1478, 8.507059e+37
    %v1480 = vand.u32 %v1468, 2147483648
    %v1481 = vor.u32 1.1754944e-38, %v1480
    %v1482 = vsel %vm1479, %v1481, %v1477
    %v1483 = vmul.f32 %v1458, %v1482
    %v1484 = vmin.f32 %v1483, 1.0
    %v1485 = vmax.f32 %v1484, -1.0
    %v1486 = vmul.f32 %v557, %v557
    %v1487 = vmin.f32 16.0, %v1486
    %v1488 = vmul.f32 %v1487, 2.1237322e-06
    %v1489 = vadd.f32 %v1488, 0.00028619796
    %v1490 = vmul.f32 %v1487, %v1489
    %v1491 = vadd.f32 %v1490, 0.0036580483
    %v1492 = vmul.f32 %v1487, %v1491
    %v1493 = vadd.f32 %v1492, 0.05243302
    %v1494 = vmul.f32 %v1487, %v1493
    %v1495 = vadd.f32 %v1494, 0.18741608
    %v1496 = vmul.f32 %v1487, %v1495
    %v1497 = vadd.f32 %v1496, 1.1283791
    %v1498 = vmul.f32 %v557, %v1497
    %v1499 = vmul.f32 %v1487, 3.8918573e-05
    %v1500 = vadd.f32 %v1499, 0.001143296
    %v1501 = vmul.f32 %v1487, %v1500
    %v1502 = vadd.f32 %v1501, 0.014752088
    %v1503 = vmul.f32 %v1487, %v1502
    %v1504 = vadd.f32 %v1503, 0.112945676
    %v1505 = vmul.f32 %v1487, %v1504
    %v1506 = vadd.f32 %v1505, 0.4994258
    %v1507 = vmul.f32 %v1487, %v1506
    %v1508 = vadd.f32 %v1507, 1.0
    %v1509 = vrcp.pop %v1508
    %v1510 = vmul.f32 %v1508, %v1509
    %v1511 = vsub.f32 1.0, %v1510
    %v1512 = vmul.f32 %v1509, %v1511
    %v1513 = vadd.f32 %v1509, %v1512
    %vm1514 = vweird.f32 %v1508
    %vm1515 = vweird.f32 %v1509
    %vm1516 = vmor %vm1514, %vm1515
    %v1517 = vsel %vm1516, %v1509, %v1513
    %v1518 = vand.u32 2147483647, %v1508
    %vm1519 = vcmp.eq.f32.partialorder %v1518, 8.507059e+37
    %v1520 = vand.u32 %v1508, 2147483648
    %v1521 = vor.u32 1.1754944e-38, %v1520
    %v1522 = vsel %vm1519, %v1521, %v1517
    %v1523 = vmul.f32 %v1498, %v1522
    %v1524 = vmin.f32 %v1523, 1.0
    %v1525 = vmax.f32 %v1524, -1.0
    %v1526 = vmul.f32 %v558, %v558
    %v1527 = vmin.f32 16.0, %v1526
    %v1528 = vmul.f32 %v1527, 2.1237322e-06
    %v1529 = vadd.f32 %v1528, 0.00028619796
    %v1530 = vmul.f32 %v1527, %v1529
    %v1531 = vadd.f32 %v1530, 0.0036580483
    %v1532 = vmul.f32 %v1527, %v1531
    %v1533 = vadd.f32 %v1532, 0.05243302
    %v1534 = vmul.f32 %v1527, %v1533
    %v1535 = vadd.f32 %v1534, 0.18741608
    %v1536 = vmul.f32 %v1527, %v1535
    %v1537 = vadd.f32 %v1536, 1.1283791
    %v1538 = vmul.f32 %v558, %v1537
    %v1539 = vmul.f32 %v1527, 3.8918573e-05
    %v1540 = vadd.f32 %v1539, 0.001143296
    %v1541 = vmul.f32 %v1527, %v1540
    %v1542 = vadd.f32 %v1541, 0.014752088
    %v1543 = vmul.f32 %v1527, %v1542
    %v1544 = vadd.f32 %v1543, 0.112945676
    %v1545 = vmul.f32 %v1527, %v1544
    %v1546 = vadd.f32 %v1545, 0.4994258
    %v1547 = vmul.f32 %v1527, %v1546
    %v1548 = vadd.f32 %v1547, 1.0
    %v1549 = vrcp.pop %v1548
    %v1550 = vmul.f32 %v1548, %v1549
    %v1551 = vsub.f32 1.0, %v1550
    %v1552 = vmul.f32 %v1549, %v1551
    %v1553 = vadd.f32 %v1549, %v1552
    %vm1554 = vweird.f32 %v1548
    %vm1555 = vweird.f32 %v1549
    %vm1556 = vmor %vm1554, %vm1555
    %v1557 = vsel %vm1556, %v1549, %v1553
    %v1558 = vand.u32 2147483647, %v1548
    %vm1559 = vcmp.eq.f32.partialorder %v1558, 8.507059e+37
    %v1560 = vand.u32 %v1548, 2147483648
    %v1561 = vor.u32 1.1754944e-38, %v1560
    %v1562 = vsel %vm1559, %v1561, %v1557
    %v1563 = vmul.f32 %v1538, %v1562
    %v1564 = vmin.f32 %v1563, 1.0
    %v1565 = vmax.f32 %v1564, -1.0
    %v1566 = vmul.f32 %v559, %v559
    %v1567 = vmin.f32 16.0, %v1566
    %v1568 = vmul.f32 %v1567, 2.1237322e-06
    %v1569 = vadd.f32 %v1568, 0.00028619796
    %v1570 = vmul.f32 %v1567, %v1569
    %v1571 = vadd.f32 %v1570, 0.0036580483
    %v1572 = vmul.f32 %v1567, %v1571
    %v1573 = vadd.f32 %v1572, 0.05243302
    %v1574 = vmul.f32 %v1567, %v1573
    %v1575 = vadd.f32 %v1574, 0.18741608
    %v1576 = vmul.f32 %v1567, %v1575
    %v1577 = vadd.f32 %v1576, 1.1283791
    %v1578 = vmul.f32 %v559, %v1577
    %v1579 = vmul.f32 %v1567, 3.8918573e-05
    %v1580 = vadd.f32 %v1579, 0.001143296
    %v1581 = vmul.f32 %v1567, %v1580
    %v1582 = vadd.f32 %v1581, 0.014752088
    %v1583 = vmul.f32 %v1567, %v1582
    %v1584 = vadd.f32 %v1583, 0.112945676
    %v1585 = vmul.f32 %v1567, %v1584
    %v1586 = vadd.f32 %v1585, 0.4994258
    %v1587 = vmul.f32 %v1567, %v1586
    %v1588 = vadd.f32 %v1587, 1.0
    %v1589 = vrcp.pop %v1588
    %v1590 = vmul.f32 %v1588, %v1589
    %v1591 = vsub.f32 1.0, %v1590
    %v1592 = vmul.f32 %v1589, %v1591
    %v1593 = vadd.f32 %v1589, %v1592
    %vm1594 = vweird.f32 %v1588
    %vm1595 = vweird.f32 %v1589
    %vm1596 = vmor %vm1594, %vm1595
    %v1597 = vsel %vm1596, %v1589, %v1593
    %v1598 = vand.u32 2147483647, %v1588
    %vm1599 = vcmp.eq.f32.partialorder %v1598, 8.507059e+37
    %v1600 = vand.u32 %v1588, 2147483648
    %v1601 = vor.u32 1.1754944e-38, %v1600
    %v1602 = vsel %vm1599, %v1601, %v1597
    %v1603 = vmul.f32 %v1578, %v1602
    %v1604 = vmin.f32 %v1603, 1.0
    %v1605 = vmax.f32 %v1604, -1.0
    %v1606 = vmul.f32 %v560, %v560
    %v1607 = vmin.f32 16.0, %v1606
    %v1608 = vmul.f32 %v1607, 2.1237322e-06
    %v1609 = vadd.f32 %v1608, 0.00028619796
    %v1610 = vmul.f32 %v1607, %v1609
    %v1611 = vadd.f32 %v1610, 0.0036580483
    %v1612 = vmul.f32 %v1607, %v1611
    %v1613 = vadd.f32 %v1612, 0.05243302
    %v1614 = vmul.f32 %v1607, %v1613
    %v1615 = vadd.f32 %v1614, 0.18741608
    %v1616 = vmul.f32 %v1607, %v1615
    %v1617 = vadd.f32 %v1616, 1.1283791
    %v1618 = vmul.f32 %v560, %v1617
    %v1619 = vmul.f32 %v1607, 3.8918573e-05
    %v1620 = vadd.f32 %v1619, 0.001143296
    %v1621 = vmul.f32 %v1607, %v1620
    %v1622 = vadd.f32 %v1621, 0.014752088
    %v1623 = vmul.f32 %v1607, %v1622
    %v1624 = vadd.f32 %v1623, 0.112945676
    %v1625 = vmul.f32 %v1607, %v1624
    %v1626 = vadd.f32 %v1625, 0.4994258
    %v1627 = vmul.f32 %v1607, %v1626
    %v1628 = vadd.f32 %v1627, 1.0
    %v1629 = vrcp.pop %v1628
    %v1630 = vmul.f32 %v1628, %v1629
    %v1631 = vsub.f32 1.0, %v1630
    %v1632 = vmul.f32 %v1629, %v1631
    %v1633 = vadd.f32 %v1629, %v1632
    %vm1634 = vweird.f32 %v1628
    %vm1635 = vweird.f32 %v1629
    %vm1636 = vmor %vm1634, %vm1635
    %v1637 = vsel %vm1636, %v1629, %v1633
    %v1638 = vand.u32 2147483647, %v1628
    %vm1639 = vcmp.eq.f32.partialorder %v1638, 8.507059e+37
    %v1640 = vand.u32 %v1628, 2147483648
    %v1641 = vor.u32 1.1754944e-38, %v1640
    %v1642 = vsel %vm1639, %v1641, %v1637
    %v1643 = vmul.f32 %v1618, %v1642
    %v1644 = vmin.f32 %v1643, 1.0
    %v1645 = vmax.f32 %v1644, -1.0
    %v1646 = vmul.f32 %v561, %v561
    %v1647 = vmin.f32 16.0, %v1646
    %v1648 = vmul.f32 %v1647, 2.1237322e-06
    %v1649 = vadd.f32 %v1648, 0.00028619796
    %v1650 = vmul.f32 %v1647, %v1649
    %v1651 = vadd.f32 %v1650, 0.0036580483
    %v1652 = vmul.f32 %v1647, %v1651
    %v1653 = vadd.f32 %v1652, 0.05243302
    %v1654 = vmul.f32 %v1647, %v1653
    %v1655 = vadd.f32 %v1654, 0.18741608
    %v1656 = vmul.f32 %v1647, %v1655
    %v1657 = vadd.f32 %v1656, 1.1283791
    %v1658 = vmul.f32 %v561, %v1657
    %v1659 = vmul.f32 %v1647, 3.8918573e-05
    %v1660 = vadd.f32 %v1659, 0.001143296
    %v1661 = vmul.f32 %v1647, %v1660
    %v1662 = vadd.f32 %v1661, 0.014752088
    %v1663 = vmul.f32 %v1647, %v1662
    %v1664 = vadd.f32 %v1663, 0.112945676
    %v1665 = vmul.f32 %v1647, %v1664
    %v1666 = vadd.f32 %v1665, 0.4994258
    %v1667 = vmul.f32 %v1647, %v1666
    %v1668 = vadd.f32 %v1667, 1.0
    %v1669 = vrcp.pop %v1668
    %v1670 = vmul.f32 %v1668, %v1669
    %v1671 = vsub.f32 1.0, %v1670
    %v1672 = vmul.f32 %v1669, %v1671
    %v1673 = vadd.f32 %v1669, %v1672
    %vm1674 = vweird.f32 %v1668
    %vm1675 = vweird.f32 %v1669
    %vm1676 = vmor %vm1674, %vm1675
    %v1677 = vsel %vm1676, %v1669, %v1673
    %v1678 = vand.u32 2147483647, %v1668
    %vm1679 = vcmp.eq.f32.partialorder %v1678, 8.507059e+37
    %v1680 = vand.u32 %v1668, 2147483648
    %v1681 = vor.u32 1.1754944e-38, %v1680
    %v1682 = vsel %vm1679, %v1681, %v1677
    %v1683 = vmul.f32 %v1658, %v1682
    %v1684 = vmin.f32 %v1683, 1.0
    %v1685 = vmax.f32 %v1684, -1.0
    %v1686 = vmul.f32 %v562, %v562
    %v1687 = vmin.f32 16.0, %v1686
    %v1688 = vmul.f32 %v1687, 2.1237322e-06
    %v1689 = vadd.f32 %v1688, 0.00028619796
    %v1690 = vmul.f32 %v1687, %v1689
    %v1691 = vadd.f32 %v1690, 0.0036580483
    %v1692 = vmul.f32 %v1687, %v1691
    %v1693 = vadd.f32 %v1692, 0.05243302
    %v1694 = vmul.f32 %v1687, %v1693
    %v1695 = vadd.f32 %v1694, 0.18741608
    %v1696 = vmul.f32 %v1687, %v1695
    %v1697 = vadd.f32 %v1696, 1.1283791
    %v1698 = vmul.f32 %v562, %v1697
    %v1699 = vmul.f32 %v1687, 3.8918573e-05
    %v1700 = vadd.f32 %v1699, 0.001143296
    %v1701 = vmul.f32 %v1687, %v1700
    %v1702 = vadd.f32 %v1701, 0.014752088
    %v1703 = vmul.f32 %v1687, %v1702
    %v1704 = vadd.f32 %v1703, 0.112945676
    %v1705 = vmul.f32 %v1687, %v1704
    %v1706 = vadd.f32 %v1705, 0.4994258
    %v1707 = vmul.f32 %v1687, %v1706
    %v1708 = vadd.f32 %v1707, 1.0
    %v1709 = vrcp.pop %v1708
    %v1710 = vmul.f32 %v1708, %v1709
    %v1711 = vsub.f32 1.0, %v1710
    %v1712 = vmul.f32 %v1709, %v1711
    %v1713 = vadd.f32 %v1709, %v1712
    %vm1714 = vweird.f32 %v1708
    %vm1715 = vweird.f32 %v1709
    %vm1716 = vmor %vm1714, %vm1715
    %v1717 = vsel %vm1716, %v1709, %v1713
    %v1718 = vand.u32 2147483647, %v1708
    %vm1719 = vcmp.eq.f32.partialorder %v1718, 8.507059e+37
    %v1720 = vand.u32 %v1708, 2147483648
    %v1721 = vor.u32 1.1754944e-38, %v1720
    %v1722 = vsel %vm1719, %v1721, %v1717
    %v1723 = vmul.f32 %v1698, %v1722
    %v1724 = vmin.f32 %v1723, 1.0
    %v1725 = vmax.f32 %v1724, -1.0
    %v1726 = vmul.f32 %v563, %v563
    %v1727 = vmin.f32 16.0, %v1726
    %v1728 = vmul.f32 %v1727, 2.1237322e-06
    %v1729 = vadd.f32 %v1728, 0.00028619796
    %v1730 = vmul.f32 %v1727, %v1729
    %v1731 = vadd.f32 %v1730, 0.0036580483
    %v1732 = vmul.f32 %v1727, %v1731
    %v1733 = vadd.f32 %v1732, 0.05243302
    %v1734 = vmul.f32 %v1727, %v1733
    %v1735 = vadd.f32 %v1734, 0.18741608
    %v1736 = vmul.f32 %v1727, %v1735
    %v1737 = vadd.f32 %v1736, 1.1283791
    %v1738 = vmul.f32 %v563, %v1737
    %v1739 = vmul.f32 %v1727, 3.8918573e-05
    %v1740 = vadd.f32 %v1739, 0.001143296
    %v1741 = vmul.f32 %v1727, %v1740
    %v1742 = vadd.f32 %v1741, 0.014752088
    %v1743 = vmul.f32 %v1727, %v1742
    %v1744 = vadd.f32 %v1743, 0.112945676
    %v1745 = vmul.f32 %v1727, %v1744
    %v1746 = vadd.f32 %v1745, 0.4994258
    %v1747 = vmul.f32 %v1727, %v1746
    %v1748 = vadd.f32 %v1747, 1.0
    %v1749 = vrcp.pop %v1748
    %v1750 = vmul.f32 %v1748, %v1749
    %v1751 = vsub.f32 1.0, %v1750
    %v1752 = vmul.f32 %v1749, %v1751
    %v1753 = vadd.f32 %v1749, %v1752
    %vm1754 = vweird.f32 %v1748
    %vm1755 = vweird.f32 %v1749
    %vm1756 = vmor %vm1754, %vm1755
    %v1757 = vsel %vm1756, %v1749, %v1753
    %v1758 = vand.u32 2147483647, %v1748
    %vm1759 = vcmp.eq.f32.partialorder %v1758, 8.507059e+37
    %v1760 = vand.u32 %v1748, 2147483648
    %v1761 = vor.u32 1.1754944e-38, %v1760
    %v1762 = vsel %vm1759, %v1761, %v1757
    %v1763 = vmul.f32 %v1738, %v1762
    %v1764 = vmin.f32 %v1763, 1.0
    %v1765 = vmax.f32 %v1764, -1.0
    %v1766 = vmul.f32 %v564, %v564
    %v1767 = vmin.f32 16.0, %v1766
    %v1768 = vmul.f32 %v1767, 2.1237322e-06
    %v1769 = vadd.f32 %v1768, 0.00028619796
    %v1770 = vmul.f32 %v1767, %v1769
    %v1771 = vadd.f32 %v1770, 0.0036580483
    %v1772 = vmul.f32 %v1767, %v1771
    %v1773 = vadd.f32 %v1772, 0.05243302
    %v1774 = vmul.f32 %v1767, %v1773
    %v1775 = vadd.f32 %v1774, 0.18741608
    %v1776 = vmul.f32 %v1767, %v1775
    %v1777 = vadd.f32 %v1776, 1.1283791
    %v1778 = vmul.f32 %v564, %v1777
    %v1779 = vmul.f32 %v1767, 3.8918573e-05
    %v1780 = vadd.f32 %v1779, 0.001143296
    %v1781 = vmul.f32 %v1767, %v1780
    %v1782 = vadd.f32 %v1781, 0.014752088
    %v1783 = vmul.f32 %v1767, %v1782
    %v1784 = vadd.f32 %v1783, 0.112945676
    %v1785 = vmul.f32 %v1767, %v1784
    %v1786 = vadd.f32 %v1785, 0.4994258
    %v1787 = vmul.f32 %v1767, %v1786
    %v1788 = vadd.f32 %v1787, 1.0
    %v1789 = vrcp.pop %v1788
    %v1790 = vmul.f32 %v1788, %v1789
    %v1791 = vsub.f32 1.0, %v1790
    %v1792 = vmul.f32 %v1789, %v1791
    %v1793 = vadd.f32 %v1789, %v1792
    %vm1794 = vweird.f32 %v1788
    %vm1795 = vweird.f32 %v1789
    %vm1796 = vmor %vm1794, %vm1795
    %v1797 = vsel %vm1796, %v1789, %v1793
    %v1798 = vand.u32 2147483647, %v1788
    %vm1799 = vcmp.eq.f32.partialorder %v1798, 8.507059e+37
    %v1800 = vand.u32 %v1788, 2147483648
    %v1801 = vor.u32 1.1754944e-38, %v1800
    %v1802 = vsel %vm1799, %v1801, %v1797
    %v1803 = vmul.f32 %v1778, %v1802
    %v1804 = vmin.f32 %v1803, 1.0
    %v1805 = vmax.f32 %v1804, -1.0
    %v1806 = vmul.f32 %v565, %v565
    %v1807 = vmin.f32 16.0, %v1806
    %v1808 = vmul.f32 %v1807, 2.1237322e-06
    %v1809 = vadd.f32 %v1808, 0.00028619796
    %v1810 = vmul.f32 %v1807, %v1809
    %v1811 = vadd.f32 %v1810, 0.0036580483
    %v1812 = vmul.f32 %v1807, %v1811
    %v1813 = vadd.f32 %v1812, 0.05243302
    %v1814 = vmul.f32 %v1807, %v1813
    %v1815 = vadd.f32 %v1814, 0.18741608
    %v1816 = vmul.f32 %v1807, %v1815
    %v1817 = vadd.f32 %v1816, 1.1283791
    %v1818 = vmul.f32 %v565, %v1817
    %v1819 = vmul.f32 %v1807, 3.8918573e-05
    %v1820 = vadd.f32 %v1819, 0.001143296
    %v1821 = vmul.f32 %v1807, %v1820
    %v1822 = vadd.f32 %v1821, 0.014752088
    %v1823 = vmul.f32 %v1807, %v1822
    %v1824 = vadd.f32 %v1823, 0.112945676
    %v1825 = vmul.f32 %v1807, %v1824
    %v1826 = vadd.f32 %v1825, 0.4994258
    %v1827 = vmul.f32 %v1807, %v1826
    %v1828 = vadd.f32 %v1827, 1.0
    %v1829 = vrcp.pop %v1828
    %v1830 = vmul.f32 %v1828, %v1829
    %v1831 = vsub.f32 1.0, %v1830
    %v1832 = vmul.f32 %v1829, %v1831
    %v1833 = vadd.f32 %v1829, %v1832
    %vm1834 = vweird.f32 %v1828
    %vm1835 = vweird.f32 %v1829
    %vm1836 = vmor %vm1834, %vm1835
    %v1837 = vsel %vm1836, %v1829, %v1833
    %v1838 = vand.u32 2147483647, %v1828
    %vm1839 = vcmp.eq.f32.partialorder %v1838, 8.507059e+37
    %v1840 = vand.u32 %v1828, 2147483648
    %v1841 = vor.u32 1.1754944e-38, %v1840
    %v1842 = vsel %vm1839, %v1841, %v1837
    %v1843 = vmul.f32 %v1818, %v1842
    %v1844 = vmin.f32 %v1843, 1.0
    %v1845 = vmax.f32 %v1844, -1.0
    %v1846 = vadd.f32 %v605, 1.0
    %v1847 = vadd.f32 %v645, 1.0
    %v1848 = vadd.f32 %v685, 1.0
    %v1849 = vadd.f32 %v725, 1.0
    %v1850 = vadd.f32 %v765, 1.0
    %v1851 = vadd.f32 %v805, 1.0
    %v1852 = vadd.f32 %v845, 1.0
    %v1853 = vadd.f32 %v885, 1.0
    %v1854 = vadd.f32 %v925, 1.0
    %v1855 = vadd.f32 %v965, 1.0
    %v1856 = vadd.f32 %v1005, 1.0
    %v1857 = vadd.f32 %v1045, 1.0
    %v1858 = vadd.f32 %v1085, 1.0
    %v1859 = vadd.f32 %v1125, 1.0
    %v1860 = vadd.f32 %v1165, 1.0
    %v1861 = vadd.f32 %v1205, 1.0
    %v1862 = vadd.f32 %v1245, 1.0
    %v1863 = vadd.f32 %v1285, 1.0
    %v1864 = vadd.f32 %v1325, 1.0
    %v1865 = vadd.f32 %v1365, 1.0
    %v1866 = vadd.f32 %v1405, 1.0
    %v1867 = vadd.f32 %v1445, 1.0
    %v1868 = vadd.f32 %v1485, 1.0
    %v1869 = vadd.f32 %v1525, 1.0
    %v1870 = vadd.f32 %v1565, 1.0
    %v1871 = vadd.f32 %v1605, 1.0
    %v1872 = vadd.f32 %v1645, 1.0
    %v1873 = vadd.f32 %v1685, 1.0
    %v1874 = vadd.f32 %v1725, 1.0
    %v1875 = vadd.f32 %v1765, 1.0
    %v1876 = vadd.f32 %v1805, 1.0
    %v1877 = vadd.f32 %v1845, 1.0
    %v1878 = vmul.f32 %v502, %v1846
    %v1879 = vmul.f32 %v503, %v1847
    %v1880 = vmul.f32 %v504, %v1848
    %v1881 = vmul.f32 %v505, %v1849
    %v1882 = vmul.f32 %v506, %v1850
    %v1883 = vmul.f32 %v507, %v1851
    %v1884 = vmul.f32 %v508, %v1852
    %v1885 = vmul.f32 %v509, %v1853
    %v1886 = vmul.f32 %v510, %v1854
    %v1887 = vmul.f32 %v511, %v1855
    %v1888 = vmul.f32 %v512, %v1856
    %v1889 = vmul.f32 %v513, %v1857
    %v1890 = vmul.f32 %v514, %v1858
    %v1891 = vmul.f32 %v515, %v1859
    %v1892 = vmul.f32 %v516, %v1860
    %v1893 = vmul.f32 %v517, %v1861
    %v1894 = vmul.f32 %v518, %v1862
    %v1895 = vmul.f32 %v519, %v1863
    %v1896 = vmul.f32 %v520, %v1864
    %v1897 = vmul.f32 %v521, %v1865
    %v1898 = vmul.f32 %v522, %v1866
    %v1899 = vmul.f32 %v523, %v1867
    %v1900 = vmul.f32 %v524, %v1868
    %v1901 = vmul.f32 %v525, %v1869
    %v1902 = vmul.f32 %v526, %v1870
    %v1903 = vmul.f32 %v527, %v1871
    %v1904 = vmul.f32 %v528, %v1872
    %v1905 = vmul.f32 %v529, %v1873
    %v1906 = vmul.f32 %v530, %v1874
    %v1907 = vmul.f32 %v531, %v1875
    %v1908 = vmul.f32 %v532, %v1876
    %v1909 = vmul.f32 %v533, %v1877
    %s1910 = smul.u32 0, 256
    %s1911 = sshra.s32 %s1910, 7
    %s1912 = sand.u32 %s1910, 127
    %s1913 = smul.addr %s1911, 8
    %s1914 = scalar_lea.vmem [#allocation2], %s1913
    %v1915 = vld [vmem:[%s1914] sm:$0xff]
    %v1916 = vld [vmem:[%s1914 + $0x8] sm:$0xff]
    %v1917 = vld [vmem:[%s1914 + $0x10] sm:$0xff]
    %v1918 = vld [vmem:[%s1914 + $0x18] sm:$0xff]
    %v1919 = vld [vmem:[%s1914 + $0x20] sm:$0xff]
    %v1920 = vld [vmem:[%s1914 + $0x28] sm:$0xff]
    %v1921 = vld [vmem:[%s1914 + $0x30] sm:$0xff]
    %v1922 = vld [vmem:[%s1914 + $0x38] sm:$0xff]
    %v1923 = vld [vmem:[%s1914 + $0x40] sm:$0xff]
    %v1924 = vld [vmem:[%s1914 + $0x48] sm:$0xff]
    %v1925 = vld [vmem:[%s1914 + $0x50] sm:$0xff]
    %v1926 = vld [vmem:[%s1914 + $0x58] sm:$0xff]
    %v1927 = vld [vmem:[%s1914 + $0x60] sm:$0xff]
    %v1928 = vld [vmem:[%s1914 + $0x68] sm:$0xff]
    %v1929 = vld [vmem:[%s1914 + $0x70] sm:$0xff]
    %v1930 = vld [vmem:[%s1914 + $0x78] sm:$0xff]
    %v1931 = vld [vmem:[%s1914 + $0x80] sm:$0xff]
    %v1932 = vld [vmem:[%s1914 + $0x88] sm:$0xff]
    %v1933 = vld [vmem:[%s1914 + $0x90] sm:$0xff]
    %v1934 = vld [vmem:[%s1914 + $0x98] sm:$0xff]
    %v1935 = vld [vmem:[%s1914 + $0xa0] sm:$0xff]
    %v1936 = vld [vmem:[%s1914 + $0xa8] sm:$0xff]
    %v1937 = vld [vmem:[%s1914 + $0xb0] sm:$0xff]
    %v1938 = vld [vmem:[%s1914 + $0xb8] sm:$0xff]
    %v1939 = vld [vmem:[%s1914 + $0xc0] sm:$0xff]
    %v1940 = vld [vmem:[%s1914 + $0xc8] sm:$0xff]
    %v1941 = vld [vmem:[%s1914 + $0xd0] sm:$0xff]
    %v1942 = vld [vmem:[%s1914 + $0xd8] sm:$0xff]
    %v1943 = vld [vmem:[%s1914 + $0xe0] sm:$0xff]
    %v1944 = vld [vmem:[%s1914 + $0xe8] sm:$0xff]
    %v1945 = vld [vmem:[%s1914 + $0xf0] sm:$0xff]
    %v1946 = vld [vmem:[%s1914 + $0xf8] sm:$0xff]
    %v1947 = vadd.f32 %v1915, %v1878
    %v1948 = vadd.f32 %v1916, %v1879
    %v1949 = vadd.f32 %v1917, %v1880
    %v1950 = vadd.f32 %v1918, %v1881
    %v1951 = vadd.f32 %v1919, %v1882
    %v1952 = vadd.f32 %v1920, %v1883
    %v1953 = vadd.f32 %v1921, %v1884
    %v1954 = vadd.f32 %v1922, %v1885
    %v1955 = vadd.f32 %v1923, %v1886
    %v1956 = vadd.f32 %v1924, %v1887
    %v1957 = vadd.f32 %v1925, %v1888
    %v1958 = vadd.f32 %v1926, %v1889
    %v1959 = vadd.f32 %v1927, %v1890
    %v1960 = vadd.f32 %v1928, %v1891
    %v1961 = vadd.f32 %v1929, %v1892
    %v1962 = vadd.f32 %v1930, %v1893
    %v1963 = vadd.f32 %v1931, %v1894
    %v1964 = vadd.f32 %v1932, %v1895
    %v1965 = vadd.f32 %v1933, %v1896
    %v1966 = vadd.f32 %v1934, %v1897
    %v1967 = vadd.f32 %v1935, %v1898
    %v1968 = vadd.f32 %v1936, %v1899
    %v1969 = vadd.f32 %v1937, %v1900
    %v1970 = vadd.f32 %v1938, %v1901
    %v1971 = vadd.f32 %v1939, %v1902
    %v1972 = vadd.f32 %v1940, %v1903
    %v1973 = vadd.f32 %v1941, %v1904
    %v1974 = vadd.f32 %v1942, %v1905
    %v1975 = vadd.f32 %v1943, %v1906
    %v1976 = vadd.f32 %v1944, %v1907
    %v1977 = vadd.f32 %v1945, %v1908
    %v1978 = vadd.f32 %v1946, %v1909
    %1979 = vst [vmem:[#allocation8] sm:$0xff] %v1947
    %1980 = vst [vmem:[#allocation8 + $0x8] sm:$0xff] %v1948
    %1981 = vst [vmem:[#allocation8 + $0x10] sm:$0xff] %v1949
    %1982 = vst [vmem:[#allocation8 + $0x18] sm:$0xff] %v1950
    %1983 = vst [vmem:[#allocation8 + $0x20] sm:$0xff] %v1951
    %1984 = vst [vmem:[#allocation8 + $0x28] sm:$0xff] %v1952
    %1985 = vst [vmem:[#allocation8 + $0x30] sm:$0xff] %v1953
    %1986 = vst [vmem:[#allocation8 + $0x38] sm:$0xff] %v1954
    %1987 = vst [vmem:[#allocation8 + $0x40] sm:$0xff] %v1955
    %1988 = vst [vmem:[#allocation8 + $0x48] sm:$0xff] %v1956
    %1989 = vst [vmem:[#allocation8 + $0x50] sm:$0xff] %v1957
    %1990 = vst [vmem:[#allocation8 + $0x58] sm:$0xff] %v1958
    %1991 = vst [vmem:[#allocation8 + $0x60] sm:$0xff] %v1959
    %1992 = vst [vmem:[#allocation8 + $0x68] sm:$0xff] %v1960
    %1993 = vst [vmem:[#allocation8 + $0x70] sm:$0xff] %v1961
    %1994 = vst [vmem:[#allocation8 + $0x78] sm:$0xff] %v1962
    %1995 = vst [vmem:[#allocation8 + $0x80] sm:$0xff] %v1963
    %1996 = vst [vmem:[#allocation8 + $0x88] sm:$0xff] %v1964
    %1997 = vst [vmem:[#allocation8 + $0x90] sm:$0xff] %v1965
    %1998 = vst [vmem:[#allocation8 + $0x98] sm:$0xff] %v1966
    %1999 = vst [vmem:[#allocation8 + $0xa0] sm:$0xff] %v1967
    %2000 = vst [vmem:[#allocation8 + $0xa8] sm:$0xff] %v1968
    %2001 = vst [vmem:[#allocation8 + $0xb0] sm:$0xff] %v1969
    %2002 = vst [vmem:[#allocation8 + $0xb8] sm:$0xff] %v1970
    %2003 = vst [vmem:[#allocation8 + $0xc0] sm:$0xff] %v1971
    %2004 = vst [vmem:[#allocation8 + $0xc8] sm:$0xff] %v1972
    %2005 = vst [vmem:[#allocation8 + $0xd0] sm:$0xff] %v1973
    %2006 = vst [vmem:[#allocation8 + $0xd8] sm:$0xff] %v1974
    %2007 = vst [vmem:[#allocation8 + $0xe0] sm:$0xff] %v1975
    %2008 = vst [vmem:[#allocation8 + $0xe8] sm:$0xff] %v1976
    %2009 = vst [vmem:[#allocation8 + $0xf0] sm:$0xff] %v1977
    %2010 = vst [vmem:[#allocation8 + $0xf8] sm:$0xff] %v1978
    // Predicated region
    $region26: #{tpu_custom_call.1} parent=1 // pred_check
      _
    $region27: #{tpu_custom_call.1} parent=1 // pred_check_branch
      %2012 = sbr.rel (0) target = $region29
    $region28: #{tpu_custom_call.1} parent=1 // pred_region
      %2014 = vsyncadd [#allocation4], 0
      %s2015 = sshll.u32 [#allocation8], 4
      %s2016 = int_to_ptr.vmem [resolvable:$true] %s2015
      %s2017 = sshll.u32 %s3, 4
      %s2018 = int_to_ptr.hbm [resolvable:$true] %s2017
      %2023 = dma.vmem_to_hbm [thread:$0]  %s2016, 4096, %s2018, [#allocation4], 256, 256, 16
    $region29: #{tpu_custom_call.1} parent=1 // pred_fallthru
      _
    // Predicated region
    $region30: #{tpu_custom_call.1} parent=1 // pred_check
      _
    $region31: #{tpu_custom_call.1} parent=1 // pred_check_branch
      %2025 = sbr.rel (0) target = $region33
    $region32: #{tpu_custom_call.1} parent=1 // pred_region
      %2027 = dma.done [#allocation4], 4096
    $region33: #{tpu_custom_call.1} parent=1 // pred_fallthru
      _
    %2028 = vsyncpa [#allocation3], 1
    %2029 = vsyncpa [#allocation6], 1
    %2030 = vsyncpa [#allocation4], 1

</llo_original>
